<compile_context>
chip_gen: v6e
topology: v6e:2x2x1
jax: 0.10.0
libtpu: 0.0.40
codegen_flags: <defaults>
</compile_context>

<pallas_src>
import functools

import jax
import jax.numpy as jnp
from jax.experimental import pallas as pl
from jax.experimental.pallas import tpu as pltpu


# 48 MiB: above the 32 MiB default scoped limit, below v7x's 64 MiB physical.
_VMEM_LIMIT_BYTES = 48 * 1024 * 1024


def _pick_tile(dim, desired, align):
    """Largest multiple of `align` <= desired that divides dim (or dim itself)."""
    if dim <= desired:
        return dim
    t = (desired // align) * align
    while t >= align:
        if dim % t == 0:
            return t
        t -= align
    return dim


# ----------------------------- Kernel 1: gate/up --------------------------- #
def _gate_up_kernel(x_ref, wg_ref, wu_ref, t_ref, tmin_ref, tmax_ref,
                    accg_ref, accu_ref):
    k = pl.program_id(2)

    @pl.when(k == 0)
    def _():
        accg_ref[...] = jnp.zeros_like(accg_ref)
        accu_ref[...] = jnp.zeros_like(accu_ref)

    x = x_ref[...]                                   # bf16 (tm, tk)
    accg_ref[...] += jnp.dot(x, wg_ref[...], preferred_element_type=jnp.float32)
    accu_ref[...] += jnp.dot(x, wu_ref[...], preferred_element_type=jnp.float32)

    @pl.when(k == pl.num_programs(2) - 1)
    def _():
        # f32 elementwise (SiLU on EUP) on the f32 accumulators.
        prod = jax.nn.silu(accg_ref[...]) * accu_ref[...]      # (tm, tn) f32
        t_ref[...] = prod.astype(t_ref.dtype)
        tm, tn = prod.shape
        # Partial per-channel min/max: reduce rows in groups of 8 (pure VPU,
        # no cross-sublane work); final reduction finishes in JAX glue.
        p3 = prod.reshape(tm // 8, 8, tn)
        tmin_ref[...] = jnp.min(p3, axis=0)
        tmax_ref[...] = jnp.max(p3, axis=0)


def fused_gate_up(x, wg, wu, *, tm=256, tn=256, tk=512):
    M, H = x.shape
    _, I = wg.shape
    assert M % 8 == 0, "token count (batch*seq) must be a multiple of 8"
    tm = _pick_tile(M, tm, 8)
    tn = _pick_tile(I, tn, 128)
    tk = _pick_tile(H, tk, 128)
    gm, gn, gk = M // tm, I // tn, H // tk

    cost = pl.CostEstimate(
        flops=4 * M * I * H + 4 * M * I,
        transcendentals=M * I,
        bytes_accessed=(M * H + 2 * H * I) * x.dtype.itemsize
        + M * I * 2 + 2 * gm * 8 * I * 4,
    )
    return pl.pallas_call(
        _gate_up_kernel,
        out_shape=(
            jax.ShapeDtypeStruct((M, I), jnp.bfloat16),       # t (bf16: half HBM)
            jax.ShapeDtypeStruct((gm * 8, I), jnp.float32),   # partial min
            jax.ShapeDtypeStruct((gm * 8, I), jnp.float32),   # partial max
        ),
        grid_spec=pltpu.PrefetchScalarGridSpec(
            num_scalar_prefetch=0,
            grid=(gm, gn, gk),
            in_specs=[
                pl.BlockSpec((tm, tk), lambda i, j, k: (i, k)),
                pl.BlockSpec((tk, tn), lambda i, j, k: (k, j)),
                pl.BlockSpec((tk, tn), lambda i, j, k: (k, j)),
            ],
            out_specs=(
                pl.BlockSpec((tm, tn), lambda i, j, k: (i, j)),
                pl.BlockSpec((8, tn), lambda i, j, k: (i, j)),
                pl.BlockSpec((8, tn), lambda i, j, k: (i, j)),
            ),
            scratch_shapes=[
                pltpu.VMEM((tm, tn), jnp.float32),
                pltpu.VMEM((tm, tn), jnp.float32),
            ],
        ),
        compiler_params=pltpu.CompilerParams(
            dimension_semantics=("parallel", "parallel", "arbitrary"),
            vmem_limit_bytes=_VMEM_LIMIT_BYTES,
        ),
        cost_estimate=cost,
    )(x, wg, wu)


# ------------------- Kernel 2: fake-quant + down_proj ---------------------- #
def _quant_down_kernel(t_ref, qp_ref, low_ref, wd_ref, out_ref, acc_ref, tq_ref):
    k = pl.program_id(1)          # K (intermediate) slab index
    j = pl.program_id(2)          # output-column block index (innermost)
    nk = pl.num_programs(1)
    tn = wd_ref.shape[1]

    # Fake-quantize this (row-block, K-slab) tile of t exactly once (at j == 0)
    # and cache it in VMEM; all output-column steps reuse the cached bf16 tile.
    @pl.when(j == 0)
    def _():
        # Packed per-channel quant params for this K slab:
        # rows: [s8, z8, 1/s8, s4, z4, 1/s4, 0, 0]
        qp = qp_ref[...]                              # (8, tk) f32
        s8, z8, r8 = qp[0:1, :], qp[1:2, :], qp[2:3, :]
        s4, z4, r4 = qp[3:4, :], qp[4:5, :], qp[5:6, :]

        low = low_ref[...] > 0.5                      # (tm, 1) per-token int4 flag
        # Select per-(row, channel) params once, then a single quantize path
        # (mul-by-reciprocal + round + clip + dequant).
        scale = jnp.where(low, s4, s8)                # (tm, tk)
        rscale = jnp.where(low, r4, r8)
        zp = jnp.where(low, z4, z8)
        lo = jnp.where(low, -8.0, -128.0)             # (tm, 1)
        hi = jnp.where(low, 7.0, 127.0)

        t = t_ref[...].astype(jnp.float32)            # f32 elementwise quant math
        q = jnp.clip(jnp.round(t * rscale + zp), lo, hi)
        tq_ref[...] = ((q - zp) * scale).astype(tq_ref.dtype)

    col = pl.multiple_of(j * tn, tn)
    partial = jnp.dot(tq_ref[...], wd_ref[...], preferred_element_type=jnp.float32)

    @pl.when(k == 0)
    def _():
        acc_ref[:, pl.ds(col, tn)] = partial

    @pl.when(k > 0)
    def _():
        acc_ref[:, pl.ds(col, tn)] += partial

    @pl.when(k == nk - 1)
    def _():
        out_ref[:, pl.ds(col, tn)] = acc_ref[:, pl.ds(col, tn)].astype(out_ref.dtype)


def quant_down_proj(t, qparams, low_mask, wd, *, tm=256, tn=256, tk=512,
                    out_dtype=jnp.float32):
    M, I = t.shape
    _, H = wd.shape
    tm = _pick_tile(M, tm, 8)
    tn = _pick_tile(H, tn, 128)
    tk = _pick_tile(I, tk, 128)
    gm, gn, gk = M // tm, H // tn, I // tk

    cost = pl.CostEstimate(
        flops=2 * M * H * I + 14 * M * I,
        transcendentals=0,
        bytes_accessed=M * I * t.dtype.itemsize               # t read once
        + gm * I * H * wd.dtype.itemsize                       # Wd re-read per row block
        + M * H * jnp.dtype(out_dtype).itemsize
        + 8 * I * 4 + M * 4,
    )
    return pl.pallas_call(
        _quant_down_kernel,
        out_shape=jax.ShapeDtypeStruct((M, H), out_dtype),
        grid_spec=pltpu.PrefetchScalarGridSpec(
            num_scalar_prefetch=0,
            grid=(gm, gk, gn),                                  # out-cols innermost
            in_specs=[
                pl.BlockSpec((tm, tk), lambda i, k, j: (i, k)),   # t (resident over j)
                pl.BlockSpec((8, tk), lambda i, k, j: (0, k)),    # packed quant params
                pl.BlockSpec((tm, 1), lambda i, k, j: (i, 0)),    # per-token int4 mask
                pl.BlockSpec((tk, tn), lambda i, k, j: (k, j)),   # Wd
            ],
            # Full-H row slab stays resident in VMEM across the whole (k, j)
            # sweep; written back to HBM once per row block.
            out_specs=pl.BlockSpec((tm, H), lambda i, k, j: (i, 0)),
            scratch_shapes=[
                pltpu.VMEM((tm, H), jnp.float32),       # f32 accumulator (row slab)
                pltpu.VMEM((tm, tk), jnp.bfloat16),     # cached fake-quantized t tile
            ],
        ),
        compiler_params=pltpu.CompilerParams(
            dimension_semantics=("parallel", "arbitrary", "arbitrary"),
            vmem_limit_bytes=_VMEM_LIMIT_BYTES,
        ),
        cost_estimate=cost,
    )(t, qparams, low_mask, wd)


# ----------------------------- JAX glue ------------------------------------ #
def _uniform_quant_params(min_val, max_val, qmin, qmax):
    """Uniform quantizer params from per-channel min/max (minmax observer)."""
    scale = (max_val - min_val) / float(qmax - qmin)
    scale = jnp.maximum(scale, 1e-8)
    zp = jnp.clip(qmin - jnp.round(min_val / scale), qmin, qmax)
    return scale.astype(jnp.float32), zp.astype(jnp.float32)


@functools.partial(jax.jit, static_argnames=("B", "S"))
def llama_mlp_forward(x, wg, wu, wd, low_mask_seq, B, S):
    """x: [B, S, H] float32; weights pre-transposed; low_mask_seq: [S] float32."""
    Bh, Sh, H = x.shape
    M = B * S
    # Cast matmul operands to bf16 once here (MXU-friendly); accumulation and
    # elementwise math remain f32 inside the kernels.
    x2 = x.reshape(M, H).astype(jnp.bfloat16)
    wg16 = wg.astype(jnp.bfloat16)
    wu16 = wu.astype(jnp.bfloat16)
    wd16 = wd.astype(jnp.bfloat16)

    # Fused gate/up/SiLU/mul, with fused partial per-channel min/max observer.
    t, tmin_p, tmax_p = fused_gate_up(x2, wg16, wu16)        # t: [M, I] bf16
    min_val = jnp.min(tmin_p, axis=0)                        # [I]
    max_val = jnp.max(tmax_p, axis=0)                        # [I]

    s8, z8 = _uniform_quant_params(min_val, max_val, -128.0, 127.0)  # int8
    s4, z4 = _uniform_quant_params(min_val, max_val, -8.0, 7.0)      # int4
    r8 = 1.0 / s8
    r4 = 1.0 / s4
    zeros = jnp.zeros_like(s8)
    # Pack per-channel params into one (8, I) array -> single DMA descriptor.
    qparams = jnp.stack([s8, z8, r8, s4, z4, r4, zeros, zeros], axis=0)

    low_mask = jnp.broadcast_to(low_mask_seq[None, :], (B, S)).reshape(M, 1)
    low_mask = low_mask.astype(jnp.float32)

    y = quant_down_proj(t, qparams, low_mask, wd16, out_dtype=x.dtype)
    return y.reshape(B, S, wd.shape[1])


def reference_forward(x, wg, wu, wd, low_idx):
    """Pure-JAX f32 reference mirroring the PyTorch forward (tp == 1 path)."""
    B, S, H = x.shape
    t1 = jnp.einsum("bsh,hi->bsi", x, wu)
    t2 = jax.nn.silu(jnp.einsum("bsh,hi->bsi", x, wg))
    t = t2 * t1
    t2d = t.reshape(-1, t.shape[-1])
    s8, z8 = _uniform_quant_params(jnp.min(t2d, 0), jnp.max(t2d, 0), -128.0, 127.0)
    s4, z4 = _uniform_quant_params(jnp.min(t2d, 0), jnp.max(t2d, 0), -8.0, 7.0)
    dq8 = (jnp.clip(jnp.round(t / s8 + z8), -128.0, 127.0) - z8) * s8
    dq4 = (jnp.clip(jnp.round(t / s4 + z4), -8.0, 7.0) - z4) * s4
    tq = dq8
    if low_idx is not None:
        tq = tq.at[:, low_idx, :].set(dq4[:, low_idx, :])
    return jnp.einsum("bsi,ih->bsh", tq, wd)


if __name__ == "__main__":
    B, S, H, I = 2, 64, 256, 512

    key = jax.random.PRNGKey(0)
    kx, kg, ku, kd = jax.random.split(key, 4)
    x = jax.random.normal(kx, (B, S, H), dtype=jnp.float32)
    # Weights stored pre-transposed: gate/up [H, I], down [I, H].
    wg = 0.02 * jax.random.normal(kg, (H, I), dtype=jnp.float32)
    wu = 0.02 * jax.random.normal(ku, (H, I), dtype=jnp.float32)
    wd = 0.02 * jax.random.normal(kd, (I, H), dtype=jnp.float32)

    # Sequence positions re-quantized with int4 (new_lower_bit_idx_current).
    new_lower_bit_idx = jnp.array([1, 5, 17, 42], dtype=jnp.int32)
    low_mask_seq = jnp.zeros((S,), dtype=jnp.float32).at[new_lower_bit_idx].set(1.0)

    out = llama_mlp_forward(x, wg, wu, wd, low_mask_seq, B, S)
    out = jax.block_until_ready(out)

    ref = reference_forward(x, wg, wu, wd, new_lower_bit_idx)
    max_err = float(jnp.max(jnp.abs(out - ref)))
    assert out.shape == (B, S, H), out.shape
    # bf16 matmul operands + bf16 intermediate introduce error far below the
    # int8 fake-quant step; 1e-1 tolerance matches the original check.
    assert max_err < 1e-1, f"mismatch vs reference: max_err={max_err}"

    print("KERNEL_OK")
</pallas_src>

<mosaic_0001>
module attributes {stable_mosaic.version = 11 : i64} {
  func.func @_gate_up_kernel(%arg0: i32, %arg1: i32, %arg2: i32, %arg3: memref<128x256xbf16, #tpu.memory_space<vmem>>, %arg4: memref<256x256xbf16, #tpu.memory_space<vmem>>, %arg5: memref<256x256xbf16, #tpu.memory_space<vmem>>, %arg6: memref<128x256xbf16, #tpu.memory_space<vmem>>, %arg7: memref<8x256xf32, #tpu.memory_space<vmem>>, %arg8: memref<8x256xf32, #tpu.memory_space<vmem>>, %arg9: memref<128x256xf32, #tpu.memory_space<vmem>>, %arg10: memref<128x256xf32, #tpu.memory_space<vmem>>) attributes {dimension_semantics = [#tpu.dimension_semantics<parallel>, #tpu.dimension_semantics<parallel>, #tpu.dimension_semantics<arbitrary>], iteration_bounds = array<i64: 1, 2, 1>, scalar_prefetch = 0 : i64, scratch_operands = 2 : i64, tpu.core_type = #tpu.core_type<tc>, window_params = [{transform_indices = @transform_0, window_bounds = array<i64: 128, 256>}, {transform_indices = @transform_1, window_bounds = array<i64: 256, 256>}, {transform_indices = @transform_2, window_bounds = array<i64: 256, 256>}, {transform_indices = @transform_3, window_bounds = array<i64: 128, 256>}, {transform_indices = @transform_4, window_bounds = array<i64: 8, 256>}, {transform_indices = @transform_5, window_bounds = array<i64: 8, 256>}]} {
    %c0_i32 = arith.constant 0 : i32
    %0 = arith.cmpi eq, %arg2, %c0_i32 : i32
    %1 = arith.extui %0 : i1 to i32
    %c0_i32_0 = arith.constant 0 : i32
    %2 = arith.cmpi ne, %1, %c0_i32_0 : i32
    scf.if %2 {
      %cst_17 = arith.constant 0.000000e+00 : f32
      %17 = vector.broadcast %cst_17 : f32 to vector<128x256xf32>
      %c0_18 = arith.constant 0 : index
      %c0_19 = arith.constant 0 : index
      %18 = vector.load %arg9[%c0_18, %c0_19] : memref<128x256xf32, #tpu.memory_space<vmem>>, vector<128x256xf32>
      tpu.vector_store %arg9[%c0_18, %c0_19], %17 {strides = array<i32>} : memref<128x256xf32, #tpu.memory_space<vmem>>, vector<128x256xf32>,
      %cst_20 = arith.constant 0.000000e+00 : f32
      %19 = vector.broadcast %cst_20 : f32 to vector<128x256xf32>
      %c0_21 = arith.constant 0 : index
      %c0_22 = arith.constant 0 : index
      %20 = vector.load %arg10[%c0_21, %c0_22] : memref<128x256xf32, #tpu.memory_space<vmem>>, vector<128x256xf32>
      tpu.vector_store %arg10[%c0_21, %c0_22], %19 {strides = array<i32>} : memref<128x256xf32, #tpu.memory_space<vmem>>, vector<128x256xf32>,
    } else {
    }
    %c0 = arith.constant 0 : index
    %c0_1 = arith.constant 0 : index
    %3 = vector.load %arg3[%c0, %c0_1] : memref<128x256xbf16, #tpu.memory_space<vmem>>, vector<128x256xbf16>
    %c0_2 = arith.constant 0 : index
    %c0_3 = arith.constant 0 : index
    %4 = vector.load %arg9[%c0_2, %c0_3] : memref<128x256xf32, #tpu.memory_space<vmem>>, vector<128x256xf32>
    %c0_4 = arith.constant 0 : index
    %c0_5 = arith.constant 0 : index
    %5 = vector.load %arg4[%c0_4, %c0_5] : memref<256x256xbf16, #tpu.memory_space<vmem>>, vector<256x256xbf16>
    %cst = arith.constant dense<0.000000e+00> : vector<128x256xf32>
    %6 = tpu.matmul %3, %5, %cst {dimension_numbers = #tpu.dot_dimension_numbers<[1], [0], [0], [1], [0, 0, 1, 1], [], []>} : vector<128x256xbf16>, vector<256x256xbf16>, vector<128x256xf32> -> vector<128x256xf32>
    %7 = arith.addf %4, %6 : vector<128x256xf32>
    %c0_6 = arith.constant 0 : index
    %c0_7 = arith.constant 0 : index
    %8 = vector.load %arg9[%c0_6, %c0_7] : memref<128x256xf32, #tpu.memory_space<vmem>>, vector<128x256xf32>
    tpu.vector_store %arg9[%c0_6, %c0_7], %7 {strides = array<i32>} : memref<128x256xf32, #tpu.memory_space<vmem>>, vector<128x256xf32>,
    %c0_8 = arith.constant 0 : index
    %c0_9 = arith.constant 0 : index
    %9 = vector.load %arg10[%c0_8, %c0_9] : memref<128x256xf32, #tpu.memory_space<vmem>>, vector<128x256xf32>
    %c0_10 = arith.constant 0 : index
    %c0_11 = arith.constant 0 : index
    %10 = vector.load %arg5[%c0_10, %c0_11] : memref<256x256xbf16, #tpu.memory_space<vmem>>, vector<256x256xbf16>
    %cst_12 = arith.constant dense<0.000000e+00> : vector<128x256xf32>
    %11 = tpu.matmul %3, %10, %cst_12 {dimension_numbers = #tpu.dot_dimension_numbers<[1], [0], [0], [1], [0, 0, 1, 1], [], []>} : vector<128x256xbf16>, vector<256x256xbf16>, vector<128x256xf32> -> vector<128x256xf32>
    %12 = arith.addf %9, %11 : vector<128x256xf32>
    %c0_13 = arith.constant 0 : index
    %c0_14 = arith.constant 0 : index
    %13 = vector.load %arg10[%c0_13, %c0_14] : memref<128x256xf32, #tpu.memory_space<vmem>>, vector<128x256xf32>
    tpu.vector_store %arg10[%c0_13, %c0_14], %12 {strides = array<i32>} : memref<128x256xf32, #tpu.memory_space<vmem>>, vector<128x256xf32>,
    %c0_i32_15 = arith.constant 0 : i32
    %14 = arith.cmpi eq, %arg2, %c0_i32_15 : i32
    %15 = arith.extui %14 : i1 to i32
    %c0_i32_16 = arith.constant 0 : i32
    %16 = arith.cmpi ne, %15, %c0_i32_16 : i32
    scf.if %16 {
      %c0_17 = arith.constant 0 : index
      %c0_18 = arith.constant 0 : index
      %17 = vector.load %arg9[%c0_17, %c0_18] : memref<128x256xf32, #tpu.memory_space<vmem>>, vector<128x256xf32>
      %18 = arith.negf %17 : vector<128x256xf32>
      %19 = math.exp %18 : vector<128x256xf32>
      %cst_19 = arith.constant 1.000000e+00 : f32
      %20 = vector.broadcast %cst_19 : f32 to vector<128x256xf32>
      %21 = arith.addf %20, %19 : vector<128x256xf32>
      %22 = arith.divf %20, %21 : vector<128x256xf32>
      %23 = arith.mulf %17, %22 : vector<128x256xf32>
      %c0_20 = arith.constant 0 : index
      %c0_21 = arith.constant 0 : index
      %24 = vector.load %arg10[%c0_20, %c0_21] : memref<128x256xf32, #tpu.memory_space<vmem>>, vector<128x256xf32>
      %25 = arith.mulf %23, %24 : vector<128x256xf32>
      %26 = arith.truncf %25 : vector<128x256xf32> to vector<128x256xbf16>
      %c0_22 = arith.constant 0 : index
      %c0_23 = arith.constant 0 : index
      %27 = vector.load %arg6[%c0_22, %c0_23] : memref<128x256xbf16, #tpu.memory_space<vmem>>, vector<128x256xbf16>
      tpu.vector_store %arg6[%c0_22, %c0_23], %26 {strides = array<i32>} : memref<128x256xbf16, #tpu.memory_space<vmem>>, vector<128x256xbf16>,
      %28 = vector.shape_cast %25 : vector<128x256xf32> to vector<16x8x256xf32>
      %cst_24 = arith.constant dense<0x7F800000> : vector<8x256xf32>
      %29 = vector.multi_reduction <minimumf>, %28, %cst_24 [0] : vector<16x8x256xf32> to vector<8x256xf32>
      %c0_25 = arith.constant 0 : index
      %c0_26 = arith.constant 0 : index
      %30 = vector.load %arg7[%c0_25, %c0_26] : memref<8x256xf32, #tpu.memory_space<vmem>>, vector<8x256xf32>
      tpu.vector_store %arg7[%c0_25, %c0_26], %29 {strides = array<i32>} : memref<8x256xf32, #tpu.memory_space<vmem>>, vector<8x256xf32>,
      %cst_27 = arith.constant dense<0xFF800000> : vector<8x256xf32>
      %31 = vector.multi_reduction <maximumf>, %28, %cst_27 [0] : vector<16x8x256xf32> to vector<8x256xf32>
      %c0_28 = arith.constant 0 : index
      %c0_29 = arith.constant 0 : index
      %32 = vector.load %arg8[%c0_28, %c0_29] : memref<8x256xf32, #tpu.memory_space<vmem>>, vector<8x256xf32>
      tpu.vector_store %arg8[%c0_28, %c0_29], %31 {strides = array<i32>} : memref<8x256xf32, #tpu.memory_space<vmem>>, vector<8x256xf32>,
    } else {
    }
    return
  }
  func.func @transform_0(%arg0: i32, %arg1: i32, %arg2: i32) -> (i32, i32) {
    %c0_i32 = arith.constant 0 : i32
    return %arg0, %arg2 : i32, i32
  }
  func.func @transform_1(%arg0: i32, %arg1: i32, %arg2: i32) -> (i32, i32) {
    %c0_i32 = arith.constant 0 : i32
    return %arg2, %arg1 : i32, i32
  }
  func.func @transform_2(%arg0: i32, %arg1: i32, %arg2: i32) -> (i32, i32) {
    %c0_i32 = arith.constant 0 : i32
    return %arg2, %arg1 : i32, i32
  }
  func.func @transform_3(%arg0: i32, %arg1: i32, %arg2: i32) -> (i32, i32) {
    %c0_i32 = arith.constant 0 : i32
    return %arg0, %arg1 : i32, i32
  }
  func.func @transform_4(%arg0: i32, %arg1: i32, %arg2: i32) -> (i32, i32) {
    %c0_i32 = arith.constant 0 : i32
    return %arg0, %arg1 : i32, i32
  }
  func.func @transform_5(%arg0: i32, %arg1: i32, %arg2: i32) -> (i32, i32) {
    %c0_i32 = arith.constant 0 : i32
    return %arg0, %arg1 : i32, i32
  }
}

module attributes {stable_mosaic.version = 11 : i64} {
  func.func @_quant_down_kernel(%arg0: i32, %arg1: i32, %arg2: i32, %arg3: memref<128x512xbf16, #tpu.memory_space<vmem>>, %arg4: memref<8x512xf32, #tpu.memory_space<vmem>>, %arg5: memref<128x1xf32, #tpu.memory_space<vmem>>, %arg6: memref<512x256xbf16, #tpu.memory_space<vmem>>, %arg7: memref<128x256xf32, #tpu.memory_space<vmem>>, %arg8: memref<128x256xf32, #tpu.memory_space<vmem>>, %arg9: memref<128x512xbf16, #tpu.memory_space<vmem>>) attributes {dimension_semantics = [#tpu.dimension_semantics<parallel>, #tpu.dimension_semantics<arbitrary>, #tpu.dimension_semantics<arbitrary>], iteration_bounds = array<i64: 1, 1, 1>, scalar_prefetch = 0 : i64, scratch_operands = 2 : i64, tpu.core_type = #tpu.core_type<tc>, window_params = [{transform_indices = @transform_0, window_bounds = array<i64: 128, 512>}, {transform_indices = @transform_1, window_bounds = array<i64: 8, 512>}, {transform_indices = @transform_2, window_bounds = array<i64: 128, 1>}, {transform_indices = @transform_3, window_bounds = array<i64: 512, 256>}, {transform_indices = @transform_4, window_bounds = array<i64: 128, 256>}]} {
    %c0_i32 = arith.constant 0 : i32
    %0 = arith.cmpi eq, %arg2, %c0_i32 : i32
    %1 = arith.extui %0 : i1 to i32
    %c0_i32_0 = arith.constant 0 : i32
    %2 = arith.cmpi ne, %1, %c0_i32_0 : i32
    scf.if %2 {
      %c0_10 = arith.constant 0 : index
      %c0_11 = arith.constant 0 : index
      %17 = vector.load %arg4[%c0_10, %c0_11] : memref<8x512xf32, #tpu.memory_space<vmem>>, vector<8x512xf32>
      %18 = vector.extract_strided_slice %17 {offsets = [0, 0], sizes = [1, 512], strides = [1, 1]} : vector<8x512xf32> to vector<1x512xf32>
      %19 = vector.extract_strided_slice %17 {offsets = [1, 0], sizes = [1, 512], strides = [1, 1]} : vector<8x512xf32> to vector<1x512xf32>
      %20 = vector.extract_strided_slice %17 {offsets = [2, 0], sizes = [1, 512], strides = [1, 1]} : vector<8x512xf32> to vector<1x512xf32>
      %21 = vector.extract_strided_slice %17 {offsets = [3, 0], sizes = [1, 512], strides = [1, 1]} : vector<8x512xf32> to vector<1x512xf32>
      %22 = vector.extract_strided_slice %17 {offsets = [4, 0], sizes = [1, 512], strides = [1, 1]} : vector<8x512xf32> to vector<1x512xf32>
      %23 = vector.extract_strided_slice %17 {offsets = [5, 0], sizes = [1, 512], strides = [1, 1]} : vector<8x512xf32> to vector<1x512xf32>
      %c0_12 = arith.constant 0 : index
      %c0_13 = arith.constant 0 : index
      %24 = vector.load %arg5[%c0_12, %c0_13] : memref<128x1xf32, #tpu.memory_space<vmem>>, vector<128x1xf32>
      %cst_14 = arith.constant 5.000000e-01 : f32
      %25 = vector.broadcast %cst_14 : f32 to vector<128x1xf32>
      %26 = arith.cmpf ogt, %24, %25 : vector<128x1xf32>
      %27 = vector.shape_cast %26 : vector<128x1xi1> to vector<128x1xi1>
      %28 = vector.broadcast %27 : vector<128x1xi1> to vector<128x512xi1>
      %29 = vector.shape_cast %21 : vector<1x512xf32> to vector<1x512xf32>
      %30 = vector.broadcast %29 : vector<1x512xf32> to vector<128x512xf32>
      %31 = vector.shape_cast %18 : vector<1x512xf32> to vector<1x512xf32>
      %32 = vector.broadcast %31 : vector<1x512xf32> to vector<128x512xf32>
      %33 = arith.select %28, %30, %32 : vector<128x512xi1>, vector<128x512xf32>
      %34 = vector.shape_cast %26 : vector<128x1xi1> to vector<128x1xi1>
      %35 = vector.broadcast %34 : vector<128x1xi1> to vector<128x512xi1>
      %36 = vector.shape_cast %23 : vector<1x512xf32> to vector<1x512xf32>
      %37 = vector.broadcast %36 : vector<1x512xf32> to vector<128x512xf32>
      %38 = vector.shape_cast %20 : vector<1x512xf32> to vector<1x512xf32>
      %39 = vector.broadcast %38 : vector<1x512xf32> to vector<128x512xf32>
      %40 = arith.select %35, %37, %39 : vector<128x512xi1>, vector<128x512xf32>
      %41 = vector.shape_cast %26 : vector<128x1xi1> to vector<128x1xi1>
      %42 = vector.broadcast %41 : vector<128x1xi1> to vector<128x512xi1>
      %43 = vector.shape_cast %22 : vector<1x512xf32> to vector<1x512xf32>
      %44 = vector.broadcast %43 : vector<1x512xf32> to vector<128x512xf32>
      %45 = vector.shape_cast %19 : vector<1x512xf32> to vector<1x512xf32>
      %46 = vector.broadcast %45 : vector<1x512xf32> to vector<128x512xf32>
      %47 = arith.select %42, %44, %46 : vector<128x512xi1>, vector<128x512xf32>
      %cst_15 = arith.constant -8.000000e+00 : f32
      %cst_16 = arith.constant -1.280000e+02 : f32
      %48 = vector.broadcast %cst_15 : f32 to vector<128x1xf32>
      %49 = vector.broadcast %cst_16 : f32 to vector<128x1xf32>
      %50 = arith.select %26, %48, %49 : vector<128x1xi1>, vector<128x1xf32>
      %cst_17 = arith.constant 7.000000e+00 : f32
      %cst_18 = arith.constant 1.270000e+02 : f32
      %51 = vector.broadcast %cst_17 : f32 to vector<128x1xf32>
      %52 = vector.broadcast %cst_18 : f32 to vector<128x1xf32>
      %53 = arith.select %26, %51, %52 : vector<128x1xi1>, vector<128x1xf32>
      %c0_19 = arith.constant 0 : index
      %c0_20 = arith.constant 0 : index
      %54 = vector.load %arg3[%c0_19, %c0_20] : memref<128x512xbf16, #tpu.memory_space<vmem>>, vector<128x512xbf16>
      %55 = arith.extf %54 : vector<128x512xbf16> to vector<128x512xf32>
      %56 = arith.mulf %55, %40 : vector<128x512xf32>
      %57 = arith.addf %56, %47 : vector<128x512xf32>
      %58 = math.roundeven %57 : vector<128x512xf32>
      %59 = vector.broadcast %50 : vector<128x1xf32> to vector<128x512xf32>
      %60 = arith.maximumf %59, %58 : vector<128x512xf32>
      %61 = vector.broadcast %53 : vector<128x1xf32> to vector<128x512xf32>
      %62 = arith.minimumf %61, %60 : vector<128x512xf32>
      %63 = arith.subf %62, %47 : vector<128x512xf32>
      %64 = arith.mulf %63, %33 : vector<128x512xf32>
      %65 = arith.truncf %64 : vector<128x512xf32> to vector<128x512xbf16>
      %c0_21 = arith.constant 0 : index
      %c0_22 = arith.constant 0 : index
      %66 = vector.load %arg9[%c0_21, %c0_22] : memref<128x512xbf16, #tpu.memory_space<vmem>>, vector<128x512xbf16>
      tpu.vector_store %arg9[%c0_21, %c0_22], %65 {strides = array<i32>} : memref<128x512xbf16, #tpu.memory_space<vmem>>, vector<128x512xbf16>,
    } else {
    }
    %c256_i32 = arith.constant 256 : i32
    %3 = arith.muli %arg2, %c256_i32 : i32
    %4 = tpu.assume_multiple %3, 256 : i32
    %c0 = arith.constant 0 : index
    %c0_1 = arith.constant 0 : index
    %5 = vector.load %arg9[%c0, %c0_1] : memref<128x512xbf16, #tpu.memory_space<vmem>>, vector<128x512xbf16>
    %c0_2 = arith.constant 0 : index
    %c0_3 = arith.constant 0 : index
    %6 = vector.load %arg6[%c0_2, %c0_3] : memref<512x256xbf16, #tpu.memory_space<vmem>>, vector<512x256xbf16>
    %cst = arith.constant dense<0.000000e+00> : vector<128x256xf32>
    %7 = tpu.matmul %5, %6, %cst {dimension_numbers = #tpu.dot_dimension_numbers<[1], [0], [0], [1], [0, 0, 1, 1], [], []>} : vector<128x512xbf16>, vector<512x256xbf16>, vector<128x256xf32> -> vector<128x256xf32>
    %c0_i32_4 = arith.constant 0 : i32
    %8 = arith.cmpi eq, %arg1, %c0_i32_4 : i32
    %9 = arith.extui %8 : i1 to i32
    %c0_i32_5 = arith.constant 0 : i32
    %10 = arith.cmpi ne, %9, %c0_i32_5 : i32
    scf.if %10 {
      %c0_10 = arith.constant 0 : index
      %17 = arith.index_cast %4 : i32 to index
      %18 = vector.load %arg8[%c0_10, %17] : memref<128x256xf32, #tpu.memory_space<vmem>>, vector<128x256xf32>
      tpu.vector_store %arg8[%c0_10, %17], %7 {strides = array<i32>} : memref<128x256xf32, #tpu.memory_space<vmem>>, vector<128x256xf32>,
    } else {
    }
    %c0_i32_6 = arith.constant 0 : i32
    %11 = arith.cmpi sgt, %arg1, %c0_i32_6 : i32
    %12 = arith.extui %11 : i1 to i32
    %c0_i32_7 = arith.constant 0 : i32
    %13 = arith.cmpi ne, %12, %c0_i32_7 : i32
    scf.if %13 {
      %c0_10 = arith.constant 0 : index
      %17 = arith.index_cast %4 : i32 to index
      %18 = vector.load %arg8[%c0_10, %17] : memref<128x256xf32, #tpu.memory_space<vmem>>, vector<128x256xf32>
      %19 = arith.addf %18, %7 : vector<128x256xf32>
      %c0_11 = arith.constant 0 : index
      %20 = arith.index_cast %4 : i32 to index
      %21 = vector.load %arg8[%c0_11, %20] : memref<128x256xf32, #tpu.memory_space<vmem>>, vector<128x256xf32>
      tpu.vector_store %arg8[%c0_11, %20], %19 {strides = array<i32>} : memref<128x256xf32, #tpu.memory_space<vmem>>, vector<128x256xf32>,
    } else {
    }
    %c0_i32_8 = arith.constant 0 : i32
    %14 = arith.cmpi eq, %arg1, %c0_i32_8 : i32
    %15 = arith.extui %14 : i1 to i32
    %c0_i32_9 = arith.constant 0 : i32
    %16 = arith.cmpi ne, %15, %c0_i32_9 : i32
    scf.if %16 {
      %c0_10 = arith.constant 0 : index
      %17 = arith.index_cast %4 : i32 to index
      %18 = vector.load %arg8[%c0_10, %17] : memref<128x256xf32, #tpu.memory_space<vmem>>, vector<128x256xf32>
      %c0_11 = arith.constant 0 : index
      %19 = arith.index_cast %4 : i32 to index
      %20 = vector.load %arg7[%c0_11, %19] : memref<128x256xf32, #tpu.memory_space<vmem>>, vector<128x256xf32>
      tpu.vector_store %arg7[%c0_11, %19], %18 {strides = array<i32>} : memref<128x256xf32, #tpu.memory_space<vmem>>, vector<128x256xf32>,
    } else {
    }
    return
  }
  func.func @transform_0(%arg0: i32, %arg1: i32, %arg2: i32) -> (i32, i32) {
    %c0_i32 = arith.constant 0 : i32
    return %arg0, %arg1 : i32, i32
  }
  func.func @transform_1(%arg0: i32, %arg1: i32, %arg2: i32) -> (i32, i32) {
    %c0_i32 = arith.constant 0 : i32
    %c0_i32_0 = arith.constant 0 : i32
    return %c0_i32, %arg1 : i32, i32
  }
  func.func @transform_2(%arg0: i32, %arg1: i32, %arg2: i32) -> (i32, i32) {
    %c0_i32 = arith.constant 0 : i32
    %c0_i32_0 = arith.constant 0 : i32
    return %arg0, %c0_i32 : i32, i32
  }
  func.func @transform_3(%arg0: i32, %arg1: i32, %arg2: i32) -> (i32, i32) {
    %c0_i32 = arith.constant 0 : i32
    return %arg1, %arg2 : i32, i32
  }
  func.func @transform_4(%arg0: i32, %arg1: i32, %arg2: i32) -> (i32, i32) {
    %c0_i32 = arith.constant 0 : i32
    %c0_i32_0 = arith.constant 0 : i32
    return %arg0, %c0_i32 : i32, i32
  }
}

</mosaic_0001>

<llo_original>
// kernel: llama_mlp_forward.2
$region0: #{llama_mlp_forward.2}
  #allocation0 [shape = 'u32[]', space=smem, size = 0x4, offset = 0x4, fixed_abs, tag = 'smem constant byte address 0x4 - core index']
  #allocation1 [shape = 'u32[144,128]{1,0:T(1,128)}', space=vmem, size = 0x12000, scoped, tag = 'internal scratch']
  #allocation2 [shape = 'f32[128,256]{1,0:T(8,128)}', space=vmem, size = 0x20000, scoped, tag = 'scratch operand']
  #allocation3 [shape = 'f32[128,256]{1,0:T(8,128)}', space=vmem, size = 0x20000, scoped, tag = 'scratch operand']
  %s0 = inlined_call_operand.vmem [shape: bf16[128,256], index: 0, kind: input, shape index: {}]
  %s1 = inlined_call_operand.vmem [shape: bf16[256,512], index: 1, kind: input, shape index: {}]
  %s2 = inlined_call_operand.vmem [shape: bf16[256,512], index: 2, kind: input, shape index: {}]
  %s3 = inlined_call_operand.vmem [shape: bf16[128,512], index: 3, kind: output, shape index: {0}]
  %s4 = inlined_call_operand.vmem [shape: f32[8,512], index: 4, kind: output, shape index: {1}]
  %s5 = inlined_call_operand.vmem [shape: f32[8,512], index: 5, kind: output, shape index: {2}]
  %6 = xla_tuple %s3, %s4, %s5
  %s7 = sld [smem:[#allocation0]]
  $region179: #{llama_mlp_forward.2} parent=0
    _
  %s9 = ssub.s32 1, %s7
  %s10 = scalar_select 0, %s9, %s7
  $region1: #{llama_mlp_forward.2} parent=0
    #allocation4 [shape = 'u8[262144]{0}', space=vmem, size = 0x40000, scoped, tag = 'input window, operand 1']
    #allocation5 [shape = 'u8[262144]{0}', space=vmem, size = 0x40000, scoped, tag = 'input window, operand 2']
    #allocation6 [shape = 'u8[131072]{0}', space=vmem, size = 0x20000, scoped, tag = 'output window, operand 0']
    loop: start=0, step=1, limit=4
    $region2: #{llama_mlp_forward.2} parent=1 // loop_pre_header
      _
    $region3: #{llama_mlp_forward.2} parent=1 // loop_header
      %s12 = sphi 0, %s16
      %p13 = scmp.ge.s32.totalorder %s12, 4
      %s19 = sphi 0, %s38
      %s20 = sphi 0, %s34
      %s21 = sphi 0, %s30
      %s22 = sphi 0, %s19
      %s23 = sphi 0, %s20
      %s24 = sphi 0, %s21
      %s25 = sphi 0, %s22
      %s26 = sphi 0, %s23
      %s27 = sphi 0, %s24
      %s43 = sphi 0, %s45
      %s46 = sphi 0, %s43
      %s47 = sphi 0, %s46
      %s63 = sphi 0, %s47
      %s71 = sphi 0, %s73
      %s74 = sphi 0, %s71
      %s75 = sphi 0, %s74
      %s91 = sphi 0, %s75
      %s99 = sphi 0, %s101
      %s102 = sphi 0, %s99
      %s103 = sphi 0, %s102
      %s119 = sphi 0, %s103
      %s127 = sphi 0, %s129
      %s130 = sphi 0, %s127
      %s131 = sphi 0, %s130
      %s147 = sphi 0, %s131
      %s155 = sphi 0, %s157
      %s158 = sphi 0, %s155
      %s159 = sphi 0, %s158
      %s175 = sphi 0, %s159
      %s183 = sphi 0, %s185
      %s186 = sphi 0, %s183
      %s187 = sphi 0, %s186
      %s203 = sphi 0, %s187
    $region4: #{llama_mlp_forward.2} parent=1 // loop_header_branch
      %15 = sbr.rel (%p13) target = $region8
    $region5: #{llama_mlp_forward.2} parent=1 // loop_body
      %s17 = ssub.s32 %s12, 1
      %s18 = ssub.s32 %s12, 2
      %s28 = sadd.s32 1, %s21
      %p29 = scmp.ge.s32.totalorder %s28, 1
      %s30 = scalar_select %p29, 0, %s28
      %s31 = sadd.s32 1, %s20
      %s32 = scalar_select %p29, %s31, %s20
      %p33 = scmp.ge.s32.totalorder %s32, 2
      %s34 = scalar_select %p33, 0, %s32
      %s35 = sadd.s32 1, %s19
      %s36 = scalar_select %p33, %s35, %s19
      %p37 = scmp.ge.s32.totalorder %s36, 1
      %s38 = scalar_select %p37, 0, %s36
      %s39 = ssub.s32 %s19, %s38
      %s40 = ssub.s32 %s21, %s30
      %s41 = sor.u32 %s39, %s40
      %p42 = scmp.eq.s32.totalorder %s41, 0
      %s44 = sadd.s32 %s43, 1
      %s45 = scalar_select %p42, %s43, %s44
      %p48 = pneg %p42
      %p49 = scmp.eq.s32.totalorder %s12, 1
      %p50 = por %p48, %p49
      %p51 = scmp.ne.s32.totalorder %s43, %s46
      %p52 = scmp.eq.s32.totalorder %s12, 0
      %p53 = por %p51, %p52
      %p54 = scmp.ne.s32.totalorder %s43, %s46
      %p55 = scmp.eq.s32.totalorder %s17, 1
      %p56 = por %p54, %p55
      %p57 = scmp.ne.s32.totalorder %s46, %s47
      %p58 = scmp.eq.s32.totalorder %s17, 0
      %p59 = por %p57, %p58
      %p60 = scmp.ne.s32.totalorder %s46, %s47
      %p61 = scmp.eq.s32.totalorder %s18, 1
      %p62 = por %p60, %p61
      %p64 = scmp.ne.s32.totalorder %s47, %s63
      %p65 = scmp.eq.s32.totalorder %s18, 0
      %p66 = por %p64, %p65
      %s67 = ssub.s32 %s21, %s30
      %s68 = ssub.s32 %s20, %s34
      %s69 = sor.u32 %s67, %s68
      %p70 = scmp.eq.s32.totalorder %s69, 0
      %s72 = sadd.s32 %s71, 1
      %s73 = scalar_select %p70, %s71, %s72
      %p76 = pneg %p70
      %p77 = scmp.eq.s32.totalorder %s12, 1
      %p78 = por %p76, %p77
      %p79 = scmp.ne.s32.totalorder %s71, %s74
      %p80 = scmp.eq.s32.totalorder %s12, 0
      %p81 = por %p79, %p80
      %p82 = scmp.ne.s32.totalorder %s71, %s74
      %p83 = scmp.eq.s32.totalorder %s17, 1
      %p84 = por %p82, %p83
      %p85 = scmp.ne.s32.totalorder %s74, %s75
      %p86 = scmp.eq.s32.totalorder %s17, 0
      %p87 = por %p85, %p86
      %p88 = scmp.ne.s32.totalorder %s74, %s75
      %p89 = scmp.eq.s32.totalorder %s18, 1
      %p90 = por %p88, %p89
      %p92 = scmp.ne.s32.totalorder %s75, %s91
      %p93 = scmp.eq.s32.totalorder %s18, 0
      %p94 = por %p92, %p93
      %s95 = ssub.s32 %s21, %s30
      %s96 = ssub.s32 %s20, %s34
      %s97 = sor.u32 %s95, %s96
      %p98 = scmp.eq.s32.totalorder %s97, 0
      %s100 = sadd.s32 %s99, 1
      %s101 = scalar_select %p98, %s99, %s100
      %p104 = pneg %p98
      %p105 = scmp.eq.s32.totalorder %s12, 1
      %p106 = por %p104, %p105
      %p107 = scmp.ne.s32.totalorder %s99, %s102
      %p108 = scmp.eq.s32.totalorder %s12, 0
      %p109 = por %p107, %p108
      %p110 = scmp.ne.s32.totalorder %s99, %s102
      %p111 = scmp.eq.s32.totalorder %s17, 1
      %p112 = por %p110, %p111
      %p113 = scmp.ne.s32.totalorder %s102, %s103
      %p114 = scmp.eq.s32.totalorder %s17, 0
      %p115 = por %p113, %p114
      %p116 = scmp.ne.s32.totalorder %s102, %s103
      %p117 = scmp.eq.s32.totalorder %s18, 1
      %p118 = por %p116, %p117
      %p120 = scmp.ne.s32.totalorder %s103, %s119
      %p121 = scmp.eq.s32.totalorder %s18, 0
      %p122 = por %p120, %p121
      %s123 = ssub.s32 %s19, %s38
      %s124 = ssub.s32 %s20, %s34
      %s125 = sor.u32 %s123, %s124
      %p126 = scmp.eq.s32.totalorder %s125, 0
      %s128 = sadd.s32 %s127, 1
      %s129 = scalar_select %p126, %s127, %s128
      %p132 = pneg %p126
      %p133 = scmp.eq.s32.totalorder %s12, 1
      %p134 = por %p132, %p133
      %p135 = scmp.ne.s32.totalorder %s127, %s130
      %p136 = scmp.eq.s32.totalorder %s12, 0
      %p137 = por %p135, %p136
      %p138 = scmp.ne.s32.totalorder %s127, %s130
      %p139 = scmp.eq.s32.totalorder %s17, 1
      %p140 = por %p138, %p139
      %p141 = scmp.ne.s32.totalorder %s130, %s131
      %p142 = scmp.eq.s32.totalorder %s17, 0
      %p143 = por %p141, %p142
      %p144 = scmp.ne.s32.totalorder %s130, %s131
      %p145 = scmp.eq.s32.totalorder %s18, 1
      %p146 = por %p144, %p145
      %p148 = scmp.ne.s32.totalorder %s131, %s147
      %p149 = scmp.eq.s32.totalorder %s18, 0
      %p150 = por %p148, %p149
      %s151 = ssub.s32 %s19, %s38
      %s152 = ssub.s32 %s20, %s34
      %s153 = sor.u32 %s151, %s152
      %p154 = scmp.eq.s32.totalorder %s153, 0
      %s156 = sadd.s32 %s155, 1
      %s157 = scalar_select %p154, %s155, %s156
      %p160 = pneg %p154
      %p161 = scmp.eq.s32.totalorder %s12, 1
      %p162 = por %p160, %p161
      %p163 = scmp.ne.s32.totalorder %s155, %s158
      %p164 = scmp.eq.s32.totalorder %s12, 0
      %p165 = por %p163, %p164
      %p166 = scmp.ne.s32.totalorder %s155, %s158
      %p167 = scmp.eq.s32.totalorder %s17, 1
      %p168 = por %p166, %p167
      %p169 = scmp.ne.s32.totalorder %s158, %s159
      %p170 = scmp.eq.s32.totalorder %s17, 0
      %p171 = por %p169, %p170
      %p172 = scmp.ne.s32.totalorder %s158, %s159
      %p173 = scmp.eq.s32.totalorder %s18, 1
      %p174 = por %p172, %p173
      %p176 = scmp.ne.s32.totalorder %s159, %s175
      %p177 = scmp.eq.s32.totalorder %s18, 0
      %p178 = por %p176, %p177
      %s179 = ssub.s32 %s19, %s38
      %s180 = ssub.s32 %s20, %s34
      %s181 = sor.u32 %s179, %s180
      %p182 = scmp.eq.s32.totalorder %s181, 0
      %s184 = sadd.s32 %s183, 1
      %s185 = scalar_select %p182, %s183, %s184
      %p188 = pneg %p182
      %p189 = scmp.eq.s32.totalorder %s12, 1
      %p190 = por %p188, %p189
      %p191 = scmp.ne.s32.totalorder %s183, %s186
      %p192 = scmp.eq.s32.totalorder %s12, 0
      %p193 = por %p191, %p192
      %p194 = scmp.ne.s32.totalorder %s183, %s186
      %p195 = scmp.eq.s32.totalorder %s17, 1
      %p196 = por %p194, %p195
      %p197 = scmp.ne.s32.totalorder %s186, %s187
      %p198 = scmp.eq.s32.totalorder %s17, 0
      %p199 = por %p197, %p198
      %p200 = scmp.ne.s32.totalorder %s186, %s187
      %p201 = scmp.eq.s32.totalorder %s18, 1
      %p202 = por %p200, %p201
      %p204 = scmp.ne.s32.totalorder %s187, %s203
      %p205 = scmp.eq.s32.totalorder %s18, 0
      %p206 = por %p204, %p205
      %p207 = scmp.le.s32.totalorder 1, %s12
      %p208 = scmp.lt.s32.totalorder %s12, 3
      %p209 = pnand %p207, %p208
      %p210 = pneg %p209
      // Predicated region
      $region9: #{llama_mlp_forward.2} parent=5 // pred_check
        _
      $region10: #{llama_mlp_forward.2} parent=5 // pred_check_branch
        %212 = sbr.rel (%p209) target = $region12
      $region11: #{llama_mlp_forward.2} parent=5 // pred_region
        %s213 = ssub.s32 %s12, 1
        // Predicated region
        $region13: #{llama_mlp_forward.2} parent=11 // pred_check
          %p214 = pneg %p59
        $region14: #{llama_mlp_forward.2} parent=11 // pred_check_branch
          %216 = sbr.rel (%p214) target = $region16
        $region15: #{llama_mlp_forward.2} parent=11 // pred_region
          %s217 = smul.u32 16, %s22
          %s218 = smul.u32 2, %s24
          %p219 = scmp.lt.s32.totalorder %s217, 15
          %s220 = scalar_select %p219, %s217, 15
          %p221 = scmp.lt.s32.totalorder %s218, 1
          %s222 = scalar_select %p221, %s218, 1
          %s223 = smul.addr %s220, 2
          %s224 = sadd.s32 %s222, %s223
          %s225 = smul.addr %s224, 4
          %s226 = scalar_lea.vmem %s0, %s225
          %s227 = smul.u32 16, %s22
          %s228 = smul.u32 2, %s24
        $region16: #{llama_mlp_forward.2} parent=11 // pred_fallthru
          _
      $region12: #{llama_mlp_forward.2} parent=5 // pred_fallthru
        _
      %p229 = scmp.lt.s32.totalorder %s12, 2
      // Predicated region
      $region17: #{llama_mlp_forward.2} parent=5 // pred_check
        %p230 = pneg %p229
      $region18: #{llama_mlp_forward.2} parent=5 // pred_check_branch
        %232 = sbr.rel (%p230) target = $region20
      $region19: #{llama_mlp_forward.2} parent=5 // pred_region
        // Predicated region
        $region21: #{llama_mlp_forward.2} parent=19 // pred_check
          %p233 = pneg %p81
        $region22: #{llama_mlp_forward.2} parent=19 // pred_check_branch
          %235 = sbr.rel (%p233) target = $region24
        $region23: #{llama_mlp_forward.2} parent=19 // pred_region
          %s236 = sand.u32 %s71, 1
          %s237 = sand.u32 %s71, 1
          %s238 = smul.addr %s237, 256
          %s239 = scalar_lea.vmem [#allocation4], %s238
          %s240 = smul.u32 32, %s21
          %s241 = smul.u32 2, %s20
          %s242 = smul.addr %s240, 4
          %s243 = sadd.s32 %s241, %s242
          %s244 = smul.addr %s243, 4
          %s245 = scalar_lea.vmem %s1, %s244
          // Predicated region
          $region25: #{llama_mlp_forward.2} parent=23 // pred_check
            _
          $region26: #{llama_mlp_forward.2} parent=23 // pred_check_branch
            %247 = sbr.rel (0) target = $region28
          $region27: #{llama_mlp_forward.2} parent=23 // pred_region
            // Predicated region
            $region29: #{llama_mlp_forward.2} parent=27 // pred_check
              _
            $region30: #{llama_mlp_forward.2} parent=27 // pred_check_branch
              %249 = sbr.rel (0) target = $region32
            $region31: #{llama_mlp_forward.2} parent=27 // pred_region
              // Predicated region
              $region44: #{llama_mlp_forward.2} parent=31 // pred_check
                _
              $region45: #{llama_mlp_forward.2} parent=31 // pred_check_branch
                %327 = sbr.rel (0) target = $region47
              $region46: #{llama_mlp_forward.2} parent=31 // pred_region
                loop: start=0, step=1, limit=1
                $region48: #{llama_mlp_forward.2} parent=46 // loop_pre_header
                  _
                $region49: #{llama_mlp_forward.2} parent=46 // loop_header
                  %s329 = sphi 0, %s333
                  %p330 = scmp.ge.s32.totalorder %s329, 1
                  %s334 = sphi %s245, %s245
                  %s335 = sphi %s239, %s239
                $region50: #{llama_mlp_forward.2} parent=46 // loop_header_branch
                  %332 = sbr.rel (%p330) target = $region54
                $region51: #{llama_mlp_forward.2} parent=46 // loop_body
                  %v336 = vld [vmem:[%s334] sm:$0xff]
                  %337 = vst [vmem:[%s335] sm:$0xff] %v336
                  %v338 = vld [vmem:[%s334 + $0x10] sm:$0xff]
                  %339 = vst [vmem:[%s335 + $0x8] sm:$0xff] %v338
                  %v340 = vld [vmem:[%s334 + $0x20] sm:$0xff]
                  %341 = vst [vmem:[%s335 + $0x10] sm:$0xff] %v340
                  %v342 = vld [vmem:[%s334 + $0x30] sm:$0xff]
                  %343 = vst [vmem:[%s335 + $0x18] sm:$0xff] %v342
                  %v344 = vld [vmem:[%s334 + $0x40] sm:$0xff]
                  %345 = vst [vmem:[%s335 + $0x20] sm:$0xff] %v344
                  %v346 = vld [vmem:[%s334 + $0x50] sm:$0xff]
                  %347 = vst [vmem:[%s335 + $0x28] sm:$0xff] %v346
                  %v348 = vld [vmem:[%s334 + $0x60] sm:$0xff]
                  %349 = vst [vmem:[%s335 + $0x30] sm:$0xff] %v348
                  %v350 = vld [vmem:[%s334 + $0x70] sm:$0xff]
                  %351 = vst [vmem:[%s335 + $0x38] sm:$0xff] %v350
                  %v352 = vld [vmem:[%s334 + $0x80] sm:$0xff]
                  %353 = vst [vmem:[%s335 + $0x40] sm:$0xff] %v352
                  %v354 = vld [vmem:[%s334 + $0x90] sm:$0xff]
                  %355 = vst [vmem:[%s335 + $0x48] sm:$0xff] %v354
                  %v356 = vld [vmem:[%s334 + $0xa0] sm:$0xff]
                  %357 = vst [vmem:[%s335 + $0x50] sm:$0xff] %v356
                  %v358 = vld [vmem:[%s334 + $0xb0] sm:$0xff]
                  %359 = vst [vmem:[%s335 + $0x58] sm:$0xff] %v358
                  %v360 = vld [vmem:[%s334 + $0xc0] sm:$0xff]
                  %361 = vst [vmem:[%s335 + $0x60] sm:$0xff] %v360
                  %v362 = vld [vmem:[%s334 + $0xd0] sm:$0xff]
                  %363 = vst [vmem:[%s335 + $0x68] sm:$0xff] %v362
                  %v364 = vld [vmem:[%s334 + $0xe0] sm:$0xff]
                  %365 = vst [vmem:[%s335 + $0x70] sm:$0xff] %v364
                  %v366 = vld [vmem:[%s334 + $0xf0] sm:$0xff]
                  %367 = vst [vmem:[%s335 + $0x78] sm:$0xff] %v366
                  %v368 = vld [vmem:[%s334 + $0x100] sm:$0xff]
                  %369 = vst [vmem:[%s335 + $0x80] sm:$0xff] %v368
                  %v370 = vld [vmem:[%s334 + $0x110] sm:$0xff]
                  %371 = vst [vmem:[%s335 + $0x88] sm:$0xff] %v370
                  %v372 = vld [vmem:[%s334 + $0x120] sm:$0xff]
                  %373 = vst [vmem:[%s335 + $0x90] sm:$0xff] %v372
                  %v374 = vld [vmem:[%s334 + $0x130] sm:$0xff]
                  %375 = vst [vmem:[%s335 + $0x98] sm:$0xff] %v374
                  %v376 = vld [vmem:[%s334 + $0x140] sm:$0xff]
                  %377 = vst [vmem:[%s335 + $0xa0] sm:$0xff] %v376
                  %v378 = vld [vmem:[%s334 + $0x150] sm:$0xff]
                  %379 = vst [vmem:[%s335 + $0xa8] sm:$0xff] %v378
                  %v380 = vld [vmem:[%s334 + $0x160] sm:$0xff]
                  %381 = vst [vmem:[%s335 + $0xb0] sm:$0xff] %v380
                  %v382 = vld [vmem:[%s334 + $0x170] sm:$0xff]
                  %383 = vst [vmem:[%s335 + $0xb8] sm:$0xff] %v382
                  %v384 = vld [vmem:[%s334 + $0x180] sm:$0xff]
                  %385 = vst [vmem:[%s335 + $0xc0] sm:$0xff] %v384
                  %v386 = vld [vmem:[%s334 + $0x190] sm:$0xff]
                  %387 = vst [vmem:[%s335 + $0xc8] sm:$0xff] %v386
                  %v388 = vld [vmem:[%s334 + $0x1a0] sm:$0xff]
                  %389 = vst [vmem:[%s335 + $0xd0] sm:$0xff] %v388
                  %v390 = vld [vmem:[%s334 + $0x1b0] sm:$0xff]
                  %391 = vst [vmem:[%s335 + $0xd8] sm:$0xff] %v390
                  %v392 = vld [vmem:[%s334 + $0x1c0] sm:$0xff]
                  %393 = vst [vmem:[%s335 + $0xe0] sm:$0xff] %v392
                  %v394 = vld [vmem:[%s334 + $0x1d0] sm:$0xff]
                  %395 = vst [vmem:[%s335 + $0xe8] sm:$0xff] %v394
                  %v396 = vld [vmem:[%s334 + $0x1e0] sm:$0xff]
                  %397 = vst [vmem:[%s335 + $0xf0] sm:$0xff] %v396
                  %v398 = vld [vmem:[%s334 + $0x1f0] sm:$0xff]
                  %399 = vst [vmem:[%s335 + $0xf8] sm:$0xff] %v398
                $region52: #{llama_mlp_forward.2} parent=46 // loop_footer
                  %s333 = sadd.s32 1, %s329
                $region53: #{llama_mlp_forward.2} parent=46 // loop_footer_branch
                  %328 = sbr.rel target = $region49
                $region54: #{llama_mlp_forward.2} parent=46 // loop_exit
                  _
              $region47: #{llama_mlp_forward.2} parent=31 // pred_fallthru
                _
              // Predicated region
              $region55: #{llama_mlp_forward.2} parent=31 // pred_check
                _
              $region56: #{llama_mlp_forward.2} parent=31 // pred_check_branch
                %401 = sbr.rel target = $region58
              $region57: #{llama_mlp_forward.2} parent=31 // pred_region
                _
              $region58: #{llama_mlp_forward.2} parent=31 // pred_fallthru
                _
            $region32: #{llama_mlp_forward.2} parent=27 // pred_fallthru
              _
            // Predicated region
            $region33: #{llama_mlp_forward.2} parent=27 // pred_check
              _
            $region34: #{llama_mlp_forward.2} parent=27 // pred_check_branch
              %251 = sbr.rel target = $region36
            $region35: #{llama_mlp_forward.2} parent=27 // pred_region
              %s253 = ssub.s32 256, 1
              loop: start=0, step=1, limit=1
              $region37: #{llama_mlp_forward.2} parent=35 // loop_pre_header
                _
              $region38: #{llama_mlp_forward.2} parent=35 // loop_header
                %s255 = sphi 0, %s259
                %p256 = scmp.ge.s32.totalorder %s255, 1
                %s260 = sphi %s245, %s245
                %s261 = sphi %s239, %s239
              $region39: #{llama_mlp_forward.2} parent=35 // loop_header_branch
                %258 = sbr.rel (%p256) target = $region43
              $region40: #{llama_mlp_forward.2} parent=35 // loop_body
                %v262 = vld [vmem:[%s260] sm:%s253]
                %263 = vst [vmem:[%s261] sm:%s253] %v262
                %v264 = vld [vmem:[%s260 + $0x10] sm:%s253]
                %265 = vst [vmem:[%s261 + $0x8] sm:%s253] %v264
                %v266 = vld [vmem:[%s260 + $0x20] sm:%s253]
                %267 = vst [vmem:[%s261 + $0x10] sm:%s253] %v266
                %v268 = vld [vmem:[%s260 + $0x30] sm:%s253]
                %269 = vst [vmem:[%s261 + $0x18] sm:%s253] %v268
                %v270 = vld [vmem:[%s260 + $0x40] sm:%s253]
                %271 = vst [vmem:[%s261 + $0x20] sm:%s253] %v270
                %v272 = vld [vmem:[%s260 + $0x50] sm:%s253]
                %273 = vst [vmem:[%s261 + $0x28] sm:%s253] %v272
                %v274 = vld [vmem:[%s260 + $0x60] sm:%s253]
                %275 = vst [vmem:[%s261 + $0x30] sm:%s253] %v274
                %v276 = vld [vmem:[%s260 + $0x70] sm:%s253]
                %277 = vst [vmem:[%s261 + $0x38] sm:%s253] %v276
                %v278 = vld [vmem:[%s260 + $0x80] sm:%s253]
                %279 = vst [vmem:[%s261 + $0x40] sm:%s253] %v278
                %v280 = vld [vmem:[%s260 + $0x90] sm:%s253]
                %281 = vst [vmem:[%s261 + $0x48] sm:%s253] %v280
                %v282 = vld [vmem:[%s260 + $0xa0] sm:%s253]
                %283 = vst [vmem:[%s261 + $0x50] sm:%s253] %v282
                %v284 = vld [vmem:[%s260 + $0xb0] sm:%s253]
                %285 = vst [vmem:[%s261 + $0x58] sm:%s253] %v284
                %v286 = vld [vmem:[%s260 + $0xc0] sm:%s253]
                %287 = vst [vmem:[%s261 + $0x60] sm:%s253] %v286
                %v288 = vld [vmem:[%s260 + $0xd0] sm:%s253]
                %289 = vst [vmem:[%s261 + $0x68] sm:%s253] %v288
                %v290 = vld [vmem:[%s260 + $0xe0] sm:%s253]
                %291 = vst [vmem:[%s261 + $0x70] sm:%s253] %v290
                %v292 = vld [vmem:[%s260 + $0xf0] sm:%s253]
                %293 = vst [vmem:[%s261 + $0x78] sm:%s253] %v292
                %v294 = vld [vmem:[%s260 + $0x100] sm:%s253]
                %295 = vst [vmem:[%s261 + $0x80] sm:%s253] %v294
                %v296 = vld [vmem:[%s260 + $0x110] sm:%s253]
                %297 = vst [vmem:[%s261 + $0x88] sm:%s253] %v296
                %v298 = vld [vmem:[%s260 + $0x120] sm:%s253]
                %299 = vst [vmem:[%s261 + $0x90] sm:%s253] %v298
                %v300 = vld [vmem:[%s260 + $0x130] sm:%s253]
                %301 = vst [vmem:[%s261 + $0x98] sm:%s253] %v300
                %v302 = vld [vmem:[%s260 + $0x140] sm:%s253]
                %303 = vst [vmem:[%s261 + $0xa0] sm:%s253] %v302
                %v304 = vld [vmem:[%s260 + $0x150] sm:%s253]
                %305 = vst [vmem:[%s261 + $0xa8] sm:%s253] %v304
                %v306 = vld [vmem:[%s260 + $0x160] sm:%s253]
                %307 = vst [vmem:[%s261 + $0xb0] sm:%s253] %v306
                %v308 = vld [vmem:[%s260 + $0x170] sm:%s253]
                %309 = vst [vmem:[%s261 + $0xb8] sm:%s253] %v308
                %v310 = vld [vmem:[%s260 + $0x180] sm:%s253]
                %311 = vst [vmem:[%s261 + $0xc0] sm:%s253] %v310
                %v312 = vld [vmem:[%s260 + $0x190] sm:%s253]
                %313 = vst [vmem:[%s261 + $0xc8] sm:%s253] %v312
                %v314 = vld [vmem:[%s260 + $0x1a0] sm:%s253]
                %315 = vst [vmem:[%s261 + $0xd0] sm:%s253] %v314
                %v316 = vld [vmem:[%s260 + $0x1b0] sm:%s253]
                %317 = vst [vmem:[%s261 + $0xd8] sm:%s253] %v316
                %v318 = vld [vmem:[%s260 + $0x1c0] sm:%s253]
                %319 = vst [vmem:[%s261 + $0xe0] sm:%s253] %v318
                %v320 = vld [vmem:[%s260 + $0x1d0] sm:%s253]
                %321 = vst [vmem:[%s261 + $0xe8] sm:%s253] %v320
                %v322 = vld [vmem:[%s260 + $0x1e0] sm:%s253]
                %323 = vst [vmem:[%s261 + $0xf0] sm:%s253] %v322
                %v324 = vld [vmem:[%s260 + $0x1f0] sm:%s253]
                %325 = vst [vmem:[%s261 + $0xf8] sm:%s253] %v324
              $region41: #{llama_mlp_forward.2} parent=35 // loop_footer
                %s259 = sadd.s32 1, %s255
              $region42: #{llama_mlp_forward.2} parent=35 // loop_footer_branch
                %254 = sbr.rel target = $region38
              $region43: #{llama_mlp_forward.2} parent=35 // loop_exit
                _
            $region36: #{llama_mlp_forward.2} parent=27 // pred_fallthru
              _
          $region28: #{llama_mlp_forward.2} parent=23 // pred_fallthru
            _
          %402 = vnop
        $region24: #{llama_mlp_forward.2} parent=19 // pred_fallthru
          _
        // Predicated region
        $region59: #{llama_mlp_forward.2} parent=19 // pred_check
          %p403 = pneg %p109
        $region60: #{llama_mlp_forward.2} parent=19 // pred_check_branch
          %405 = sbr.rel (%p403) target = $region62
        $region61: #{llama_mlp_forward.2} parent=19 // pred_region
          %s406 = sand.u32 %s99, 1
          %s407 = sand.u32 %s99, 1
          %s408 = smul.addr %s407, 256
          %s409 = scalar_lea.vmem [#allocation5], %s408
          %s410 = smul.u32 32, %s21
          %s411 = smul.u32 2, %s20
          %s412 = smul.addr %s410, 4
          %s413 = sadd.s32 %s411, %s412
          %s414 = smul.addr %s413, 4
          %s415 = scalar_lea.vmem %s2, %s414
          // Predicated region
          $region63: #{llama_mlp_forward.2} parent=61 // pred_check
            _
          $region64: #{llama_mlp_forward.2} parent=61 // pred_check_branch
            %417 = sbr.rel (0) target = $region66
          $region65: #{llama_mlp_forward.2} parent=61 // pred_region
            // Predicated region
            $region67: #{llama_mlp_forward.2} parent=65 // pred_check
              _
            $region68: #{llama_mlp_forward.2} parent=65 // pred_check_branch
              %419 = sbr.rel (0) target = $region70
            $region69: #{llama_mlp_forward.2} parent=65 // pred_region
              // Predicated region
              $region82: #{llama_mlp_forward.2} parent=69 // pred_check
                _
              $region83: #{llama_mlp_forward.2} parent=69 // pred_check_branch
                %497 = sbr.rel (0) target = $region85
              $region84: #{llama_mlp_forward.2} parent=69 // pred_region
                loop: start=0, step=1, limit=1
                $region86: #{llama_mlp_forward.2} parent=84 // loop_pre_header
                  _
                $region87: #{llama_mlp_forward.2} parent=84 // loop_header
                  %s499 = sphi 0, %s503
                  %p500 = scmp.ge.s32.totalorder %s499, 1
                  %s504 = sphi %s415, %s415
                  %s505 = sphi %s409, %s409
                $region88: #{llama_mlp_forward.2} parent=84 // loop_header_branch
                  %502 = sbr.rel (%p500) target = $region92
                $region89: #{llama_mlp_forward.2} parent=84 // loop_body
                  %v506 = vld [vmem:[%s504] sm:$0xff]
                  %507 = vst [vmem:[%s505] sm:$0xff] %v506
                  %v508 = vld [vmem:[%s504 + $0x10] sm:$0xff]
                  %509 = vst [vmem:[%s505 + $0x8] sm:$0xff] %v508
                  %v510 = vld [vmem:[%s504 + $0x20] sm:$0xff]
                  %511 = vst [vmem:[%s505 + $0x10] sm:$0xff] %v510
                  %v512 = vld [vmem:[%s504 + $0x30] sm:$0xff]
                  %513 = vst [vmem:[%s505 + $0x18] sm:$0xff] %v512
                  %v514 = vld [vmem:[%s504 + $0x40] sm:$0xff]
                  %515 = vst [vmem:[%s505 + $0x20] sm:$0xff] %v514
                  %v516 = vld [vmem:[%s504 + $0x50] sm:$0xff]
                  %517 = vst [vmem:[%s505 + $0x28] sm:$0xff] %v516
                  %v518 = vld [vmem:[%s504 + $0x60] sm:$0xff]
                  %519 = vst [vmem:[%s505 + $0x30] sm:$0xff] %v518
                  %v520 = vld [vmem:[%s504 + $0x70] sm:$0xff]
                  %521 = vst [vmem:[%s505 + $0x38] sm:$0xff] %v520
                  %v522 = vld [vmem:[%s504 + $0x80] sm:$0xff]
                  %523 = vst [vmem:[%s505 + $0x40] sm:$0xff] %v522
                  %v524 = vld [vmem:[%s504 + $0x90] sm:$0xff]
                  %525 = vst [vmem:[%s505 + $0x48] sm:$0xff] %v524
                  %v526 = vld [vmem:[%s504 + $0xa0] sm:$0xff]
                  %527 = vst [vmem:[%s505 + $0x50] sm:$0xff] %v526
                  %v528 = vld [vmem:[%s504 + $0xb0] sm:$0xff]
                  %529 = vst [vmem:[%s505 + $0x58] sm:$0xff] %v528
                  %v530 = vld [vmem:[%s504 + $0xc0] sm:$0xff]
                  %531 = vst [vmem:[%s505 + $0x60] sm:$0xff] %v530
                  %v532 = vld [vmem:[%s504 + $0xd0] sm:$0xff]
                  %533 = vst [vmem:[%s505 + $0x68] sm:$0xff] %v532
                  %v534 = vld [vmem:[%s504 + $0xe0] sm:$0xff]
                  %535 = vst [vmem:[%s505 + $0x70] sm:$0xff] %v534
                  %v536 = vld [vmem:[%s504 + $0xf0] sm:$0xff]
                  %537 = vst [vmem:[%s505 + $0x78] sm:$0xff] %v536
                  %v538 = vld [vmem:[%s504 + $0x100] sm:$0xff]
                  %539 = vst [vmem:[%s505 + $0x80] sm:$0xff] %v538
                  %v540 = vld [vmem:[%s504 + $0x110] sm:$0xff]
                  %541 = vst [vmem:[%s505 + $0x88] sm:$0xff] %v540
                  %v542 = vld [vmem:[%s504 + $0x120] sm:$0xff]
                  %543 = vst [vmem:[%s505 + $0x90] sm:$0xff] %v542
                  %v544 = vld [vmem:[%s504 + $0x130] sm:$0xff]
                  %545 = vst [vmem:[%s505 + $0x98] sm:$0xff] %v544
                  %v546 = vld [vmem:[%s504 + $0x140] sm:$0xff]
                  %547 = vst [vmem:[%s505 + $0xa0] sm:$0xff] %v546
                  %v548 = vld [vmem:[%s504 + $0x150] sm:$0xff]
                  %549 = vst [vmem:[%s505 + $0xa8] sm:$0xff] %v548
                  %v550 = vld [vmem:[%s504 + $0x160] sm:$0xff]
                  %551 = vst [vmem:[%s505 + $0xb0] sm:$0xff] %v550
                  %v552 = vld [vmem:[%s504 + $0x170] sm:$0xff]
                  %553 = vst [vmem:[%s505 + $0xb8] sm:$0xff] %v552
                  %v554 = vld [vmem:[%s504 + $0x180] sm:$0xff]
                  %555 = vst [vmem:[%s505 + $0xc0] sm:$0xff] %v554
                  %v556 = vld [vmem:[%s504 + $0x190] sm:$0xff]
                  %557 = vst [vmem:[%s505 + $0xc8] sm:$0xff] %v556
                  %v558 = vld [vmem:[%s504 + $0x1a0] sm:$0xff]
                  %559 = vst [vmem:[%s505 + $0xd0] sm:$0xff] %v558
                  %v560 = vld [vmem:[%s504 + $0x1b0] sm:$0xff]
                  %561 = vst [vmem:[%s505 + $0xd8] sm:$0xff] %v560
                  %v562 = vld [vmem:[%s504 + $0x1c0] sm:$0xff]
                  %563 = vst [vmem:[%s505 + $0xe0] sm:$0xff] %v562
                  %v564 = vld [vmem:[%s504 + $0x1d0] sm:$0xff]
                  %565 = vst [vmem:[%s505 + $0xe8] sm:$0xff] %v564
                  %v566 = vld [vmem:[%s504 + $0x1e0] sm:$0xff]
                  %567 = vst [vmem:[%s505 + $0xf0] sm:$0xff] %v566
                  %v568 = vld [vmem:[%s504 + $0x1f0] sm:$0xff]
                  %569 = vst [vmem:[%s505 + $0xf8] sm:$0xff] %v568
                $region90: #{llama_mlp_forward.2} parent=84 // loop_footer
                  %s503 = sadd.s32 1, %s499
                $region91: #{llama_mlp_forward.2} parent=84 // loop_footer_branch
                  %498 = sbr.rel target = $region87
                $region92: #{llama_mlp_forward.2} parent=84 // loop_exit
                  _
              $region85: #{llama_mlp_forward.2} parent=69 // pred_fallthru
                _
              // Predicated region
              $region93: #{llama_mlp_forward.2} parent=69 // pred_check
                _
              $region94: #{llama_mlp_forward.2} parent=69 // pred_check_branch
                %571 = sbr.rel target = $region96
              $region95: #{llama_mlp_forward.2} parent=69 // pred_region
                _
              $region96: #{llama_mlp_forward.2} parent=69 // pred_fallthru
                _
            $region70: #{llama_mlp_forward.2} parent=65 // pred_fallthru
              _
            // Predicated region
            $region71: #{llama_mlp_forward.2} parent=65 // pred_check
              _
            $region72: #{llama_mlp_forward.2} parent=65 // pred_check_branch
              %421 = sbr.rel target = $region74
            $region73: #{llama_mlp_forward.2} parent=65 // pred_region
              %s423 = ssub.s32 256, 1
              loop: start=0, step=1, limit=1
              $region75: #{llama_mlp_forward.2} parent=73 // loop_pre_header
                _
              $region76: #{llama_mlp_forward.2} parent=73 // loop_header
                %s425 = sphi 0, %s429
                %p426 = scmp.ge.s32.totalorder %s425, 1
                %s430 = sphi %s415, %s415
                %s431 = sphi %s409, %s409
              $region77: #{llama_mlp_forward.2} parent=73 // loop_header_branch
                %428 = sbr.rel (%p426) target = $region81
              $region78: #{llama_mlp_forward.2} parent=73 // loop_body
                %v432 = vld [vmem:[%s430] sm:%s423]
                %433 = vst [vmem:[%s431] sm:%s423] %v432
                %v434 = vld [vmem:[%s430 + $0x10] sm:%s423]
                %435 = vst [vmem:[%s431 + $0x8] sm:%s423] %v434
                %v436 = vld [vmem:[%s430 + $0x20] sm:%s423]
                %437 = vst [vmem:[%s431 + $0x10] sm:%s423] %v436
                %v438 = vld [vmem:[%s430 + $0x30] sm:%s423]
                %439 = vst [vmem:[%s431 + $0x18] sm:%s423] %v438
                %v440 = vld [vmem:[%s430 + $0x40] sm:%s423]
                %441 = vst [vmem:[%s431 + $0x20] sm:%s423] %v440
                %v442 = vld [vmem:[%s430 + $0x50] sm:%s423]
                %443 = vst [vmem:[%s431 + $0x28] sm:%s423] %v442
                %v444 = vld [vmem:[%s430 + $0x60] sm:%s423]
                %445 = vst [vmem:[%s431 + $0x30] sm:%s423] %v444
                %v446 = vld [vmem:[%s430 + $0x70] sm:%s423]
                %447 = vst [vmem:[%s431 + $0x38] sm:%s423] %v446
                %v448 = vld [vmem:[%s430 + $0x80] sm:%s423]
                %449 = vst [vmem:[%s431 + $0x40] sm:%s423] %v448
                %v450 = vld [vmem:[%s430 + $0x90] sm:%s423]
                %451 = vst [vmem:[%s431 + $0x48] sm:%s423] %v450
                %v452 = vld [vmem:[%s430 + $0xa0] sm:%s423]
                %453 = vst [vmem:[%s431 + $0x50] sm:%s423] %v452
                %v454 = vld [vmem:[%s430 + $0xb0] sm:%s423]
                %455 = vst [vmem:[%s431 + $0x58] sm:%s423] %v454
                %v456 = vld [vmem:[%s430 + $0xc0] sm:%s423]
                %457 = vst [vmem:[%s431 + $0x60] sm:%s423] %v456
                %v458 = vld [vmem:[%s430 + $0xd0] sm:%s423]
                %459 = vst [vmem:[%s431 + $0x68] sm:%s423] %v458
                %v460 = vld [vmem:[%s430 + $0xe0] sm:%s423]
                %461 = vst [vmem:[%s431 + $0x70] sm:%s423] %v460
                %v462 = vld [vmem:[%s430 + $0xf0] sm:%s423]
                %463 = vst [vmem:[%s431 + $0x78] sm:%s423] %v462
                %v464 = vld [vmem:[%s430 + $0x100] sm:%s423]
                %465 = vst [vmem:[%s431 + $0x80] sm:%s423] %v464
                %v466 = vld [vmem:[%s430 + $0x110] sm:%s423]
                %467 = vst [vmem:[%s431 + $0x88] sm:%s423] %v466
                %v468 = vld [vmem:[%s430 + $0x120] sm:%s423]
                %469 = vst [vmem:[%s431 + $0x90] sm:%s423] %v468
                %v470 = vld [vmem:[%s430 + $0x130] sm:%s423]
                %471 = vst [vmem:[%s431 + $0x98] sm:%s423] %v470
                %v472 = vld [vmem:[%s430 + $0x140] sm:%s423]
                %473 = vst [vmem:[%s431 + $0xa0] sm:%s423] %v472
                %v474 = vld [vmem:[%s430 + $0x150] sm:%s423]
                %475 = vst [vmem:[%s431 + $0xa8] sm:%s423] %v474
                %v476 = vld [vmem:[%s430 + $0x160] sm:%s423]
                %477 = vst [vmem:[%s431 + $0xb0] sm:%s423] %v476
                %v478 = vld [vmem:[%s430 + $0x170] sm:%s423]
                %479 = vst [vmem:[%s431 + $0xb8] sm:%s423] %v478
                %v480 = vld [vmem:[%s430 + $0x180] sm:%s423]
                %481 = vst [vmem:[%s431 + $0xc0] sm:%s423] %v480
                %v482 = vld [vmem:[%s430 + $0x190] sm:%s423]
                %483 = vst [vmem:[%s431 + $0xc8] sm:%s423] %v482
                %v484 = vld [vmem:[%s430 + $0x1a0] sm:%s423]
                %485 = vst [vmem:[%s431 + $0xd0] sm:%s423] %v484
                %v486 = vld [vmem:[%s430 + $0x1b0] sm:%s423]
                %487 = vst [vmem:[%s431 + $0xd8] sm:%s423] %v486
                %v488 = vld [vmem:[%s430 + $0x1c0] sm:%s423]
                %489 = vst [vmem:[%s431 + $0xe0] sm:%s423] %v488
                %v490 = vld [vmem:[%s430 + $0x1d0] sm:%s423]
                %491 = vst [vmem:[%s431 + $0xe8] sm:%s423] %v490
                %v492 = vld [vmem:[%s430 + $0x1e0] sm:%s423]
                %493 = vst [vmem:[%s431 + $0xf0] sm:%s423] %v492
                %v494 = vld [vmem:[%s430 + $0x1f0] sm:%s423]
                %495 = vst [vmem:[%s431 + $0xf8] sm:%s423] %v494
              $region79: #{llama_mlp_forward.2} parent=73 // loop_footer
                %s429 = sadd.s32 1, %s425
              $region80: #{llama_mlp_forward.2} parent=73 // loop_footer_branch
                %424 = sbr.rel target = $region76
              $region81: #{llama_mlp_forward.2} parent=73 // loop_exit
                _
            $region74: #{llama_mlp_forward.2} parent=65 // pred_fallthru
              _
          $region66: #{llama_mlp_forward.2} parent=61 // pred_fallthru
            _
          %572 = vnop
        $region62: #{llama_mlp_forward.2} parent=19 // pred_fallthru
          _
      $region20: #{llama_mlp_forward.2} parent=5 // pred_fallthru
        _
      %p573 = scmp.le.s32.totalorder 1, %s12
      %p574 = scmp.lt.s32.totalorder %s12, 3
      %p575 = pnand %p573, %p574
      %p576 = pneg %p575
      // Predicated region
      $region97: #{llama_mlp_forward.2} parent=5 // pred_check
        _
      $region98: #{llama_mlp_forward.2} parent=5 // pred_check_branch
        %578 = sbr.rel (%p575) target = $region100
      $region99: #{llama_mlp_forward.2} parent=5 // pred_region
        %s579 = ssub.s32 %s12, 1
        %s580 = sand.u32 %s74, 1
        %s581 = sand.u32 %s74, 1
        %s582 = smul.addr %s581, 256
        %s583 = scalar_lea.vmem [#allocation4], %s582
        // Predicated region
        $region101: #{llama_mlp_forward.2} parent=99 // pred_check
          %p584 = pneg %p87
        $region102: #{llama_mlp_forward.2} parent=99 // pred_check_branch
          %586 = sbr.rel (%p584) target = $region104
        $region103: #{llama_mlp_forward.2} parent=99 // pred_region
          _
        $region104: #{llama_mlp_forward.2} parent=99 // pred_fallthru
          _
        %s587 = sand.u32 %s102, 1
        %s588 = sand.u32 %s102, 1
        %s589 = smul.addr %s588, 256
        %s590 = scalar_lea.vmem [#allocation5], %s589
        // Predicated region
        $region105: #{llama_mlp_forward.2} parent=99 // pred_check
          %p591 = pneg %p115
        $region106: #{llama_mlp_forward.2} parent=99 // pred_check_branch
          %593 = sbr.rel (%p591) target = $region108
        $region107: #{llama_mlp_forward.2} parent=99 // pred_region
          _
        $region108: #{llama_mlp_forward.2} parent=99 // pred_fallthru
          _
        %s594 = smul.u32 16, %s22
        %s595 = smul.u32 2, %s24
        %p596 = scmp.lt.s32.totalorder %s594, 15
        %s597 = scalar_select %p596, %s594, 15
        %p598 = scmp.lt.s32.totalorder %s595, 1
        %s599 = scalar_select %p598, %s595, 1
        %s600 = smul.addr %s597, 2
        %s601 = sadd.s32 %s599, %s600
        %s602 = smul.addr %s601, 4
        %s603 = scalar_lea.vmem %s0, %s602
        %p604 = pneg %p59
        %p605 = pneg %p56
        %s606 = sand.u32 %s74, 1
        %s607 = sand.u32 %s74, 1
        %s608 = smul.addr %s607, 256
        %s609 = scalar_lea.vmem [#allocation4], %s608
        %p610 = pneg %p87
        %p611 = pneg %p84
        %s612 = sand.u32 %s102, 1
        %s613 = sand.u32 %s102, 1
        %s614 = smul.addr %s613, 256
        %s615 = scalar_lea.vmem [#allocation5], %s614
        %p616 = pneg %p115
        %p617 = pneg %p112
        %p618 = pneg %p143
        %p619 = pneg %p140
        %s620 = sand.u32 %s130, 1
        %s621 = sand.u32 %s130, 1
        %s622 = smul.addr %s621, 128
        %s623 = scalar_lea.vmem [#allocation6], %s622
        %p624 = pneg %p171
        %p625 = pneg %p168
        %s626 = smul.u32 2, %s23
        %p627 = scmp.lt.s32.totalorder %s22, 0
        %s628 = scalar_select %p627, %s22, 0
        %p629 = scmp.lt.s32.totalorder %s626, 3
        %s630 = scalar_select %p629, %s626, 3
        %s631 = smul.addr %s628, 4
        %s632 = sadd.s32 %s630, %s631
        %s633 = smul.addr %s632, 8
        %s634 = scalar_lea.vmem %s4, %s633
        %p635 = pneg %p199
        %p636 = pneg %p196
        %s637 = smul.u32 2, %s23
        %p638 = scmp.lt.s32.totalorder %s22, 0
        %s639 = scalar_select %p638, %s22, 0
        %p640 = scmp.lt.s32.totalorder %s637, 3
        %s641 = scalar_select %p640, %s637, 3
        %s642 = smul.addr %s639, 4
        %s643 = sadd.s32 %s641, %s642
        %s644 = smul.addr %s643, 8
        %s645 = scalar_lea.vmem %s5, %s644
        %s646 = smul.u32 16, %s22
        %s647 = smul.u32 2, %s24
        %p648 = scmp.lt.s32.totalorder %s646, 15
        %s649 = scalar_select %p648, %s646, 15
        %p650 = scmp.lt.s32.totalorder %s647, 1
        %s651 = scalar_select %p650, %s647, 1
        %s652 = smul.addr %s649, 2
        %s653 = sadd.s32 %s651, %s652
        %s654 = smul.addr %s653, 4
        %s655 = scalar_lea.vmem %s0, %s654
        %s656 = smul.u32 16, %s22
        %s657 = smul.u32 2, %s24
        %s658 = smul.u32 32, %s24
        %s659 = smul.u32 2, %s23
        %s660 = smul.u32 32, %s24
        %s661 = smul.u32 2, %s23
        %s662 = smul.u32 16, %s22
        %s663 = smul.u32 2, %s23
        %s664 = smul.u32 2, %s23
        %p665 = scmp.lt.s32.totalorder %s22, 0
        %s666 = scalar_select %p665, %s22, 0
        %p667 = scmp.lt.s32.totalorder %s664, 3
        %s668 = scalar_select %p667, %s664, 3
        %s669 = smul.addr %s666, 4
        %s670 = sadd.s32 %s668, %s669
        %s671 = smul.addr %s670, 8
        %s672 = scalar_lea.vmem %s4, %s671
        %s673 = smul.u32 2, %s23
        %s674 = smul.u32 2, %s23
        %p675 = scmp.lt.s32.totalorder %s22, 0
        %s676 = scalar_select %p675, %s22, 0
        %p677 = scmp.lt.s32.totalorder %s674, 3
        %s678 = scalar_select %p677, %s674, 3
        %s679 = smul.addr %s676, 4
        %s680 = sadd.s32 %s678, %s679
        %s681 = smul.addr %s680, 8
        %s682 = scalar_lea.vmem %s5, %s681
        %s683 = smul.u32 2, %s23
        %p684 = scmp.eq.s32.totalorder %s24, 0
        // Predicated region
        $region109: #{llama_mlp_forward.2} parent=99 // pred_check
          %p685 = pneg %p684
        $region110: #{llama_mlp_forward.2} parent=99 // pred_check_branch
          %687 = sbr.rel (%p685) target = $region112
        $region111: #{llama_mlp_forward.2} parent=99 // pred_region
          %688 = vst [vmem:[#allocation2] sm:$0xff] 0.0
          %689 = vst [vmem:[#allocation2 + $0x8] sm:$0xff] 0.0
          %690 = vst [vmem:[#allocation2 + $0x10] sm:$0xff] 0.0
          %691 = vst [vmem:[#allocation2 + $0x18] sm:$0xff] 0.0
          %692 = vst [vmem:[#allocation2 + $0x20] sm:$0xff] 0.0
          %693 = vst [vmem:[#allocation2 + $0x28] sm:$0xff] 0.0
          %694 = vst [vmem:[#allocation2 + $0x30] sm:$0xff] 0.0
          %695 = vst [vmem:[#allocation2 + $0x38] sm:$0xff] 0.0
          %696 = vst [vmem:[#allocation2 + $0x40] sm:$0xff] 0.0
          %697 = vst [vmem:[#allocation2 + $0x48] sm:$0xff] 0.0
          %698 = vst [vmem:[#allocation2 + $0x50] sm:$0xff] 0.0
          %699 = vst [vmem:[#allocation2 + $0x58] sm:$0xff] 0.0
          %700 = vst [vmem:[#allocation2 + $0x60] sm:$0xff] 0.0
          %701 = vst [vmem:[#allocation2 + $0x68] sm:$0xff] 0.0
          %702 = vst [vmem:[#allocation2 + $0x70] sm:$0xff] 0.0
          %703 = vst [vmem:[#allocation2 + $0x78] sm:$0xff] 0.0
          %704 = vst [vmem:[#allocation2 + $0x80] sm:$0xff] 0.0
          %705 = vst [vmem:[#allocation2 + $0x88] sm:$0xff] 0.0
          %706 = vst [vmem:[#allocation2 + $0x90] sm:$0xff] 0.0
          %707 = vst [vmem:[#allocation2 + $0x98] sm:$0xff] 0.0
          %708 = vst [vmem:[#allocation2 + $0xa0] sm:$0xff] 0.0
          %709 = vst [vmem:[#allocation2 + $0xa8] sm:$0xff] 0.0
          %710 = vst [vmem:[#allocation2 + $0xb0] sm:$0xff] 0.0
          %711 = vst [vmem:[#allocation2 + $0xb8] sm:$0xff] 0.0
          %712 = vst [vmem:[#allocation2 + $0xc0] sm:$0xff] 0.0
          %713 = vst [vmem:[#allocation2 + $0xc8] sm:$0xff] 0.0
          %714 = vst [vmem:[#allocation2 + $0xd0] sm:$0xff] 0.0
          %715 = vst [vmem:[#allocation2 + $0xd8] sm:$0xff] 0.0
          %716 = vst [vmem:[#allocation2 + $0xe0] sm:$0xff] 0.0
          %717 = vst [vmem:[#allocation2 + $0xe8] sm:$0xff] 0.0
          %718 = vst [vmem:[#allocation2 + $0xf0] sm:$0xff] 0.0
          %719 = vst [vmem:[#allocation2 + $0xf8] sm:$0xff] 0.0
          %720 = vst [vmem:[#allocation3] sm:$0xff] 0.0
          %721 = vst [vmem:[#allocation3 + $0x8] sm:$0xff] 0.0
          %722 = vst [vmem:[#allocation3 + $0x10] sm:$0xff] 0.0
          %723 = vst [vmem:[#allocation3 + $0x18] sm:$0xff] 0.0
          %724 = vst [vmem:[#allocation3 + $0x20] sm:$0xff] 0.0
          %725 = vst [vmem:[#allocation3 + $0x28] sm:$0xff] 0.0
          %726 = vst [vmem:[#allocation3 + $0x30] sm:$0xff] 0.0
          %727 = vst [vmem:[#allocation3 + $0x38] sm:$0xff] 0.0
          %728 = vst [vmem:[#allocation3 + $0x40] sm:$0xff] 0.0
          %729 = vst [vmem:[#allocation3 + $0x48] sm:$0xff] 0.0
          %730 = vst [vmem:[#allocation3 + $0x50] sm:$0xff] 0.0
          %731 = vst [vmem:[#allocation3 + $0x58] sm:$0xff] 0.0
          %732 = vst [vmem:[#allocation3 + $0x60] sm:$0xff] 0.0
          %733 = vst [vmem:[#allocation3 + $0x68] sm:$0xff] 0.0
          %734 = vst [vmem:[#allocation3 + $0x70] sm:$0xff] 0.0
          %735 = vst [vmem:[#allocation3 + $0x78] sm:$0xff] 0.0
          %736 = vst [vmem:[#allocation3 + $0x80] sm:$0xff] 0.0
          %737 = vst [vmem:[#allocation3 + $0x88] sm:$0xff] 0.0
          %738 = vst [vmem:[#allocation3 + $0x90] sm:$0xff] 0.0
          %739 = vst [vmem:[#allocation3 + $0x98] sm:$0xff] 0.0
          %740 = vst [vmem:[#allocation3 + $0xa0] sm:$0xff] 0.0
          %741 = vst [vmem:[#allocation3 + $0xa8] sm:$0xff] 0.0
          %742 = vst [vmem:[#allocation3 + $0xb0] sm:$0xff] 0.0
          %743 = vst [vmem:[#allocation3 + $0xb8] sm:$0xff] 0.0
          %744 = vst [vmem:[#allocation3 + $0xc0] sm:$0xff] 0.0
          %745 = vst [vmem:[#allocation3 + $0xc8] sm:$0xff] 0.0
          %746 = vst [vmem:[#allocation3 + $0xd0] sm:$0xff] 0.0
          %747 = vst [vmem:[#allocation3 + $0xd8] sm:$0xff] 0.0
          %748 = vst [vmem:[#allocation3 + $0xe0] sm:$0xff] 0.0
          %749 = vst [vmem:[#allocation3 + $0xe8] sm:$0xff] 0.0
          %750 = vst [vmem:[#allocation3 + $0xf0] sm:$0xff] 0.0
          %751 = vst [vmem:[#allocation3 + $0xf8] sm:$0xff] 0.0
        $region112: #{llama_mlp_forward.2} parent=99 // pred_fallthru
          _
        %v752 = vld [vmem:[%s655] sm:$0xff]
        %v753 = vld [vmem:[%s655 + $0x8] sm:$0xff]
        %v754 = vld [vmem:[%s655 + $0x10] sm:$0xff]
        %v755 = vld [vmem:[%s655 + $0x18] sm:$0xff]
        %v756 = vld [vmem:[%s655 + $0x20] sm:$0xff]
        %v757 = vld [vmem:[%s655 + $0x28] sm:$0xff]
        %v758 = vld [vmem:[%s655 + $0x30] sm:$0xff]
        %v759 = vld [vmem:[%s655 + $0x38] sm:$0xff]
        %v760 = vld [vmem:[%s655 + $0x40] sm:$0xff]
        %v761 = vld [vmem:[%s655 + $0x48] sm:$0xff]
        %v762 = vld [vmem:[%s655 + $0x50] sm:$0xff]
        %v763 = vld [vmem:[%s655 + $0x58] sm:$0xff]
        %v764 = vld [vmem:[%s655 + $0x60] sm:$0xff]
        %v765 = vld [vmem:[%s655 + $0x68] sm:$0xff]
        %v766 = vld [vmem:[%s655 + $0x70] sm:$0xff]
        %v767 = vld [vmem:[%s655 + $0x78] sm:$0xff]
        %v768 = vld [vmem:[#allocation2] sm:$0xff]
        %v769 = vld [vmem:[#allocation2 + $0x8] sm:$0xff]
        %v770 = vld [vmem:[#allocation2 + $0x10] sm:$0xff]
        %v771 = vld [vmem:[#allocation2 + $0x18] sm:$0xff]
        %v772 = vld [vmem:[#allocation2 + $0x20] sm:$0xff]
        %v773 = vld [vmem:[#allocation2 + $0x28] sm:$0xff]
        %v774 = vld [vmem:[#allocation2 + $0x30] sm:$0xff]
        %v775 = vld [vmem:[#allocation2 + $0x38] sm:$0xff]
        %v776 = vld [vmem:[#allocation2 + $0x40] sm:$0xff]
        %v777 = vld [vmem:[#allocation2 + $0x48] sm:$0xff]
        %v778 = vld [vmem:[#allocation2 + $0x50] sm:$0xff]
        %v779 = vld [vmem:[#allocation2 + $0x58] sm:$0xff]
        %v780 = vld [vmem:[#allocation2 + $0x60] sm:$0xff]
        %v781 = vld [vmem:[#allocation2 + $0x68] sm:$0xff]
        %v782 = vld [vmem:[#allocation2 + $0x70] sm:$0xff]
        %v783 = vld [vmem:[#allocation2 + $0x78] sm:$0xff]
        %v784 = vld [vmem:[#allocation2 + $0x80] sm:$0xff]
        %v785 = vld [vmem:[#allocation2 + $0x88] sm:$0xff]
        %v786 = vld [vmem:[#allocation2 + $0x90] sm:$0xff]
        %v787 = vld [vmem:[#allocation2 + $0x98] sm:$0xff]
        %v788 = vld [vmem:[#allocation2 + $0xa0] sm:$0xff]
        %v789 = vld [vmem:[#allocation2 + $0xa8] sm:$0xff]
        %v790 = vld [vmem:[#allocation2 + $0xb0] sm:$0xff]
        %v791 = vld [vmem:[#allocation2 + $0xb8] sm:$0xff]
        %v792 = vld [vmem:[#allocation2 + $0xc0] sm:$0xff]
        %v793 = vld [vmem:[#allocation2 + $0xc8] sm:$0xff]
        %v794 = vld [vmem:[#allocation2 + $0xd0] sm:$0xff]
        %v795 = vld [vmem:[#allocation2 + $0xd8] sm:$0xff]
        %v796 = vld [vmem:[#allocation2 + $0xe0] sm:$0xff]
        %v797 = vld [vmem:[#allocation2 + $0xe8] sm:$0xff]
        %v798 = vld [vmem:[#allocation2 + $0xf0] sm:$0xff]
        %v799 = vld [vmem:[#allocation2 + $0xf8] sm:$0xff]
        %v800 = vld [vmem:[%s583] sm:$0xff]
        %v801 = vld [vmem:[%s583 + $0x8] sm:$0xff]
        %v802 = vld [vmem:[%s583 + $0x10] sm:$0xff]
        %v803 = vld [vmem:[%s583 + $0x18] sm:$0xff]
        %v804 = vld [vmem:[%s583 + $0x20] sm:$0xff]
        %v805 = vld [vmem:[%s583 + $0x28] sm:$0xff]
        %v806 = vld [vmem:[%s583 + $0x30] sm:$0xff]
        %v807 = vld [vmem:[%s583 + $0x38] sm:$0xff]
        %v808 = vld [vmem:[%s583 + $0x40] sm:$0xff]
        %v809 = vld [vmem:[%s583 + $0x48] sm:$0xff]
        %v810 = vld [vmem:[%s583 + $0x50] sm:$0xff]
        %v811 = vld [vmem:[%s583 + $0x58] sm:$0xff]
        %v812 = vld [vmem:[%s583 + $0x60] sm:$0xff]
        %v813 = vld [vmem:[%s583 + $0x68] sm:$0xff]
        %v814 = vld [vmem:[%s583 + $0x70] sm:$0xff]
        %v815 = vld [vmem:[%s583 + $0x78] sm:$0xff]
        %v816 = vld [vmem:[%s583 + $0x80] sm:$0xff]
        %v817 = vld [vmem:[%s583 + $0x88] sm:$0xff]
        %v818 = vld [vmem:[%s583 + $0x90] sm:$0xff]
        %v819 = vld [vmem:[%s583 + $0x98] sm:$0xff]
        %v820 = vld [vmem:[%s583 + $0xa0] sm:$0xff]
        %v821 = vld [vmem:[%s583 + $0xa8] sm:$0xff]
        %v822 = vld [vmem:[%s583 + $0xb0] sm:$0xff]
        %v823 = vld [vmem:[%s583 + $0xb8] sm:$0xff]
        %v824 = vld [vmem:[%s583 + $0xc0] sm:$0xff]
        %v825 = vld [vmem:[%s583 + $0xc8] sm:$0xff]
        %v826 = vld [vmem:[%s583 + $0xd0] sm:$0xff]
        %v827 = vld [vmem:[%s583 + $0xd8] sm:$0xff]
        %v828 = vld [vmem:[%s583 + $0xe0] sm:$0xff]
        %v829 = vld [vmem:[%s583 + $0xe8] sm:$0xff]
        %v830 = vld [vmem:[%s583 + $0xf0] sm:$0xff]
        %v831 = vld [vmem:[%s583 + $0xf8] sm:$0xff]
        %v848 = vunpack.c.l.b16 %v752
        %v849 = vunpack.c.h.b16 %v752
        %v850 = vunpack.c.l.b16 %v753
        %v851 = vunpack.c.h.b16 %v753
        %v852 = vunpack.c.l.b16 %v754
        %v853 = vunpack.c.h.b16 %v754
        %v854 = vunpack.c.l.b16 %v755
        %v855 = vunpack.c.h.b16 %v755
        %v856 = vunpack.c.l.b16 %v756
        %v857 = vunpack.c.h.b16 %v756
        %v858 = vunpack.c.l.b16 %v757
        %v859 = vunpack.c.h.b16 %v757
        %v860 = vunpack.c.l.b16 %v758
        %v861 = vunpack.c.h.b16 %v758
        %v862 = vunpack.c.l.b16 %v759
        %v863 = vunpack.c.h.b16 %v759
        %v864 = vunpack.c.l.b16 %v760
        %v865 = vunpack.c.h.b16 %v760
        %v866 = vunpack.c.l.b16 %v761
        %v867 = vunpack.c.h.b16 %v761
        %v868 = vunpack.c.l.b16 %v762
        %v869 = vunpack.c.h.b16 %v762
        %v870 = vunpack.c.l.b16 %v763
        %v871 = vunpack.c.h.b16 %v763
        %v872 = vunpack.c.l.b16 %v764
        %v873 = vunpack.c.h.b16 %v764
        %v874 = vunpack.c.l.b16 %v765
        %v875 = vunpack.c.h.b16 %v765
        %v876 = vunpack.c.l.b16 %v766
        %v877 = vunpack.c.h.b16 %v766
        %v878 = vunpack.c.l.b16 %v767
        %v879 = vunpack.c.h.b16 %v767
        %v880 = vpack.c.b16 %v850, %v848
        %v881 = vpack.c.b16 %v851, %v849
        %v882 = vpack.c.b16 %v854, %v852
        %v883 = vpack.c.b16 %v855, %v853
        %v884 = vpack.c.b16 %v858, %v856
        %v885 = vpack.c.b16 %v859, %v857
        %v886 = vpack.c.b16 %v862, %v860
        %v887 = vpack.c.b16 %v863, %v861
        %v888 = vpack.c.b16 %v866, %v864
        %v889 = vpack.c.b16 %v867, %v865
        %v890 = vpack.c.b16 %v870, %v868
        %v891 = vpack.c.b16 %v871, %v869
        %v892 = vpack.c.b16 %v874, %v872
        %v893 = vpack.c.b16 %v875, %v873
        %v894 = vpack.c.b16 %v878, %v876
        %v895 = vpack.c.b16 %v879, %v877
        %v944 = vunpack.c.l.b16 %v800
        %v945 = vunpack.c.h.b16 %v800
        %v946 = vunpack.c.l.b16 %v801
        %v947 = vunpack.c.h.b16 %v801
        %v948 = vunpack.c.l.b16 %v802
        %v949 = vunpack.c.h.b16 %v802
        %v950 = vunpack.c.l.b16 %v803
        %v951 = vunpack.c.h.b16 %v803
        %v952 = vunpack.c.l.b16 %v804
        %v953 = vunpack.c.h.b16 %v804
        %v954 = vunpack.c.l.b16 %v805
        %v955 = vunpack.c.h.b16 %v805
        %v956 = vunpack.c.l.b16 %v806
        %v957 = vunpack.c.h.b16 %v806
        %v958 = vunpack.c.l.b16 %v807
        %v959 = vunpack.c.h.b16 %v807
        %v960 = vunpack.c.l.b16 %v808
        %v961 = vunpack.c.h.b16 %v808
        %v962 = vunpack.c.l.b16 %v809
        %v963 = vunpack.c.h.b16 %v809
        %v964 = vunpack.c.l.b16 %v810
        %v965 = vunpack.c.h.b16 %v810
        %v966 = vunpack.c.l.b16 %v811
        %v967 = vunpack.c.h.b16 %v811
        %v968 = vunpack.c.l.b16 %v812
        %v969 = vunpack.c.h.b16 %v812
        %v970 = vunpack.c.l.b16 %v813
        %v971 = vunpack.c.h.b16 %v813
        %v972 = vunpack.c.l.b16 %v814
        %v973 = vunpack.c.h.b16 %v814
        %v974 = vunpack.c.l.b16 %v815
        %v975 = vunpack.c.h.b16 %v815
        %v976 = vunpack.c.l.b16 %v816
        %v977 = vunpack.c.h.b16 %v816
        %v978 = vunpack.c.l.b16 %v817
        %v979 = vunpack.c.h.b16 %v817
        %v980 = vunpack.c.l.b16 %v818
        %v981 = vunpack.c.h.b16 %v818
        %v982 = vunpack.c.l.b16 %v819
        %v983 = vunpack.c.h.b16 %v819
        %v984 = vunpack.c.l.b16 %v820
        %v985 = vunpack.c.h.b16 %v820
        %v986 = vunpack.c.l.b16 %v821
        %v987 = vunpack.c.h.b16 %v821
        %v988 = vunpack.c.l.b16 %v822
        %v989 = vunpack.c.h.b16 %v822
        %v990 = vunpack.c.l.b16 %v823
        %v991 = vunpack.c.h.b16 %v823
        %v992 = vunpack.c.l.b16 %v824
        %v993 = vunpack.c.h.b16 %v824
        %v994 = vunpack.c.l.b16 %v825
        %v995 = vunpack.c.h.b16 %v825
        %v996 = vunpack.c.l.b16 %v826
        %v997 = vunpack.c.h.b16 %v826
        %v998 = vunpack.c.l.b16 %v827
        %v999 = vunpack.c.h.b16 %v827
        %v1000 = vunpack.c.l.b16 %v828
        %v1001 = vunpack.c.h.b16 %v828
        %v1002 = vunpack.c.l.b16 %v829
        %v1003 = vunpack.c.h.b16 %v829
        %v1004 = vunpack.c.l.b16 %v830
        %v1005 = vunpack.c.h.b16 %v830
        %v1006 = vunpack.c.l.b16 %v831
        %v1007 = vunpack.c.h.b16 %v831
        %v1008 = vpack.c.b16 %v946, %v944
        %v1009 = vpack.c.b16 %v947, %v945
        %v1010 = vpack.c.b16 %v950, %v948
        %v1011 = vpack.c.b16 %v951, %v949
        %v1012 = vpack.c.b16 %v954, %v952
        %v1013 = vpack.c.b16 %v955, %v953
        %v1014 = vpack.c.b16 %v958, %v956
        %v1015 = vpack.c.b16 %v959, %v957
        %v1016 = vpack.c.b16 %v962, %v960
        %v1017 = vpack.c.b16 %v963, %v961
        %v1018 = vpack.c.b16 %v966, %v964
        %v1019 = vpack.c.b16 %v967, %v965
        %v1020 = vpack.c.b16 %v970, %v968
        %v1021 = vpack.c.b16 %v971, %v969
        %v1022 = vpack.c.b16 %v974, %v972
        %v1023 = vpack.c.b16 %v975, %v973
        %v1024 = vpack.c.b16 %v978, %v976
        %v1025 = vpack.c.b16 %v979, %v977
        %v1026 = vpack.c.b16 %v982, %v980
        %v1027 = vpack.c.b16 %v983, %v981
        %v1028 = vpack.c.b16 %v986, %v984
        %v1029 = vpack.c.b16 %v987, %v985
        %v1030 = vpack.c.b16 %v990, %v988
        %v1031 = vpack.c.b16 %v991, %v989
        %v1032 = vpack.c.b16 %v994, %v992
        %v1033 = vpack.c.b16 %v995, %v993
        %v1034 = vpack.c.b16 %v998, %v996
        %v1035 = vpack.c.b16 %v999, %v997
        %v1036 = vpack.c.b16 %v1002, %v1000
        %v1037 = vpack.c.b16 %v1003, %v1001
        %v1038 = vpack.c.b16 %v1006, %v1004
        %v1039 = vpack.c.b16 %v1007, %v1005
        %1072 = vmatprep.subr.bf16.mxu0 %v1023
        %1073 = vmatpush1.bf16.msra.mxu0 %v1022
        %1074 = vmatprep.subr.bf16.mxu0 %v1021
        %1075 = vmatpush1.bf16.msra.mxu0 %v1020
        %1076 = vmatprep.subr.bf16.mxu0 %v1019
        %1077 = vmatpush1.bf16.msra.mxu0 %v1018
        %1078 = vmatprep.subr.bf16.mxu0 %v1017
        %1079 = vmatpush1.bf16.msra.mxu0 %v1016
        %1080 = vmatprep.subr.bf16.mxu0 %v1015
        %1081 = vmatpush1.bf16.msra.mxu0 %v1014
        %1082 = vmatprep.subr.bf16.mxu0 %v1013
        %1083 = vmatpush1.bf16.msra.mxu0 %v1012
        %1084 = vmatprep.subr.bf16.mxu0 %v1011
        %1085 = vmatpush1.bf16.msra.mxu0 %v1010
        %1086 = vmatprep.subr.bf16.mxu0 %v1009
        %1087 = vmatpush1.bf16.msra.mxu0 %v1008
        %1088 = vmatprep.subr.bf16.mxu0 %v1039
        %1089 = vmatpush2.bf16.msra.mxu0 %v1038
        %1090 = vmatprep.subr.bf16.mxu0 %v1037
        %1091 = vmatpush2.bf16.msra.mxu0 %v1036
        %1092 = vmatprep.subr.bf16.mxu0 %v1035
        %1093 = vmatpush2.bf16.msra.mxu0 %v1034
        %1094 = vmatprep.subr.bf16.mxu0 %v1033
        %1095 = vmatpush2.bf16.msra.mxu0 %v1032
        %1096 = vmatprep.subr.bf16.mxu0 %v1031
        %1097 = vmatpush2.bf16.msra.mxu0 %v1030
        %1098 = vmatprep.subr.bf16.mxu0 %v1029
        %1099 = vmatpush2.bf16.msra.mxu0 %v1028
        %1100 = vmatprep.subr.bf16.mxu0 %v1027
        %1101 = vmatpush2.bf16.msra.mxu0 %v1026
        %1102 = vmatprep.subr.bf16.mxu0 %v1025
        %1103 = vmatpush2.bf16.msra.mxu0 %v1024
        %1104 = vmatprep.mubr.bf16.mxu0 %v881
        %1105 = vmatmul.mubr.bf16.gmra.mxu0 %v880
        %v1106 = vpop.f32.mrf.mxu0
        %v1107 = vadd.f32 0.0, %v1106
        %v1108 = vpop.f32.mrf.mxu0
        %v1109 = vadd.f32 0.0, %v1108
        %v1110 = vpop.f32.mrf.mxu0
        %v1111 = vadd.f32 0.0, %v1110
        %v1112 = vpop.f32.mrf.mxu0
        %v1113 = vadd.f32 0.0, %v1112
        %1114 = vmatprep.mubr.bf16.mxu0 %v883
        %1115 = vmatmul.mubr.bf16.gmra.mxu0 %v882
        %v1116 = vpop.f32.mrf.mxu0
        %v1117 = vadd.f32 0.0, %v1116
        %v1118 = vpop.f32.mrf.mxu0
        %v1119 = vadd.f32 0.0, %v1118
        %v1120 = vpop.f32.mrf.mxu0
        %v1121 = vadd.f32 0.0, %v1120
        %v1122 = vpop.f32.mrf.mxu0
        %v1123 = vadd.f32 0.0, %v1122
        %1124 = vmatprep.mubr.bf16.mxu0 %v885
        %1125 = vmatmul.mubr.bf16.gmra.mxu0 %v884
        %v1126 = vpop.f32.mrf.mxu0
        %v1127 = vadd.f32 0.0, %v1126
        %v1128 = vpop.f32.mrf.mxu0
        %v1129 = vadd.f32 0.0, %v1128
        %v1130 = vpop.f32.mrf.mxu0
        %v1131 = vadd.f32 0.0, %v1130
        %v1132 = vpop.f32.mrf.mxu0
        %v1133 = vadd.f32 0.0, %v1132
        %1134 = vmatprep.mubr.bf16.mxu0 %v887
        %1135 = vmatmul.mubr.bf16.gmra.mxu0 %v886
        %v1136 = vpop.f32.mrf.mxu0
        %v1137 = vadd.f32 0.0, %v1136
        %v1138 = vpop.f32.mrf.mxu0
        %v1139 = vadd.f32 0.0, %v1138
        %v1140 = vpop.f32.mrf.mxu0
        %v1141 = vadd.f32 0.0, %v1140
        %v1142 = vpop.f32.mrf.mxu0
        %v1143 = vadd.f32 0.0, %v1142
        %1144 = vmatprep.mubr.bf16.mxu0 %v889
        %1145 = vmatmul.mubr.bf16.gmra.mxu0 %v888
        %v1146 = vpop.f32.mrf.mxu0
        %v1147 = vadd.f32 0.0, %v1146
        %v1148 = vpop.f32.mrf.mxu0
        %v1149 = vadd.f32 0.0, %v1148
        %v1150 = vpop.f32.mrf.mxu0
        %v1151 = vadd.f32 0.0, %v1150
        %v1152 = vpop.f32.mrf.mxu0
        %v1153 = vadd.f32 0.0, %v1152
        %1154 = vmatprep.mubr.bf16.mxu0 %v891
        %1155 = vmatmul.mubr.bf16.gmra.mxu0 %v890
        %v1156 = vpop.f32.mrf.mxu0
        %v1157 = vadd.f32 0.0, %v1156
        %v1158 = vpop.f32.mrf.mxu0
        %v1159 = vadd.f32 0.0, %v1158
        %v1160 = vpop.f32.mrf.mxu0
        %v1161 = vadd.f32 0.0, %v1160
        %v1162 = vpop.f32.mrf.mxu0
        %v1163 = vadd.f32 0.0, %v1162
        %1164 = vmatprep.mubr.bf16.mxu0 %v893
        %1165 = vmatmul.mubr.bf16.gmra.mxu0 %v892
        %v1166 = vpop.f32.mrf.mxu0
        %v1167 = vadd.f32 0.0, %v1166
        %v1168 = vpop.f32.mrf.mxu0
        %v1169 = vadd.f32 0.0, %v1168
        %v1170 = vpop.f32.mrf.mxu0
        %v1171 = vadd.f32 0.0, %v1170
        %v1172 = vpop.f32.mrf.mxu0
        %v1173 = vadd.f32 0.0, %v1172
        %1174 = vmatprep.mubr.bf16.mxu0 %v895
        %1175 = vmatmul.mubr.bf16.gmra.mxu0 %v894
        %v1176 = vpop.f32.mrf.mxu0
        %v1177 = vadd.f32 0.0, %v1176
        %v1178 = vpop.f32.mrf.mxu0
        %v1179 = vadd.f32 0.0, %v1178
        %v1180 = vpop.f32.mrf.mxu0
        %v1181 = vadd.f32 0.0, %v1180
        %v1182 = vpop.f32.mrf.mxu0
        %v1183 = vadd.f32 0.0, %v1182
        %1184 = vdwg.mxu0
        %v1185 = vadd.f32 %v768, %v1107
        %v1186 = vadd.f32 %v769, %v1109
        %v1187 = vadd.f32 %v770, %v1111
        %v1188 = vadd.f32 %v771, %v1113
        %v1189 = vadd.f32 %v772, %v1117
        %v1190 = vadd.f32 %v773, %v1119
        %v1191 = vadd.f32 %v774, %v1121
        %v1192 = vadd.f32 %v775, %v1123
        %v1193 = vadd.f32 %v776, %v1127
        %v1194 = vadd.f32 %v777, %v1129
        %v1195 = vadd.f32 %v778, %v1131
        %v1196 = vadd.f32 %v779, %v1133
        %v1197 = vadd.f32 %v780, %v1137
        %v1198 = vadd.f32 %v781, %v1139
        %v1199 = vadd.f32 %v782, %v1141
        %v1200 = vadd.f32 %v783, %v1143
        %v1201 = vadd.f32 %v784, %v1147
        %v1202 = vadd.f32 %v785, %v1149
        %v1203 = vadd.f32 %v786, %v1151
        %v1204 = vadd.f32 %v787, %v1153
        %v1205 = vadd.f32 %v788, %v1157
        %v1206 = vadd.f32 %v789, %v1159
        %v1207 = vadd.f32 %v790, %v1161
        %v1208 = vadd.f32 %v791, %v1163
        %v1209 = vadd.f32 %v792, %v1167
        %v1210 = vadd.f32 %v793, %v1169
        %v1211 = vadd.f32 %v794, %v1171
        %v1212 = vadd.f32 %v795, %v1173
        %v1213 = vadd.f32 %v796, %v1177
        %v1214 = vadd.f32 %v797, %v1179
        %v1215 = vadd.f32 %v798, %v1181
        %v1216 = vadd.f32 %v799, %v1183
        %1217 = vst [vmem:[#allocation2] sm:$0xff] %v1185
        %1218 = vst [vmem:[#allocation2 + $0x8] sm:$0xff] %v1186
        %1219 = vst [vmem:[#allocation2 + $0x10] sm:$0xff] %v1187
        %1220 = vst [vmem:[#allocation2 + $0x18] sm:$0xff] %v1188
        %1221 = vst [vmem:[#allocation2 + $0x20] sm:$0xff] %v1189
        %1222 = vst [vmem:[#allocation2 + $0x28] sm:$0xff] %v1190
        %1223 = vst [vmem:[#allocation2 + $0x30] sm:$0xff] %v1191
        %1224 = vst [vmem:[#allocation2 + $0x38] sm:$0xff] %v1192
        %1225 = vst [vmem:[#allocation2 + $0x40] sm:$0xff] %v1193
        %1226 = vst [vmem:[#allocation2 + $0x48] sm:$0xff] %v1194
        %1227 = vst [vmem:[#allocation2 + $0x50] sm:$0xff] %v1195
        %1228 = vst [vmem:[#allocation2 + $0x58] sm:$0xff] %v1196
        %1229 = vst [vmem:[#allocation2 + $0x60] sm:$0xff] %v1197
        %1230 = vst [vmem:[#allocation2 + $0x68] sm:$0xff] %v1198
        %1231 = vst [vmem:[#allocation2 + $0x70] sm:$0xff] %v1199
        %1232 = vst [vmem:[#allocation2 + $0x78] sm:$0xff] %v1200
        %1233 = vst [vmem:[#allocation2 + $0x80] sm:$0xff] %v1201
        %1234 = vst [vmem:[#allocation2 + $0x88] sm:$0xff] %v1202
        %1235 = vst [vmem:[#allocation2 + $0x90] sm:$0xff] %v1203
        %1236 = vst [vmem:[#allocation2 + $0x98] sm:$0xff] %v1204
        %1237 = vst [vmem:[#allocation2 + $0xa0] sm:$0xff] %v1205
        %1238 = vst [vmem:[#allocation2 + $0xa8] sm:$0xff] %v1206
        %1239 = vst [vmem:[#allocation2 + $0xb0] sm:$0xff] %v1207
        %1240 = vst [vmem:[#allocation2 + $0xb8] sm:$0xff] %v1208
        %1241 = vst [vmem:[#allocation2 + $0xc0] sm:$0xff] %v1209
        %1242 = vst [vmem:[#allocation2 + $0xc8] sm:$0xff] %v1210
        %1243 = vst [vmem:[#allocation2 + $0xd0] sm:$0xff] %v1211
        %1244 = vst [vmem:[#allocation2 + $0xd8] sm:$0xff] %v1212
        %1245 = vst [vmem:[#allocation2 + $0xe0] sm:$0xff] %v1213
        %1246 = vst [vmem:[#allocation2 + $0xe8] sm:$0xff] %v1214
        %1247 = vst [vmem:[#allocation2 + $0xf0] sm:$0xff] %v1215
        %1248 = vst [vmem:[#allocation2 + $0xf8] sm:$0xff] %v1216
        %v1249 = vld [vmem:[#allocation3] sm:$0xff]
        %v1250 = vld [vmem:[#allocation3 + $0x8] sm:$0xff]
        %v1251 = vld [vmem:[#allocation3 + $0x10] sm:$0xff]
        %v1252 = vld [vmem:[#allocation3 + $0x18] sm:$0xff]
        %v1253 = vld [vmem:[#allocation3 + $0x20] sm:$0xff]
        %v1254 = vld [vmem:[#allocation3 + $0x28] sm:$0xff]
        %v1255 = vld [vmem:[#allocation3 + $0x30] sm:$0xff]
        %v1256 = vld [vmem:[#allocation3 + $0x38] sm:$0xff]
        %v1257 = vld [vmem:[#allocation3 + $0x40] sm:$0xff]
        %v1258 = vld [vmem:[#allocation3 + $0x48] sm:$0xff]
        %v1259 = vld [vmem:[#allocation3 + $0x50] sm:$0xff]
        %v1260 = vld [vmem:[#allocation3 + $0x58] sm:$0xff]
        %v1261 = vld [vmem:[#allocation3 + $0x60] sm:$0xff]
        %v1262 = vld [vmem:[#allocation3 + $0x68] sm:$0xff]
        %v1263 = vld [vmem:[#allocation3 + $0x70] sm:$0xff]
        %v1264 = vld [vmem:[#allocation3 + $0x78] sm:$0xff]
        %v1265 = vld [vmem:[#allocation3 + $0x80] sm:$0xff]
        %v1266 = vld [vmem:[#allocation3 + $0x88] sm:$0xff]
        %v1267 = vld [vmem:[#allocation3 + $0x90] sm:$0xff]
        %v1268 = vld [vmem:[#allocation3 + $0x98] sm:$0xff]
        %v1269 = vld [vmem:[#allocation3 + $0xa0] sm:$0xff]
        %v1270 = vld [vmem:[#allocation3 + $0xa8] sm:$0xff]
        %v1271 = vld [vmem:[#allocation3 + $0xb0] sm:$0xff]
        %v1272 = vld [vmem:[#allocation3 + $0xb8] sm:$0xff]
        %v1273 = vld [vmem:[#allocation3 + $0xc0] sm:$0xff]
        %v1274 = vld [vmem:[#allocation3 + $0xc8] sm:$0xff]
        %v1275 = vld [vmem:[#allocation3 + $0xd0] sm:$0xff]
        %v1276 = vld [vmem:[#allocation3 + $0xd8] sm:$0xff]
        %v1277 = vld [vmem:[#allocation3 + $0xe0] sm:$0xff]
        %v1278 = vld [vmem:[#allocation3 + $0xe8] sm:$0xff]
        %v1279 = vld [vmem:[#allocation3 + $0xf0] sm:$0xff]
        %v1280 = vld [vmem:[#allocation3 + $0xf8] sm:$0xff]
        %v1281 = vld [vmem:[%s590] sm:$0xff]
        %v1282 = vld [vmem:[%s590 + $0x8] sm:$0xff]
        %v1283 = vld [vmem:[%s590 + $0x10] sm:$0xff]
        %v1284 = vld [vmem:[%s590 + $0x18] sm:$0xff]
        %v1285 = vld [vmem:[%s590 + $0x20] sm:$0xff]
        %v1286 = vld [vmem:[%s590 + $0x28] sm:$0xff]
        %v1287 = vld [vmem:[%s590 + $0x30] sm:$0xff]
        %v1288 = vld [vmem:[%s590 + $0x38] sm:$0xff]
        %v1289 = vld [vmem:[%s590 + $0x40] sm:$0xff]
        %v1290 = vld [vmem:[%s590 + $0x48] sm:$0xff]
        %v1291 = vld [vmem:[%s590 + $0x50] sm:$0xff]
        %v1292 = vld [vmem:[%s590 + $0x58] sm:$0xff]
        %v1293 = vld [vmem:[%s590 + $0x60] sm:$0xff]
        %v1294 = vld [vmem:[%s590 + $0x68] sm:$0xff]
        %v1295 = vld [vmem:[%s590 + $0x70] sm:$0xff]
        %v1296 = vld [vmem:[%s590 + $0x78] sm:$0xff]
        %v1297 = vld [vmem:[%s590 + $0x80] sm:$0xff]
        %v1298 = vld [vmem:[%s590 + $0x88] sm:$0xff]
        %v1299 = vld [vmem:[%s590 + $0x90] sm:$0xff]
        %v1300 = vld [vmem:[%s590 + $0x98] sm:$0xff]
        %v1301 = vld [vmem:[%s590 + $0xa0] sm:$0xff]
        %v1302 = vld [vmem:[%s590 + $0xa8] sm:$0xff]
        %v1303 = vld [vmem:[%s590 + $0xb0] sm:$0xff]
        %v1304 = vld [vmem:[%s590 + $0xb8] sm:$0xff]
        %v1305 = vld [vmem:[%s590 + $0xc0] sm:$0xff]
        %v1306 = vld [vmem:[%s590 + $0xc8] sm:$0xff]
        %v1307 = vld [vmem:[%s590 + $0xd0] sm:$0xff]
        %v1308 = vld [vmem:[%s590 + $0xd8] sm:$0xff]
        %v1309 = vld [vmem:[%s590 + $0xe0] sm:$0xff]
        %v1310 = vld [vmem:[%s590 + $0xe8] sm:$0xff]
        %v1311 = vld [vmem:[%s590 + $0xf0] sm:$0xff]
        %v1312 = vld [vmem:[%s590 + $0xf8] sm:$0xff]
        %v1345 = vunpack.c.l.b16 %v1281
        %v1346 = vunpack.c.h.b16 %v1281
        %v1347 = vunpack.c.l.b16 %v1282
        %v1348 = vunpack.c.h.b16 %v1282
        %v1349 = vunpack.c.l.b16 %v1283
        %v1350 = vunpack.c.h.b16 %v1283
        %v1351 = vunpack.c.l.b16 %v1284
        %v1352 = vunpack.c.h.b16 %v1284
        %v1353 = vunpack.c.l.b16 %v1285
        %v1354 = vunpack.c.h.b16 %v1285
        %v1355 = vunpack.c.l.b16 %v1286
        %v1356 = vunpack.c.h.b16 %v1286
        %v1357 = vunpack.c.l.b16 %v1287
        %v1358 = vunpack.c.h.b16 %v1287
        %v1359 = vunpack.c.l.b16 %v1288
        %v1360 = vunpack.c.h.b16 %v1288
        %v1361 = vunpack.c.l.b16 %v1289
        %v1362 = vunpack.c.h.b16 %v1289
        %v1363 = vunpack.c.l.b16 %v1290
        %v1364 = vunpack.c.h.b16 %v1290
        %v1365 = vunpack.c.l.b16 %v1291
        %v1366 = vunpack.c.h.b16 %v1291
        %v1367 = vunpack.c.l.b16 %v1292
        %v1368 = vunpack.c.h.b16 %v1292
        %v1369 = vunpack.c.l.b16 %v1293
        %v1370 = vunpack.c.h.b16 %v1293
        %v1371 = vunpack.c.l.b16 %v1294
        %v1372 = vunpack.c.h.b16 %v1294
        %v1373 = vunpack.c.l.b16 %v1295
        %v1374 = vunpack.c.h.b16 %v1295
        %v1375 = vunpack.c.l.b16 %v1296
        %v1376 = vunpack.c.h.b16 %v1296
        %v1377 = vunpack.c.l.b16 %v1297
        %v1378 = vunpack.c.h.b16 %v1297
        %v1379 = vunpack.c.l.b16 %v1298
        %v1380 = vunpack.c.h.b16 %v1298
        %v1381 = vunpack.c.l.b16 %v1299
        %v1382 = vunpack.c.h.b16 %v1299
        %v1383 = vunpack.c.l.b16 %v1300
        %v1384 = vunpack.c.h.b16 %v1300
        %v1385 = vunpack.c.l.b16 %v1301
        %v1386 = vunpack.c.h.b16 %v1301
        %v1387 = vunpack.c.l.b16 %v1302
        %v1388 = vunpack.c.h.b16 %v1302
        %v1389 = vunpack.c.l.b16 %v1303
        %v1390 = vunpack.c.h.b16 %v1303
        %v1391 = vunpack.c.l.b16 %v1304
        %v1392 = vunpack.c.h.b16 %v1304
        %v1393 = vunpack.c.l.b16 %v1305
        %v1394 = vunpack.c.h.b16 %v1305
        %v1395 = vunpack.c.l.b16 %v1306
        %v1396 = vunpack.c.h.b16 %v1306
        %v1397 = vunpack.c.l.b16 %v1307
        %v1398 = vunpack.c.h.b16 %v1307
        %v1399 = vunpack.c.l.b16 %v1308
        %v1400 = vunpack.c.h.b16 %v1308
        %v1401 = vunpack.c.l.b16 %v1309
        %v1402 = vunpack.c.h.b16 %v1309
        %v1403 = vunpack.c.l.b16 %v1310
        %v1404 = vunpack.c.h.b16 %v1310
        %v1405 = vunpack.c.l.b16 %v1311
        %v1406 = vunpack.c.h.b16 %v1311
        %v1407 = vunpack.c.l.b16 %v1312
        %v1408 = vunpack.c.h.b16 %v1312
        %v1409 = vpack.c.b16 %v1347, %v1345
        %v1410 = vpack.c.b16 %v1348, %v1346
        %v1411 = vpack.c.b16 %v1351, %v1349
        %v1412 = vpack.c.b16 %v1352, %v1350
        %v1413 = vpack.c.b16 %v1355, %v1353
        %v1414 = vpack.c.b16 %v1356, %v1354
        %v1415 = vpack.c.b16 %v1359, %v1357
        %v1416 = vpack.c.b16 %v1360, %v1358
        %v1417 = vpack.c.b16 %v1363, %v1361
        %v1418 = vpack.c.b16 %v1364, %v1362
        %v1419 = vpack.c.b16 %v1367, %v1365
        %v1420 = vpack.c.b16 %v1368, %v1366
        %v1421 = vpack.c.b16 %v1371, %v1369
        %v1422 = vpack.c.b16 %v1372, %v1370
        %v1423 = vpack.c.b16 %v1375, %v1373
        %v1424 = vpack.c.b16 %v1376, %v1374
        %v1425 = vpack.c.b16 %v1379, %v1377
        %v1426 = vpack.c.b16 %v1380, %v1378
        %v1427 = vpack.c.b16 %v1383, %v1381
        %v1428 = vpack.c.b16 %v1384, %v1382
        %v1429 = vpack.c.b16 %v1387, %v1385
        %v1430 = vpack.c.b16 %v1388, %v1386
        %v1431 = vpack.c.b16 %v1391, %v1389
        %v1432 = vpack.c.b16 %v1392, %v1390
        %v1433 = vpack.c.b16 %v1395, %v1393
        %v1434 = vpack.c.b16 %v1396, %v1394
        %v1435 = vpack.c.b16 %v1399, %v1397
        %v1436 = vpack.c.b16 %v1400, %v1398
        %v1437 = vpack.c.b16 %v1403, %v1401
        %v1438 = vpack.c.b16 %v1404, %v1402
        %v1439 = vpack.c.b16 %v1407, %v1405
        %v1440 = vpack.c.b16 %v1408, %v1406
        %1473 = vmatprep.subr.bf16.mxu0 %v1424
        %1474 = vmatpush1.bf16.msra.mxu0 %v1423
        %1475 = vmatprep.subr.bf16.mxu0 %v1422
        %1476 = vmatpush1.bf16.msra.mxu0 %v1421
        %1477 = vmatprep.subr.bf16.mxu0 %v1420
        %1478 = vmatpush1.bf16.msra.mxu0 %v1419
        %1479 = vmatprep.subr.bf16.mxu0 %v1418
        %1480 = vmatpush1.bf16.msra.mxu0 %v1417
        %1481 = vmatprep.subr.bf16.mxu0 %v1416
        %1482 = vmatpush1.bf16.msra.mxu0 %v1415
        %1483 = vmatprep.subr.bf16.mxu0 %v1414
        %1484 = vmatpush1.bf16.msra.mxu0 %v1413
        %1485 = vmatprep.subr.bf16.mxu0 %v1412
        %1486 = vmatpush1.bf16.msra.mxu0 %v1411
        %1487 = vmatprep.subr.bf16.mxu0 %v1410
        %1488 = vmatpush1.bf16.msra.mxu0 %v1409
        %1489 = vmatprep.subr.bf16.mxu0 %v1440
        %1490 = vmatpush2.bf16.msra.mxu0 %v1439
        %1491 = vmatprep.subr.bf16.mxu0 %v1438
        %1492 = vmatpush2.bf16.msra.mxu0 %v1437
        %1493 = vmatprep.subr.bf16.mxu0 %v1436
        %1494 = vmatpush2.bf16.msra.mxu0 %v1435
        %1495 = vmatprep.subr.bf16.mxu0 %v1434
        %1496 = vmatpush2.bf16.msra.mxu0 %v1433
        %1497 = vmatprep.subr.bf16.mxu0 %v1432
        %1498 = vmatpush2.bf16.msra.mxu0 %v1431
        %1499 = vmatprep.subr.bf16.mxu0 %v1430
        %1500 = vmatpush2.bf16.msra.mxu0 %v1429
        %1501 = vmatprep.subr.bf16.mxu0 %v1428
        %1502 = vmatpush2.bf16.msra.mxu0 %v1427
        %1503 = vmatprep.subr.bf16.mxu0 %v1426
        %1504 = vmatpush2.bf16.msra.mxu0 %v1425
        %1505 = vmatprep.mubr.bf16.mxu0 %v881
        %1506 = vmatmul.mubr.bf16.gmra.mxu0 %v880
        %v1507 = vpop.f32.mrf.mxu0
        %v1508 = vadd.f32 0.0, %v1507
        %v1509 = vpop.f32.mrf.mxu0
        %v1510 = vadd.f32 0.0, %v1509
        %v1511 = vpop.f32.mrf.mxu0
        %v1512 = vadd.f32 0.0, %v1511
        %v1513 = vpop.f32.mrf.mxu0
        %v1514 = vadd.f32 0.0, %v1513
        %1515 = vmatprep.mubr.bf16.mxu0 %v883
        %1516 = vmatmul.mubr.bf16.gmra.mxu0 %v882
        %v1517 = vpop.f32.mrf.mxu0
        %v1518 = vadd.f32 0.0, %v1517
        %v1519 = vpop.f32.mrf.mxu0
        %v1520 = vadd.f32 0.0, %v1519
        %v1521 = vpop.f32.mrf.mxu0
        %v1522 = vadd.f32 0.0, %v1521
        %v1523 = vpop.f32.mrf.mxu0
        %v1524 = vadd.f32 0.0, %v1523
        %1525 = vmatprep.mubr.bf16.mxu0 %v885
        %1526 = vmatmul.mubr.bf16.gmra.mxu0 %v884
        %v1527 = vpop.f32.mrf.mxu0
        %v1528 = vadd.f32 0.0, %v1527
        %v1529 = vpop.f32.mrf.mxu0
        %v1530 = vadd.f32 0.0, %v1529
        %v1531 = vpop.f32.mrf.mxu0
        %v1532 = vadd.f32 0.0, %v1531
        %v1533 = vpop.f32.mrf.mxu0
        %v1534 = vadd.f32 0.0, %v1533
        %1535 = vmatprep.mubr.bf16.mxu0 %v887
        %1536 = vmatmul.mubr.bf16.gmra.mxu0 %v886
        %v1537 = vpop.f32.mrf.mxu0
        %v1538 = vadd.f32 0.0, %v1537
        %v1539 = vpop.f32.mrf.mxu0
        %v1540 = vadd.f32 0.0, %v1539
        %v1541 = vpop.f32.mrf.mxu0
        %v1542 = vadd.f32 0.0, %v1541
        %v1543 = vpop.f32.mrf.mxu0
        %v1544 = vadd.f32 0.0, %v1543
        %1545 = vmatprep.mubr.bf16.mxu0 %v889
        %1546 = vmatmul.mubr.bf16.gmra.mxu0 %v888
        %v1547 = vpop.f32.mrf.mxu0
        %v1548 = vadd.f32 0.0, %v1547
        %v1549 = vpop.f32.mrf.mxu0
        %v1550 = vadd.f32 0.0, %v1549
        %v1551 = vpop.f32.mrf.mxu0
        %v1552 = vadd.f32 0.0, %v1551
        %v1553 = vpop.f32.mrf.mxu0
        %v1554 = vadd.f32 0.0, %v1553
        %1555 = vmatprep.mubr.bf16.mxu0 %v891
        %1556 = vmatmul.mubr.bf16.gmra.mxu0 %v890
        %v1557 = vpop.f32.mrf.mxu0
        %v1558 = vadd.f32 0.0, %v1557
        %v1559 = vpop.f32.mrf.mxu0
        %v1560 = vadd.f32 0.0, %v1559
        %v1561 = vpop.f32.mrf.mxu0
        %v1562 = vadd.f32 0.0, %v1561
        %v1563 = vpop.f32.mrf.mxu0
        %v1564 = vadd.f32 0.0, %v1563
        %1565 = vmatprep.mubr.bf16.mxu0 %v893
        %1566 = vmatmul.mubr.bf16.gmra.mxu0 %v892
        %v1567 = vpop.f32.mrf.mxu0
        %v1568 = vadd.f32 0.0, %v1567
        %v1569 = vpop.f32.mrf.mxu0
        %v1570 = vadd.f32 0.0, %v1569
        %v1571 = vpop.f32.mrf.mxu0
        %v1572 = vadd.f32 0.0, %v1571
        %v1573 = vpop.f32.mrf.mxu0
        %v1574 = vadd.f32 0.0, %v1573
        %1575 = vmatprep.mubr.bf16.mxu0 %v895
        %1576 = vmatmul.mubr.bf16.gmra.mxu0 %v894
        %v1577 = vpop.f32.mrf.mxu0
        %v1578 = vadd.f32 0.0, %v1577
        %v1579 = vpop.f32.mrf.mxu0
        %v1580 = vadd.f32 0.0, %v1579
        %v1581 = vpop.f32.mrf.mxu0
        %v1582 = vadd.f32 0.0, %v1581
        %v1583 = vpop.f32.mrf.mxu0
        %v1584 = vadd.f32 0.0, %v1583
        %1585 = vdwg.mxu0
        %v1586 = vadd.f32 %v1249, %v1508
        %v1587 = vadd.f32 %v1250, %v1510
        %v1588 = vadd.f32 %v1251, %v1512
        %v1589 = vadd.f32 %v1252, %v1514
        %v1590 = vadd.f32 %v1253, %v1518
        %v1591 = vadd.f32 %v1254, %v1520
        %v1592 = vadd.f32 %v1255, %v1522
        %v1593 = vadd.f32 %v1256, %v1524
        %v1594 = vadd.f32 %v1257, %v1528
        %v1595 = vadd.f32 %v1258, %v1530
        %v1596 = vadd.f32 %v1259, %v1532
        %v1597 = vadd.f32 %v1260, %v1534
        %v1598 = vadd.f32 %v1261, %v1538
        %v1599 = vadd.f32 %v1262, %v1540
        %v1600 = vadd.f32 %v1263, %v1542
        %v1601 = vadd.f32 %v1264, %v1544
        %v1602 = vadd.f32 %v1265, %v1548
        %v1603 = vadd.f32 %v1266, %v1550
        %v1604 = vadd.f32 %v1267, %v1552
        %v1605 = vadd.f32 %v1268, %v1554
        %v1606 = vadd.f32 %v1269, %v1558
        %v1607 = vadd.f32 %v1270, %v1560
        %v1608 = vadd.f32 %v1271, %v1562
        %v1609 = vadd.f32 %v1272, %v1564
        %v1610 = vadd.f32 %v1273, %v1568
        %v1611 = vadd.f32 %v1274, %v1570
        %v1612 = vadd.f32 %v1275, %v1572
        %v1613 = vadd.f32 %v1276, %v1574
        %v1614 = vadd.f32 %v1277, %v1578
        %v1615 = vadd.f32 %v1278, %v1580
        %v1616 = vadd.f32 %v1279, %v1582
        %v1617 = vadd.f32 %v1280, %v1584
        %1618 = vst [vmem:[#allocation3] sm:$0xff] %v1586
        %1619 = vst [vmem:[#allocation3 + $0x8] sm:$0xff] %v1587
        %1620 = vst [vmem:[#allocation3 + $0x10] sm:$0xff] %v1588
        %1621 = vst [vmem:[#allocation3 + $0x18] sm:$0xff] %v1589
        %1622 = vst [vmem:[#allocation3 + $0x20] sm:$0xff] %v1590
        %1623 = vst [vmem:[#allocation3 + $0x28] sm:$0xff] %v1591
        %1624 = vst [vmem:[#allocation3 + $0x30] sm:$0xff] %v1592
        %1625 = vst [vmem:[#allocation3 + $0x38] sm:$0xff] %v1593
        %1626 = vst [vmem:[#allocation3 + $0x40] sm:$0xff] %v1594
        %1627 = vst [vmem:[#allocation3 + $0x48] sm:$0xff] %v1595
        %1628 = vst [vmem:[#allocation3 + $0x50] sm:$0xff] %v1596
        %1629 = vst [vmem:[#allocation3 + $0x58] sm:$0xff] %v1597
        %1630 = vst [vmem:[#allocation3 + $0x60] sm:$0xff] %v1598
        %1631 = vst [vmem:[#allocation3 + $0x68] sm:$0xff] %v1599
        %1632 = vst [vmem:[#allocation3 + $0x70] sm:$0xff] %v1600
        %1633 = vst [vmem:[#allocation3 + $0x78] sm:$0xff] %v1601
        %1634 = vst [vmem:[#allocation3 + $0x80] sm:$0xff] %v1602
        %1635 = vst [vmem:[#allocation3 + $0x88] sm:$0xff] %v1603
        %1636 = vst [vmem:[#allocation3 + $0x90] sm:$0xff] %v1604
        %1637 = vst [vmem:[#allocation3 + $0x98] sm:$0xff] %v1605
        %1638 = vst [vmem:[#allocation3 + $0xa0] sm:$0xff] %v1606
        %1639 = vst [vmem:[#allocation3 + $0xa8] sm:$0xff] %v1607
        %1640 = vst [vmem:[#allocation3 + $0xb0] sm:$0xff] %v1608
        %1641 = vst [vmem:[#allocation3 + $0xb8] sm:$0xff] %v1609
        %1642 = vst [vmem:[#allocation3 + $0xc0] sm:$0xff] %v1610
        %1643 = vst [vmem:[#allocation3 + $0xc8] sm:$0xff] %v1611
        %1644 = vst [vmem:[#allocation3 + $0xd0] sm:$0xff] %v1612
        %1645 = vst [vmem:[#allocation3 + $0xd8] sm:$0xff] %v1613
        %1646 = vst [vmem:[#allocation3 + $0xe0] sm:$0xff] %v1614
        %1647 = vst [vmem:[#allocation3 + $0xe8] sm:$0xff] %v1615
        %1648 = vst [vmem:[#allocation3 + $0xf0] sm:$0xff] %v1616
        %1649 = vst [vmem:[#allocation3 + $0xf8] sm:$0xff] %v1617
        // Predicated region
        $region113: #{llama_mlp_forward.2} parent=99 // pred_check
          %p1650 = pneg %p684
        $region114: #{llama_mlp_forward.2} parent=99 // pred_check_branch
          %1652 = sbr.rel (%p1650) target = $region116
        $region115: #{llama_mlp_forward.2} parent=99 // pred_region
          %v1653 = vld [vmem:[#allocation2] sm:$0xff]
          %v1654 = vld [vmem:[#allocation2 + $0x8] sm:$0xff]
          %v1655 = vld [vmem:[#allocation2 + $0x10] sm:$0xff]
          %v1656 = vld [vmem:[#allocation2 + $0x18] sm:$0xff]
          %v1657 = vld [vmem:[#allocation2 + $0x20] sm:$0xff]
          %v1658 = vld [vmem:[#allocation2 + $0x28] sm:$0xff]
          %v1659 = vld [vmem:[#allocation2 + $0x30] sm:$0xff]
          %v1660 = vld [vmem:[#allocation2 + $0x38] sm:$0xff]
          %v1661 = vld [vmem:[#allocation2 + $0x40] sm:$0xff]
          %v1662 = vld [vmem:[#allocation2 + $0x48] sm:$0xff]
          %v1663 = vld [vmem:[#allocation2 + $0x50] sm:$0xff]
          %v1664 = vld [vmem:[#allocation2 + $0x58] sm:$0xff]
          %v1665 = vld [vmem:[#allocation2 + $0x60] sm:$0xff]
          %v1666 = vld [vmem:[#allocation2 + $0x68] sm:$0xff]
          %v1667 = vld [vmem:[#allocation2 + $0x70] sm:$0xff]
          %v1668 = vld [vmem:[#allocation2 + $0x78] sm:$0xff]
          %v1669 = vld [vmem:[#allocation2 + $0x80] sm:$0xff]
          %v1670 = vld [vmem:[#allocation2 + $0x88] sm:$0xff]
          %v1671 = vld [vmem:[#allocation2 + $0x90] sm:$0xff]
          %v1672 = vld [vmem:[#allocation2 + $0x98] sm:$0xff]
          %v1673 = vld [vmem:[#allocation2 + $0xa0] sm:$0xff]
          %v1674 = vld [vmem:[#allocation2 + $0xa8] sm:$0xff]
          %v1675 = vld [vmem:[#allocation2 + $0xb0] sm:$0xff]
          %v1676 = vld [vmem:[#allocation2 + $0xb8] sm:$0xff]
          %v1677 = vld [vmem:[#allocation2 + $0xc0] sm:$0xff]
          %v1678 = vld [vmem:[#allocation2 + $0xc8] sm:$0xff]
          %v1679 = vld [vmem:[#allocation2 + $0xd0] sm:$0xff]
          %v1680 = vld [vmem:[#allocation2 + $0xd8] sm:$0xff]
          %v1681 = vld [vmem:[#allocation2 + $0xe0] sm:$0xff]
          %v1682 = vld [vmem:[#allocation2 + $0xe8] sm:$0xff]
          %v1683 = vld [vmem:[#allocation2 + $0xf0] sm:$0xff]
          %v1684 = vld [vmem:[#allocation2 + $0xf8] sm:$0xff]
          %v1685 = vxor.u32 %v1653, 2147483648
          %v1686 = vxor.u32 %v1654, 2147483648
          %v1687 = vxor.u32 %v1655, 2147483648
          %v1688 = vxor.u32 %v1656, 2147483648
          %v1689 = vxor.u32 %v1657, 2147483648
          %v1690 = vxor.u32 %v1658, 2147483648
          %v1691 = vxor.u32 %v1659, 2147483648
          %v1692 = vxor.u32 %v1660, 2147483648
          %v1693 = vxor.u32 %v1661, 2147483648
          %v1694 = vxor.u32 %v1662, 2147483648
          %v1695 = vxor.u32 %v1663, 2147483648
          %v1696 = vxor.u32 %v1664, 2147483648
          %v1697 = vxor.u32 %v1665, 2147483648
          %v1698 = vxor.u32 %v1666, 2147483648
          %v1699 = vxor.u32 %v1667, 2147483648
          %v1700 = vxor.u32 %v1668, 2147483648
          %v1701 = vxor.u32 %v1669, 2147483648
          %v1702 = vxor.u32 %v1670, 2147483648
          %v1703 = vxor.u32 %v1671, 2147483648
          %v1704 = vxor.u32 %v1672, 2147483648
          %v1705 = vxor.u32 %v1673, 2147483648
          %v1706 = vxor.u32 %v1674, 2147483648
          %v1707 = vxor.u32 %v1675, 2147483648
          %v1708 = vxor.u32 %v1676, 2147483648
          %v1709 = vxor.u32 %v1677, 2147483648
          %v1710 = vxor.u32 %v1678, 2147483648
          %v1711 = vxor.u32 %v1679, 2147483648
          %v1712 = vxor.u32 %v1680, 2147483648
          %v1713 = vxor.u32 %v1681, 2147483648
          %v1714 = vxor.u32 %v1682, 2147483648
          %v1715 = vxor.u32 %v1683, 2147483648
          %v1716 = vxor.u32 %v1684, 2147483648
          %v1717 = vmul.f32 %v1685, 1.442695
          %v1718 = vpow.pop %v1717
          %v1719 = vmul.f32 %v1686, 1.442695
          %v1720 = vpow.pop %v1719
          %v1721 = vmul.f32 %v1687, 1.442695
          %v1722 = vpow.pop %v1721
          %v1723 = vmul.f32 %v1688, 1.442695
          %v1724 = vpow.pop %v1723
          %v1725 = vmul.f32 %v1689, 1.442695
          %v1726 = vpow.pop %v1725
          %v1727 = vmul.f32 %v1690, 1.442695
          %v1728 = vpow.pop %v1727
          %v1729 = vmul.f32 %v1691, 1.442695
          %v1730 = vpow.pop %v1729
          %v1731 = vmul.f32 %v1692, 1.442695
          %v1732 = vpow.pop %v1731
          %v1733 = vmul.f32 %v1693, 1.442695
          %v1734 = vpow.pop %v1733
          %v1735 = vmul.f32 %v1694, 1.442695
          %v1736 = vpow.pop %v1735
          %v1737 = vmul.f32 %v1695, 1.442695
          %v1738 = vpow.pop %v1737
          %v1739 = vmul.f32 %v1696, 1.442695
          %v1740 = vpow.pop %v1739
          %v1741 = vmul.f32 %v1697, 1.442695
          %v1742 = vpow.pop %v1741
          %v1743 = vmul.f32 %v1698, 1.442695
          %v1744 = vpow.pop %v1743
          %v1745 = vmul.f32 %v1699, 1.442695
          %v1746 = vpow.pop %v1745
          %v1747 = vmul.f32 %v1700, 1.442695
          %v1748 = vpow.pop %v1747
          %v1749 = vmul.f32 %v1701, 1.442695
          %v1750 = vpow.pop %v1749
          %v1751 = vmul.f32 %v1702, 1.442695
          %v1752 = vpow.pop %v1751
          %v1753 = vmul.f32 %v1703, 1.442695
          %v1754 = vpow.pop %v1753
          %v1755 = vmul.f32 %v1704, 1.442695
          %v1756 = vpow.pop %v1755
          %v1757 = vmul.f32 %v1705, 1.442695
          %v1758 = vpow.pop %v1757
          %v1759 = vmul.f32 %v1706, 1.442695
          %v1760 = vpow.pop %v1759
          %v1761 = vmul.f32 %v1707, 1.442695
          %v1762 = vpow.pop %v1761
          %v1763 = vmul.f32 %v1708, 1.442695
          %v1764 = vpow.pop %v1763
          %v1765 = vmul.f32 %v1709, 1.442695
          %v1766 = vpow.pop %v1765
          %v1767 = vmul.f32 %v1710, 1.442695
          %v1768 = vpow.pop %v1767
          %v1769 = vmul.f32 %v1711, 1.442695
          %v1770 = vpow.pop %v1769
          %v1771 = vmul.f32 %v1712, 1.442695
          %v1772 = vpow.pop %v1771
          %v1773 = vmul.f32 %v1713, 1.442695
          %v1774 = vpow.pop %v1773
          %v1775 = vmul.f32 %v1714, 1.442695
          %v1776 = vpow.pop %v1775
          %v1777 = vmul.f32 %v1715, 1.442695
          %v1778 = vpow.pop %v1777
          %v1779 = vmul.f32 %v1716, 1.442695
          %v1780 = vpow.pop %v1779
          %v1781 = vadd.f32 %v1718, 1.0
          %v1782 = vadd.f32 %v1720, 1.0
          %v1783 = vadd.f32 %v1722, 1.0
          %v1784 = vadd.f32 %v1724, 1.0
          %v1785 = vadd.f32 %v1726, 1.0
          %v1786 = vadd.f32 %v1728, 1.0
          %v1787 = vadd.f32 %v1730, 1.0
          %v1788 = vadd.f32 %v1732, 1.0
          %v1789 = vadd.f32 %v1734, 1.0
          %v1790 = vadd.f32 %v1736, 1.0
          %v1791 = vadd.f32 %v1738, 1.0
          %v1792 = vadd.f32 %v1740, 1.0
          %v1793 = vadd.f32 %v1742, 1.0
          %v1794 = vadd.f32 %v1744, 1.0
          %v1795 = vadd.f32 %v1746, 1.0
          %v1796 = vadd.f32 %v1748, 1.0
          %v1797 = vadd.f32 %v1750, 1.0
          %v1798 = vadd.f32 %v1752, 1.0
          %v1799 = vadd.f32 %v1754, 1.0
          %v1800 = vadd.f32 %v1756, 1.0
          %v1801 = vadd.f32 %v1758, 1.0
          %v1802 = vadd.f32 %v1760, 1.0
          %v1803 = vadd.f32 %v1762, 1.0
          %v1804 = vadd.f32 %v1764, 1.0
          %v1805 = vadd.f32 %v1766, 1.0
          %v1806 = vadd.f32 %v1768, 1.0
          %v1807 = vadd.f32 %v1770, 1.0
          %v1808 = vadd.f32 %v1772, 1.0
          %v1809 = vadd.f32 %v1774, 1.0
          %v1810 = vadd.f32 %v1776, 1.0
          %v1811 = vadd.f32 %v1778, 1.0
          %v1812 = vadd.f32 %v1780, 1.0
          %v1813 = vrcp.pop %v1781
          %v1814 = vmul.f32 1.0, %v1813
          %v1815 = vrcp.pop %v1782
          %v1816 = vmul.f32 1.0, %v1815
          %v1817 = vrcp.pop %v1783
          %v1818 = vmul.f32 1.0, %v1817
          %v1819 = vrcp.pop %v1784
          %v1820 = vmul.f32 1.0, %v1819
          %v1821 = vrcp.pop %v1785
          %v1822 = vmul.f32 1.0, %v1821
          %v1823 = vrcp.pop %v1786
          %v1824 = vmul.f32 1.0, %v1823
          %v1825 = vrcp.pop %v1787
          %v1826 = vmul.f32 1.0, %v1825
          %v1827 = vrcp.pop %v1788
          %v1828 = vmul.f32 1.0, %v1827
          %v1829 = vrcp.pop %v1789
          %v1830 = vmul.f32 1.0, %v1829
          %v1831 = vrcp.pop %v1790
          %v1832 = vmul.f32 1.0, %v1831
          %v1833 = vrcp.pop %v1791
          %v1834 = vmul.f32 1.0, %v1833
          %v1835 = vrcp.pop %v1792
          %v1836 = vmul.f32 1.0, %v1835
          %v1837 = vrcp.pop %v1793
          %v1838 = vmul.f32 1.0, %v1837
          %v1839 = vrcp.pop %v1794
          %v1840 = vmul.f32 1.0, %v1839
          %v1841 = vrcp.pop %v1795
          %v1842 = vmul.f32 1.0, %v1841
          %v1843 = vrcp.pop %v1796
          %v1844 = vmul.f32 1.0, %v1843
          %v1845 = vrcp.pop %v1797
          %v1846 = vmul.f32 1.0, %v1845
          %v1847 = vrcp.pop %v1798
          %v1848 = vmul.f32 1.0, %v1847
          %v1849 = vrcp.pop %v1799
          %v1850 = vmul.f32 1.0, %v1849
          %v1851 = vrcp.pop %v1800
          %v1852 = vmul.f32 1.0, %v1851
          %v1853 = vrcp.pop %v1801
          %v1854 = vmul.f32 1.0, %v1853
          %v1855 = vrcp.pop %v1802
          %v1856 = vmul.f32 1.0, %v1855
          %v1857 = vrcp.pop %v1803
          %v1858 = vmul.f32 1.0, %v1857
          %v1859 = vrcp.pop %v1804
          %v1860 = vmul.f32 1.0, %v1859
          %v1861 = vrcp.pop %v1805
          %v1862 = vmul.f32 1.0, %v1861
          %v1863 = vrcp.pop %v1806
          %v1864 = vmul.f32 1.0, %v1863
          %v1865 = vrcp.pop %v1807
          %v1866 = vmul.f32 1.0, %v1865
          %v1867 = vrcp.pop %v1808
          %v1868 = vmul.f32 1.0, %v1867
          %v1869 = vrcp.pop %v1809
          %v1870 = vmul.f32 1.0, %v1869
          %v1871 = vrcp.pop %v1810
          %v1872 = vmul.f32 1.0, %v1871
          %v1873 = vrcp.pop %v1811
          %v1874 = vmul.f32 1.0, %v1873
          %v1875 = vrcp.pop %v1812
          %v1876 = vmul.f32 1.0, %v1875
          %v1877 = vmul.f32 %v1653, %v1814
          %v1878 = vmul.f32 %v1654, %v1816
          %v1879 = vmul.f32 %v1655, %v1818
          %v1880 = vmul.f32 %v1656, %v1820
          %v1881 = vmul.f32 %v1657, %v1822
          %v1882 = vmul.f32 %v1658, %v1824
          %v1883 = vmul.f32 %v1659, %v1826
          %v1884 = vmul.f32 %v1660, %v1828
          %v1885 = vmul.f32 %v1661, %v1830
          %v1886 = vmul.f32 %v1662, %v1832
          %v1887 = vmul.f32 %v1663, %v1834
          %v1888 = vmul.f32 %v1664, %v1836
          %v1889 = vmul.f32 %v1665, %v1838
          %v1890 = vmul.f32 %v1666, %v1840
          %v1891 = vmul.f32 %v1667, %v1842
          %v1892 = vmul.f32 %v1668, %v1844
          %v1893 = vmul.f32 %v1669, %v1846
          %v1894 = vmul.f32 %v1670, %v1848
          %v1895 = vmul.f32 %v1671, %v1850
          %v1896 = vmul.f32 %v1672, %v1852
          %v1897 = vmul.f32 %v1673, %v1854
          %v1898 = vmul.f32 %v1674, %v1856
          %v1899 = vmul.f32 %v1675, %v1858
          %v1900 = vmul.f32 %v1676, %v1860
          %v1901 = vmul.f32 %v1677, %v1862
          %v1902 = vmul.f32 %v1678, %v1864
          %v1903 = vmul.f32 %v1679, %v1866
          %v1904 = vmul.f32 %v1680, %v1868
          %v1905 = vmul.f32 %v1681, %v1870
          %v1906 = vmul.f32 %v1682, %v1872
          %v1907 = vmul.f32 %v1683, %v1874
          %v1908 = vmul.f32 %v1684, %v1876
          %v1909 = vld [vmem:[#allocation3] sm:$0xff]
          %v1910 = vld [vmem:[#allocation3 + $0x8] sm:$0xff]
          %v1911 = vld [vmem:[#allocation3 + $0x10] sm:$0xff]
          %v1912 = vld [vmem:[#allocation3 + $0x18] sm:$0xff]
          %v1913 = vld [vmem:[#allocation3 + $0x20] sm:$0xff]
          %v1914 = vld [vmem:[#allocation3 + $0x28] sm:$0xff]
          %v1915 = vld [vmem:[#allocation3 + $0x30] sm:$0xff]
          %v1916 = vld [vmem:[#allocation3 + $0x38] sm:$0xff]
          %v1917 = vld [vmem:[#allocation3 + $0x40] sm:$0xff]
          %v1918 = vld [vmem:[#allocation3 + $0x48] sm:$0xff]
          %v1919 = vld [vmem:[#allocation3 + $0x50] sm:$0xff]
          %v1920 = vld [vmem:[#allocation3 + $0x58] sm:$0xff]
          %v1921 = vld [vmem:[#allocation3 + $0x60] sm:$0xff]
          %v1922 = vld [vmem:[#allocation3 + $0x68] sm:$0xff]
          %v1923 = vld [vmem:[#allocation3 + $0x70] sm:$0xff]
          %v1924 = vld [vmem:[#allocation3 + $0x78] sm:$0xff]
          %v1925 = vld [vmem:[#allocation3 + $0x80] sm:$0xff]
          %v1926 = vld [vmem:[#allocation3 + $0x88] sm:$0xff]
          %v1927 = vld [vmem:[#allocation3 + $0x90] sm:$0xff]
          %v1928 = vld [vmem:[#allocation3 + $0x98] sm:$0xff]
          %v1929 = vld [vmem:[#allocation3 + $0xa0] sm:$0xff]
          %v1930 = vld [vmem:[#allocation3 + $0xa8] sm:$0xff]
          %v1931 = vld [vmem:[#allocation3 + $0xb0] sm:$0xff]
          %v1932 = vld [vmem:[#allocation3 + $0xb8] sm:$0xff]
          %v1933 = vld [vmem:[#allocation3 + $0xc0] sm:$0xff]
          %v1934 = vld [vmem:[#allocation3 + $0xc8] sm:$0xff]
          %v1935 = vld [vmem:[#allocation3 + $0xd0] sm:$0xff]
          %v1936 = vld [vmem:[#allocation3 + $0xd8] sm:$0xff]
          %v1937 = vld [vmem:[#allocation3 + $0xe0] sm:$0xff]
          %v1938 = vld [vmem:[#allocation3 + $0xe8] sm:$0xff]
          %v1939 = vld [vmem:[#allocation3 + $0xf0] sm:$0xff]
          %v1940 = vld [vmem:[#allocation3 + $0xf8] sm:$0xff]
          %v1941 = vmul.f32 %v1877, %v1909
          %v1942 = vmul.f32 %v1878, %v1910
          %v1943 = vmul.f32 %v1879, %v1911
          %v1944 = vmul.f32 %v1880, %v1912
          %v1945 = vmul.f32 %v1881, %v1913
          %v1946 = vmul.f32 %v1882, %v1914
          %v1947 = vmul.f32 %v1883, %v1915
          %v1948 = vmul.f32 %v1884, %v1916
          %v1949 = vmul.f32 %v1885, %v1917
          %v1950 = vmul.f32 %v1886, %v1918
          %v1951 = vmul.f32 %v1887, %v1919
          %v1952 = vmul.f32 %v1888, %v1920
          %v1953 = vmul.f32 %v1889, %v1921
          %v1954 = vmul.f32 %v1890, %v1922
          %v1955 = vmul.f32 %v1891, %v1923
          %v1956 = vmul.f32 %v1892, %v1924
          %v1957 = vmul.f32 %v1893, %v1925
          %v1958 = vmul.f32 %v1894, %v1926
          %v1959 = vmul.f32 %v1895, %v1927
          %v1960 = vmul.f32 %v1896, %v1928
          %v1961 = vmul.f32 %v1897, %v1929
          %v1962 = vmul.f32 %v1898, %v1930
          %v1963 = vmul.f32 %v1899, %v1931
          %v1964 = vmul.f32 %v1900, %v1932
          %v1965 = vmul.f32 %v1901, %v1933
          %v1966 = vmul.f32 %v1902, %v1934
          %v1967 = vmul.f32 %v1903, %v1935
          %v1968 = vmul.f32 %v1904, %v1936
          %v1969 = vmul.f32 %v1905, %v1937
          %v1970 = vmul.f32 %v1906, %v1938
          %v1971 = vmul.f32 %v1907, %v1939
          %v1972 = vmul.f32 %v1908, %v1940
          %v1973 = vpack.c.bf16 %v1943, %v1941
          %v1974 = vpack.c.bf16 %v1944, %v1942
          %v1975 = vpack.c.bf16 %v1947, %v1945
          %v1976 = vpack.c.bf16 %v1948, %v1946
          %v1977 = vpack.c.bf16 %v1951, %v1949
          %v1978 = vpack.c.bf16 %v1952, %v1950
          %v1979 = vpack.c.bf16 %v1955, %v1953
          %v1980 = vpack.c.bf16 %v1956, %v1954
          %v1981 = vpack.c.bf16 %v1959, %v1957
          %v1982 = vpack.c.bf16 %v1960, %v1958
          %v1983 = vpack.c.bf16 %v1963, %v1961
          %v1984 = vpack.c.bf16 %v1964, %v1962
          %v1985 = vpack.c.bf16 %v1967, %v1965
          %v1986 = vpack.c.bf16 %v1968, %v1966
          %v1987 = vpack.c.bf16 %v1971, %v1969
          %v1988 = vpack.c.bf16 %v1972, %v1970
          %v2005 = vunpack.c.l.b16 %v1973
          %v2006 = vunpack.c.l.b16 %v1974
          %v2007 = vunpack.c.h.b16 %v1973
          %v2008 = vunpack.c.h.b16 %v1974
          %v2009 = vunpack.c.l.b16 %v1975
          %v2010 = vunpack.c.l.b16 %v1976
          %v2011 = vunpack.c.h.b16 %v1975
          %v2012 = vunpack.c.h.b16 %v1976
          %v2013 = vunpack.c.l.b16 %v1977
          %v2014 = vunpack.c.l.b16 %v1978
          %v2015 = vunpack.c.h.b16 %v1977
          %v2016 = vunpack.c.h.b16 %v1978
          %v2017 = vunpack.c.l.b16 %v1979
          %v2018 = vunpack.c.l.b16 %v1980
          %v2019 = vunpack.c.h.b16 %v1979
          %v2020 = vunpack.c.h.b16 %v1980
          %v2021 = vunpack.c.l.b16 %v1981
          %v2022 = vunpack.c.l.b16 %v1982
          %v2023 = vunpack.c.h.b16 %v1981
          %v2024 = vunpack.c.h.b16 %v1982
          %v2025 = vunpack.c.l.b16 %v1983
          %v2026 = vunpack.c.l.b16 %v1984
          %v2027 = vunpack.c.h.b16 %v1983
          %v2028 = vunpack.c.h.b16 %v1984
          %v2029 = vunpack.c.l.b16 %v1985
          %v2030 = vunpack.c.l.b16 %v1986
          %v2031 = vunpack.c.h.b16 %v1985
          %v2032 = vunpack.c.h.b16 %v1986
          %v2033 = vunpack.c.l.b16 %v1987
          %v2034 = vunpack.c.l.b16 %v1988
          %v2035 = vunpack.c.h.b16 %v1987
          %v2036 = vunpack.c.h.b16 %v1988
          %v2037 = vpack.c.b16 %v2006, %v2005
          %v2038 = vpack.c.b16 %v2008, %v2007
          %v2039 = vpack.c.b16 %v2010, %v2009
          %v2040 = vpack.c.b16 %v2012, %v2011
          %v2041 = vpack.c.b16 %v2014, %v2013
          %v2042 = vpack.c.b16 %v2016, %v2015
          %v2043 = vpack.c.b16 %v2018, %v2017
          %v2044 = vpack.c.b16 %v2020, %v2019
          %v2045 = vpack.c.b16 %v2022, %v2021
          %v2046 = vpack.c.b16 %v2024, %v2023
          %v2047 = vpack.c.b16 %v2026, %v2025
          %v2048 = vpack.c.b16 %v2028, %v2027
          %v2049 = vpack.c.b16 %v2030, %v2029
          %v2050 = vpack.c.b16 %v2032, %v2031
          %v2051 = vpack.c.b16 %v2034, %v2033
          %v2052 = vpack.c.b16 %v2036, %v2035
          %2069 = vst [vmem:[%s623] sm:$0xff] %v2037
          %2070 = vst [vmem:[%s623 + $0x8] sm:$0xff] %v2038
          %2071 = vst [vmem:[%s623 + $0x10] sm:$0xff] %v2039
          %2072 = vst [vmem:[%s623 + $0x18] sm:$0xff] %v2040
          %2073 = vst [vmem:[%s623 + $0x20] sm:$0xff] %v2041
          %2074 = vst [vmem:[%s623 + $0x28] sm:$0xff] %v2042
          %2075 = vst [vmem:[%s623 + $0x30] sm:$0xff] %v2043
          %2076 = vst [vmem:[%s623 + $0x38] sm:$0xff] %v2044
          %2077 = vst [vmem:[%s623 + $0x40] sm:$0xff] %v2045
          %2078 = vst [vmem:[%s623 + $0x48] sm:$0xff] %v2046
          %2079 = vst [vmem:[%s623 + $0x50] sm:$0xff] %v2047
          %2080 = vst [vmem:[%s623 + $0x58] sm:$0xff] %v2048
          %2081 = vst [vmem:[%s623 + $0x60] sm:$0xff] %v2049
          %2082 = vst [vmem:[%s623 + $0x68] sm:$0xff] %v2050
          %2083 = vst [vmem:[%s623 + $0x70] sm:$0xff] %v2051
          %2084 = vst [vmem:[%s623 + $0x78] sm:$0xff] %v2052
          %v2085 = vmin.f32 %v1941, %v1945
          %v2086 = vmin.f32 %v1943, %v1947
          %v2087 = vmin.f32 %v2085, %v1949
          %v2088 = vmin.f32 %v2086, %v1951
          %v2089 = vmin.f32 %v2087, %v1953
          %v2090 = vmin.f32 %v2088, %v1955
          %v2091 = vmin.f32 %v2089, %v1957
          %v2092 = vmin.f32 %v2090, %v1959
          %v2093 = vmin.f32 %v2091, %v1961
          %v2094 = vmin.f32 %v2092, %v1963
          %v2095 = vmin.f32 %v2093, %v1965
          %v2096 = vmin.f32 %v2094, %v1967
          %v2097 = vmin.f32 %v2095, %v1969
          %v2098 = vmin.f32 %v2096, %v1971
          %v2099 = vmin.f32 %v2097, %v2098
          %v2100 = vmin.f32 %v1942, %v1946
          %v2101 = vmin.f32 %v1944, %v1948
          %v2102 = vmin.f32 %v2100, %v1950
          %v2103 = vmin.f32 %v2101, %v1952
          %v2104 = vmin.f32 %v2102, %v1954
          %v2105 = vmin.f32 %v2103, %v1956
          %v2106 = vmin.f32 %v2104, %v1958
          %v2107 = vmin.f32 %v2105, %v1960
          %v2108 = vmin.f32 %v2106, %v1962
          %v2109 = vmin.f32 %v2107, %v1964
          %v2110 = vmin.f32 %v2108, %v1966
          %v2111 = vmin.f32 %v2109, %v1968
          %v2112 = vmin.f32 %v2110, %v1970
          %v2113 = vmin.f32 %v2111, %v1972
          %v2114 = vmin.f32 %v2112, %v2113
          %2115 = vst [vmem:[%s672] sm:$0xff] %v2099
          %2116 = vst [vmem:[%s672 + $0x8] sm:$0xff] %v2114
          %v2117 = vmax.f32 %v1941, %v1945
          %v2118 = vmax.f32 %v1943, %v1947
          %v2119 = vmax.f32 %v2117, %v1949
          %v2120 = vmax.f32 %v2118, %v1951
          %v2121 = vmax.f32 %v2119, %v1953
          %v2122 = vmax.f32 %v2120, %v1955
          %v2123 = vmax.f32 %v2121, %v1957
          %v2124 = vmax.f32 %v2122, %v1959
          %v2125 = vmax.f32 %v2123, %v1961
          %v2126 = vmax.f32 %v2124, %v1963
          %v2127 = vmax.f32 %v2125, %v1965
          %v2128 = vmax.f32 %v2126, %v1967
          %v2129 = vmax.f32 %v2127, %v1969
          %v2130 = vmax.f32 %v2128, %v1971
          %v2131 = vmax.f32 %v2129, %v2130
          %v2132 = vmax.f32 %v1942, %v1946
          %v2133 = vmax.f32 %v1944, %v1948
          %v2134 = vmax.f32 %v2132, %v1950
          %v2135 = vmax.f32 %v2133, %v1952
          %v2136 = vmax.f32 %v2134, %v1954
          %v2137 = vmax.f32 %v2135, %v1956
          %v2138 = vmax.f32 %v2136, %v1958
          %v2139 = vmax.f32 %v2137, %v1960
          %v2140 = vmax.f32 %v2138, %v1962
          %v2141 = vmax.f32 %v2139, %v1964
          %v2142 = vmax.f32 %v2140, %v1966
          %v2143 = vmax.f32 %v2141, %v1968
          %v2144 = vmax.f32 %v2142, %v1970
          %v2145 = vmax.f32 %v2143, %v1972
          %v2146 = vmax.f32 %v2144, %v2145
          %2147 = vst [vmem:[%s682] sm:$0xff] %v2131
          %2148 = vst [vmem:[%s682 + $0x8] sm:$0xff] %v2146
        $region116: #{llama_mlp_forward.2} parent=99 // pred_fallthru
          _
        %s2149 = sand.u32 %s130, 1
        %s2150 = sand.u32 %s130, 1
        %s2151 = smul.addr %s2150, 128
        %s2152 = scalar_lea.vmem [#allocation6], %s2151
        %s2153 = smul.u32 2, %s23
        %p2154 = scmp.lt.s32.totalorder %s22, 0
        %s2155 = scalar_select %p2154, %s22, 0
        %p2156 = scmp.lt.s32.totalorder %s2153, 3
        %s2157 = scalar_select %p2156, %s2153, 3
        %s2158 = smul.addr %s2155, 4
        %s2159 = sadd.s32 %s2157, %s2158
        %s2160 = smul.addr %s2159, 8
        %s2161 = scalar_lea.vmem %s4, %s2160
        %s2162 = smul.u32 2, %s23
        %p2163 = scmp.lt.s32.totalorder %s22, 0
        %s2164 = scalar_select %p2163, %s22, 0
        %p2165 = scmp.lt.s32.totalorder %s2162, 3
        %s2166 = scalar_select %p2165, %s2162, 3
        %s2167 = smul.addr %s2164, 4
        %s2168 = sadd.s32 %s2166, %s2167
        %s2169 = smul.addr %s2168, 8
        %s2170 = scalar_lea.vmem %s5, %s2169
        // Predicated region
        $region117: #{llama_mlp_forward.2} parent=99 // pred_check
          %p2171 = pneg %p140
        $region118: #{llama_mlp_forward.2} parent=99 // pred_check_branch
          %2173 = sbr.rel (%p2171) target = $region120
        $region119: #{llama_mlp_forward.2} parent=99 // pred_region
          %s2174 = smul.u32 16, %s22
          %s2175 = smul.u32 2, %s23
          %s2176 = smul.addr %s2174, 4
          %s2177 = sadd.s32 %s2175, %s2176
          %s2178 = smul.addr %s2177, 4
          %s2179 = scalar_lea.vmem %s3, %s2178
          // Predicated region
          $region121: #{llama_mlp_forward.2} parent=119 // pred_check
            _
          $region122: #{llama_mlp_forward.2} parent=119 // pred_check_branch
            %2181 = sbr.rel (0) target = $region124
          $region123: #{llama_mlp_forward.2} parent=119 // pred_region
            // Predicated region
            $region125: #{llama_mlp_forward.2} parent=123 // pred_check
              _
            $region126: #{llama_mlp_forward.2} parent=123 // pred_check_branch
              %2183 = sbr.rel (0) target = $region128
            $region127: #{llama_mlp_forward.2} parent=123 // pred_region
              // Predicated region
              $region140: #{llama_mlp_forward.2} parent=127 // pred_check
                _
              $region141: #{llama_mlp_forward.2} parent=127 // pred_check_branch
                %2229 = sbr.rel (0) target = $region143
              $region142: #{llama_mlp_forward.2} parent=127 // pred_region
                loop: start=0, step=1, limit=1
                $region144: #{llama_mlp_forward.2} parent=142 // loop_pre_header
                  _
                $region145: #{llama_mlp_forward.2} parent=142 // loop_header
                  %s2231 = sphi 0, %s2235
                  %p2232 = scmp.ge.s32.totalorder %s2231, 1
                  %s2236 = sphi %s2152, %s2152
                  %s2237 = sphi %s2179, %s2179
                $region146: #{llama_mlp_forward.2} parent=142 // loop_header_branch
                  %2234 = sbr.rel (%p2232) target = $region150
                $region147: #{llama_mlp_forward.2} parent=142 // loop_body
                  %v2238 = vld [vmem:[%s2236] sm:$0xff]
                  %2239 = vst [vmem:[%s2237] sm:$0xff] %v2238
                  %v2240 = vld [vmem:[%s2236 + $0x8] sm:$0xff]
                  %2241 = vst [vmem:[%s2237 + $0x10] sm:$0xff] %v2240
                  %v2242 = vld [vmem:[%s2236 + $0x10] sm:$0xff]
                  %2243 = vst [vmem:[%s2237 + $0x20] sm:$0xff] %v2242
                  %v2244 = vld [vmem:[%s2236 + $0x18] sm:$0xff]
                  %2245 = vst [vmem:[%s2237 + $0x30] sm:$0xff] %v2244
                  %v2246 = vld [vmem:[%s2236 + $0x20] sm:$0xff]
                  %2247 = vst [vmem:[%s2237 + $0x40] sm:$0xff] %v2246
                  %v2248 = vld [vmem:[%s2236 + $0x28] sm:$0xff]
                  %2249 = vst [vmem:[%s2237 + $0x50] sm:$0xff] %v2248
                  %v2250 = vld [vmem:[%s2236 + $0x30] sm:$0xff]
                  %2251 = vst [vmem:[%s2237 + $0x60] sm:$0xff] %v2250
                  %v2252 = vld [vmem:[%s2236 + $0x38] sm:$0xff]
                  %2253 = vst [vmem:[%s2237 + $0x70] sm:$0xff] %v2252
                  %v2254 = vld [vmem:[%s2236 + $0x40] sm:$0xff]
                  %2255 = vst [vmem:[%s2237 + $0x80] sm:$0xff] %v2254
                  %v2256 = vld [vmem:[%s2236 + $0x48] sm:$0xff]
                  %2257 = vst [vmem:[%s2237 + $0x90] sm:$0xff] %v2256
                  %v2258 = vld [vmem:[%s2236 + $0x50] sm:$0xff]
                  %2259 = vst [vmem:[%s2237 + $0xa0] sm:$0xff] %v2258
                  %v2260 = vld [vmem:[%s2236 + $0x58] sm:$0xff]
                  %2261 = vst [vmem:[%s2237 + $0xb0] sm:$0xff] %v2260
                  %v2262 = vld [vmem:[%s2236 + $0x60] sm:$0xff]
                  %2263 = vst [vmem:[%s2237 + $0xc0] sm:$0xff] %v2262
                  %v2264 = vld [vmem:[%s2236 + $0x68] sm:$0xff]
                  %2265 = vst [vmem:[%s2237 + $0xd0] sm:$0xff] %v2264
                  %v2266 = vld [vmem:[%s2236 + $0x70] sm:$0xff]
                  %2267 = vst [vmem:[%s2237 + $0xe0] sm:$0xff] %v2266
                  %v2268 = vld [vmem:[%s2236 + $0x78] sm:$0xff]
                  %2269 = vst [vmem:[%s2237 + $0xf0] sm:$0xff] %v2268
                $region148: #{llama_mlp_forward.2} parent=142 // loop_footer
                  %s2235 = sadd.s32 1, %s2231
                $region149: #{llama_mlp_forward.2} parent=142 // loop_footer_branch
                  %2230 = sbr.rel target = $region145
                $region150: #{llama_mlp_forward.2} parent=142 // loop_exit
                  _
              $region143: #{llama_mlp_forward.2} parent=127 // pred_fallthru
                _
              // Predicated region
              $region151: #{llama_mlp_forward.2} parent=127 // pred_check
                _
              $region152: #{llama_mlp_forward.2} parent=127 // pred_check_branch
                %2271 = sbr.rel target = $region154
              $region153: #{llama_mlp_forward.2} parent=127 // pred_region
                _
              $region154: #{llama_mlp_forward.2} parent=127 // pred_fallthru
                _
            $region128: #{llama_mlp_forward.2} parent=123 // pred_fallthru
              _
            // Predicated region
            $region129: #{llama_mlp_forward.2} parent=123 // pred_check
              _
            $region130: #{llama_mlp_forward.2} parent=123 // pred_check_branch
              %2185 = sbr.rel target = $region132
            $region131: #{llama_mlp_forward.2} parent=123 // pred_region
              %s2187 = ssub.s32 256, 1
              loop: start=0, step=1, limit=1
              $region133: #{llama_mlp_forward.2} parent=131 // loop_pre_header
                _
              $region134: #{llama_mlp_forward.2} parent=131 // loop_header
                %s2189 = sphi 0, %s2193
                %p2190 = scmp.ge.s32.totalorder %s2189, 1
                %s2194 = sphi %s2152, %s2152
                %s2195 = sphi %s2179, %s2179
              $region135: #{llama_mlp_forward.2} parent=131 // loop_header_branch
                %2192 = sbr.rel (%p2190) target = $region139
              $region136: #{llama_mlp_forward.2} parent=131 // loop_body
                %v2196 = vld [vmem:[%s2194] sm:%s2187]
                %2197 = vst [vmem:[%s2195] sm:%s2187] %v2196
                %v2198 = vld [vmem:[%s2194 + $0x8] sm:%s2187]
                %2199 = vst [vmem:[%s2195 + $0x10] sm:%s2187] %v2198
                %v2200 = vld [vmem:[%s2194 + $0x10] sm:%s2187]
                %2201 = vst [vmem:[%s2195 + $0x20] sm:%s2187] %v2200
                %v2202 = vld [vmem:[%s2194 + $0x18] sm:%s2187]
                %2203 = vst [vmem:[%s2195 + $0x30] sm:%s2187] %v2202
                %v2204 = vld [vmem:[%s2194 + $0x20] sm:%s2187]
                %2205 = vst [vmem:[%s2195 + $0x40] sm:%s2187] %v2204
                %v2206 = vld [vmem:[%s2194 + $0x28] sm:%s2187]
                %2207 = vst [vmem:[%s2195 + $0x50] sm:%s2187] %v2206
                %v2208 = vld [vmem:[%s2194 + $0x30] sm:%s2187]
                %2209 = vst [vmem:[%s2195 + $0x60] sm:%s2187] %v2208
                %v2210 = vld [vmem:[%s2194 + $0x38] sm:%s2187]
                %2211 = vst [vmem:[%s2195 + $0x70] sm:%s2187] %v2210
                %v2212 = vld [vmem:[%s2194 + $0x40] sm:%s2187]
                %2213 = vst [vmem:[%s2195 + $0x80] sm:%s2187] %v2212
                %v2214 = vld [vmem:[%s2194 + $0x48] sm:%s2187]
                %2215 = vst [vmem:[%s2195 + $0x90] sm:%s2187] %v2214
                %v2216 = vld [vmem:[%s2194 + $0x50] sm:%s2187]
                %2217 = vst [vmem:[%s2195 + $0xa0] sm:%s2187] %v2216
                %v2218 = vld [vmem:[%s2194 + $0x58] sm:%s2187]
                %2219 = vst [vmem:[%s2195 + $0xb0] sm:%s2187] %v2218
                %v2220 = vld [vmem:[%s2194 + $0x60] sm:%s2187]
                %2221 = vst [vmem:[%s2195 + $0xc0] sm:%s2187] %v2220
                %v2222 = vld [vmem:[%s2194 + $0x68] sm:%s2187]
                %2223 = vst [vmem:[%s2195 + $0xd0] sm:%s2187] %v2222
                %v2224 = vld [vmem:[%s2194 + $0x70] sm:%s2187]
                %2225 = vst [vmem:[%s2195 + $0xe0] sm:%s2187] %v2224
                %v2226 = vld [vmem:[%s2194 + $0x78] sm:%s2187]
                %2227 = vst [vmem:[%s2195 + $0xf0] sm:%s2187] %v2226
              $region137: #{llama_mlp_forward.2} parent=131 // loop_footer
                %s2193 = sadd.s32 1, %s2189
              $region138: #{llama_mlp_forward.2} parent=131 // loop_footer_branch
                %2188 = sbr.rel target = $region134
              $region139: #{llama_mlp_forward.2} parent=131 // loop_exit
                _
            $region132: #{llama_mlp_forward.2} parent=123 // pred_fallthru
              _
          $region124: #{llama_mlp_forward.2} parent=119 // pred_fallthru
            _
          %2272 = vnop
        $region120: #{llama_mlp_forward.2} parent=99 // pred_fallthru
          _
        // Predicated region
        $region155: #{llama_mlp_forward.2} parent=99 // pred_check
          %p2273 = pneg %p168
        $region156: #{llama_mlp_forward.2} parent=99 // pred_check_branch
          %2275 = sbr.rel (%p2273) target = $region158
        $region157: #{llama_mlp_forward.2} parent=99 // pred_region
          %s2276 = smul.u32 2, %s23
        $region158: #{llama_mlp_forward.2} parent=99 // pred_fallthru
          _
        // Predicated region
        $region159: #{llama_mlp_forward.2} parent=99 // pred_check
          %p2277 = pneg %p196
        $region160: #{llama_mlp_forward.2} parent=99 // pred_check_branch
          %2279 = sbr.rel (%p2277) target = $region162
        $region161: #{llama_mlp_forward.2} parent=99 // pred_region
          %s2280 = smul.u32 2, %s23
        $region162: #{llama_mlp_forward.2} parent=99 // pred_fallthru
          _
      $region100: #{llama_mlp_forward.2} parent=5 // pred_fallthru
        _
      %p2281 = scmp.le.s32.totalorder 2, %s12
      // Predicated region
      $region163: #{llama_mlp_forward.2} parent=5 // pred_check
        %p2282 = pneg %p2281
      $region164: #{llama_mlp_forward.2} parent=5 // pred_check_branch
        %2284 = sbr.rel (%p2282) target = $region166
      $region165: #{llama_mlp_forward.2} parent=5 // pred_region
        %s2285 = ssub.s32 %s12, 2
        // Predicated region
        $region167: #{llama_mlp_forward.2} parent=165 // pred_check
          %p2286 = pneg %p146
        $region168: #{llama_mlp_forward.2} parent=165 // pred_check_branch
          %2288 = sbr.rel (%p2286) target = $region170
        $region169: #{llama_mlp_forward.2} parent=165 // pred_region
          %s2289 = sand.u32 %s131, 1
          %s2290 = sand.u32 %s131, 1
          %s2291 = smul.addr %s2290, 128
          %s2292 = scalar_lea.vmem [#allocation6], %s2291
        $region170: #{llama_mlp_forward.2} parent=165 // pred_fallthru
          _
        // Predicated region
        $region171: #{llama_mlp_forward.2} parent=165 // pred_check
          %p2293 = pneg %p174
        $region172: #{llama_mlp_forward.2} parent=165 // pred_check_branch
          %2295 = sbr.rel (%p2293) target = $region174
        $region173: #{llama_mlp_forward.2} parent=165 // pred_region
          %s2296 = smul.u32 2, %s26
          %p2297 = scmp.lt.s32.totalorder %s25, 0
          %s2298 = scalar_select %p2297, %s25, 0
          %p2299 = scmp.lt.s32.totalorder %s2296, 3
          %s2300 = scalar_select %p2299, %s2296, 3
          %s2301 = smul.addr %s2298, 4
          %s2302 = sadd.s32 %s2300, %s2301
          %s2303 = smul.addr %s2302, 8
          %s2304 = scalar_lea.vmem %s4, %s2303
        $region174: #{llama_mlp_forward.2} parent=165 // pred_fallthru
          _
        // Predicated region
        $region175: #{llama_mlp_forward.2} parent=165 // pred_check
          %p2305 = pneg %p202
        $region176: #{llama_mlp_forward.2} parent=165 // pred_check_branch
          %2307 = sbr.rel (%p2305) target = $region178
        $region177: #{llama_mlp_forward.2} parent=165 // pred_region
          %s2308 = smul.u32 2, %s26
          %p2309 = scmp.lt.s32.totalorder %s25, 0
          %s2310 = scalar_select %p2309, %s25, 0
          %p2311 = scmp.lt.s32.totalorder %s2308, 3
          %s2312 = scalar_select %p2311, %s2308, 3
          %s2313 = smul.addr %s2310, 4
          %s2314 = sadd.s32 %s2312, %s2313
          %s2315 = smul.addr %s2314, 8
          %s2316 = scalar_lea.vmem %s5, %s2315
        $region178: #{llama_mlp_forward.2} parent=165 // pred_fallthru
          _
      $region166: #{llama_mlp_forward.2} parent=5 // pred_fallthru
        _
    $region6: #{llama_mlp_forward.2} parent=1 // loop_footer
      %s16 = sadd.s32 1, %s12
    $region7: #{llama_mlp_forward.2} parent=1 // loop_footer_branch
      %11 = sbr.rel target = $region3
    $region8: #{llama_mlp_forward.2} parent=1 // loop_exit
      _

// kernel: llama_mlp_forward.3
$region0: #{llama_mlp_forward.3}
  #allocation0 [shape = 'u32[]', space=smem, size = 0x4, offset = 0x4, fixed_abs, tag = 'smem constant byte address 0x4 - core index']
  #allocation1 [shape = 'u32[144,128]{1,0:T(1,128)}', space=vmem, size = 0x12000, scoped, tag = 'internal scratch']
  #allocation2 [shape = 'f32[128,256]{1,0:T(8,128)}', space=vmem, size = 0x20000, scoped, tag = 'scratch operand']
  #allocation3 [shape = 'bf16[128,512]{1,0:T(8,128)(2,1)}', space=vmem, size = 0x20000, scoped, tag = 'scratch operand']
  %s0 = inlined_call_operand.vmem [shape: bf16[128,512], index: 0, kind: input, shape index: {}]
  %s1 = inlined_call_operand.vmem [shape: f32[8,512], index: 1, kind: input, shape index: {}]
  %s2 = inlined_call_operand.vmem [shape: f32[128,1], index: 2, kind: input, shape index: {}]
  %s3 = inlined_call_operand.vmem [shape: bf16[512,256], index: 3, kind: input, shape index: {}]
  %s4 = inlined_call_operand.hbm [shape: f32[128,256], index: 4, kind: output, shape index: {}]
  %s5 = sld [smem:[#allocation0]]
  $region42: #{llama_mlp_forward.3} parent=0
    _
  %s7 = ssub.s32 1, %s5
  %s8 = scalar_select 0, %s7, %s5
  $region1: #{llama_mlp_forward.3} parent=0
    #allocation4 [shape = 'u8[131072]{0}', space=vmem, size = 0x20000, scoped, tag = 'output window, operand 0, single buffered']
    #allocation5 [shape = 's32[1]{0}', space=sflag, size = 0x4, scoped, tag = 'scoped memory for llama_mlp_forward.3']
    %9 = vsyncpa [#allocation5], 0
    // Predicated region
    $region2: #{llama_mlp_forward.3} parent=1 // pred_check
      _
    $region3: #{llama_mlp_forward.3} parent=1 // pred_check_branch
      %11 = sbr.rel (0) target = $region5
    $region4: #{llama_mlp_forward.3} parent=1 // pred_region
      _
    $region5: #{llama_mlp_forward.3} parent=1 // pred_fallthru
      _
    // Predicated region
    $region6: #{llama_mlp_forward.3} parent=1 // pred_check
      _
    $region7: #{llama_mlp_forward.3} parent=1 // pred_check_branch
      %13 = sbr.rel (0) target = $region9
    $region8: #{llama_mlp_forward.3} parent=1 // pred_region
      _
    $region9: #{llama_mlp_forward.3} parent=1 // pred_fallthru
      _
    // Predicated region
    $region10: #{llama_mlp_forward.3} parent=1 // pred_check
      _
    $region11: #{llama_mlp_forward.3} parent=1 // pred_check_branch
      %15 = sbr.rel (0) target = $region13
    $region12: #{llama_mlp_forward.3} parent=1 // pred_region
      _
    $region13: #{llama_mlp_forward.3} parent=1 // pred_fallthru
      _
    // Predicated region
    $region14: #{llama_mlp_forward.3} parent=1 // pred_check
      _
    $region15: #{llama_mlp_forward.3} parent=1 // pred_check_branch
      %17 = sbr.rel (0) target = $region17
    $region16: #{llama_mlp_forward.3} parent=1 // pred_region
      _
    $region17: #{llama_mlp_forward.3} parent=1 // pred_fallthru
      _
    %p18 = scmp.eq.s32.totalorder 0, 0
    // Predicated region
    $region18: #{llama_mlp_forward.3} parent=1 // pred_check
      %p19 = pneg %p18
    $region19: #{llama_mlp_forward.3} parent=1 // pred_check_branch
      %21 = sbr.rel (%p19) target = $region21
    $region20: #{llama_mlp_forward.3} parent=1 // pred_region
      %v22 = vld [vmem:[%s1] sm:$0xff]
      %v23 = vld [vmem:[%s1 + $0x8] sm:$0xff]
      %v24 = vld [vmem:[%s1 + $0x10] sm:$0xff]
      %v25 = vld [vmem:[%s1 + $0x18] sm:$0xff]
      %v26 = vld [vmem:[%s2] sm:$0xff]
      %v27 = vld [vmem:[%s2 + $0x8] sm:$0xff]
      %v28 = vld [vmem:[%s2 + $0x10] sm:$0xff]
      %v29 = vld [vmem:[%s2 + $0x18] sm:$0xff]
      %v30 = vld [vmem:[%s2 + $0x20] sm:$0xff]
      %v31 = vld [vmem:[%s2 + $0x28] sm:$0xff]
      %v32 = vld [vmem:[%s2 + $0x30] sm:$0xff]
      %v33 = vld [vmem:[%s2 + $0x38] sm:$0xff]
      %v34 = vld [vmem:[%s2 + $0x40] sm:$0xff]
      %v35 = vld [vmem:[%s2 + $0x48] sm:$0xff]
      %v36 = vld [vmem:[%s2 + $0x50] sm:$0xff]
      %v37 = vld [vmem:[%s2 + $0x58] sm:$0xff]
      %v38 = vld [vmem:[%s2 + $0x60] sm:$0xff]
      %v39 = vld [vmem:[%s2 + $0x68] sm:$0xff]
      %v40 = vld [vmem:[%s2 + $0x70] sm:$0xff]
      %v41 = vld [vmem:[%s2 + $0x78] sm:$0xff]
      %vm42 = vcmp.gt.f32.partialorder %v26, 0.5
      %vm43 = vcmp.gt.f32.partialorder %v27, 0.5
      %vm44 = vcmp.gt.f32.partialorder %v28, 0.5
      %vm45 = vcmp.gt.f32.partialorder %v29, 0.5
      %vm46 = vcmp.gt.f32.partialorder %v30, 0.5
      %vm47 = vcmp.gt.f32.partialorder %v31, 0.5
      %vm48 = vcmp.gt.f32.partialorder %v32, 0.5
      %vm49 = vcmp.gt.f32.partialorder %v33, 0.5
      %vm50 = vcmp.gt.f32.partialorder %v34, 0.5
      %vm51 = vcmp.gt.f32.partialorder %v35, 0.5
      %vm52 = vcmp.gt.f32.partialorder %v36, 0.5
      %vm53 = vcmp.gt.f32.partialorder %v37, 0.5
      %vm54 = vcmp.gt.f32.partialorder %v38, 0.5
      %vm55 = vcmp.gt.f32.partialorder %v39, 0.5
      %vm56 = vcmp.gt.f32.partialorder %v40, 0.5
      %vm57 = vcmp.gt.f32.partialorder %v41, 0.5
      %v58 = vsel %vm42, 1, 0
      %v59 = vsel %vm43, 1, 0
      %v60 = vsel %vm44, 1, 0
      %v61 = vsel %vm45, 1, 0
      %v62 = vsel %vm46, 1, 0
      %v63 = vsel %vm47, 1, 0
      %v64 = vsel %vm48, 1, 0
      %v65 = vsel %vm49, 1, 0
      %v66 = vsel %vm50, 1, 0
      %v67 = vsel %vm51, 1, 0
      %v68 = vsel %vm52, 1, 0
      %v69 = vsel %vm53, 1, 0
      %v70 = vsel %vm54, 1, 0
      %v71 = vsel %vm55, 1, 0
      %v72 = vsel %vm56, 1, 0
      %v73 = vsel %vm57, 1, 0
      %74 = vset.pattern.permute.xlu0 0
      %75 = vperm.xlu0 %74, %v58
      %v76 = vpop.permute.xlu0 %75
      %77 = vset.pattern.permute.xlu0 0
      %78 = vperm.xlu0 %77, %v59
      %v79 = vpop.permute.xlu0 %78
      %80 = vset.pattern.permute.xlu0 0
      %81 = vperm.xlu0 %80, %v60
      %v82 = vpop.permute.xlu0 %81
      %83 = vset.pattern.permute.xlu0 0
      %84 = vperm.xlu0 %83, %v61
      %v85 = vpop.permute.xlu0 %84
      %86 = vset.pattern.permute.xlu0 0
      %87 = vperm.xlu0 %86, %v62
      %v88 = vpop.permute.xlu0 %87
      %89 = vset.pattern.permute.xlu0 0
      %90 = vperm.xlu0 %89, %v63
      %v91 = vpop.permute.xlu0 %90
      %92 = vset.pattern.permute.xlu0 0
      %93 = vperm.xlu0 %92, %v64
      %v94 = vpop.permute.xlu0 %93
      %95 = vset.pattern.permute.xlu0 0
      %96 = vperm.xlu0 %95, %v65
      %v97 = vpop.permute.xlu0 %96
      %98 = vset.pattern.permute.xlu0 0
      %99 = vperm.xlu0 %98, %v66
      %v100 = vpop.permute.xlu0 %99
      %101 = vset.pattern.permute.xlu0 0
      %102 = vperm.xlu0 %101, %v67
      %v103 = vpop.permute.xlu0 %102
      %104 = vset.pattern.permute.xlu0 0
      %105 = vperm.xlu0 %104, %v68
      %v106 = vpop.permute.xlu0 %105
      %107 = vset.pattern.permute.xlu0 0
      %108 = vperm.xlu0 %107, %v69
      %v109 = vpop.permute.xlu0 %108
      %110 = vset.pattern.permute.xlu0 0
      %111 = vperm.xlu0 %110, %v70
      %v112 = vpop.permute.xlu0 %111
      %113 = vset.pattern.permute.xlu0 0
      %114 = vperm.xlu0 %113, %v71
      %v115 = vpop.permute.xlu0 %114
      %116 = vset.pattern.permute.xlu0 0
      %117 = vperm.xlu0 %116, %v72
      %v118 = vpop.permute.xlu0 %117
      %119 = vset.pattern.permute.xlu0 0
      %120 = vperm.xlu0 %119, %v73
      %v121 = vpop.permute.xlu0 %120
      %vm122 = vcmp.eq.s32.totalorder %v76, 1
      %vm123 = vcmp.eq.s32.totalorder %v79, 1
      %vm124 = vcmp.eq.s32.totalorder %v82, 1
      %vm125 = vcmp.eq.s32.totalorder %v85, 1
      %vm126 = vcmp.eq.s32.totalorder %v88, 1
      %vm127 = vcmp.eq.s32.totalorder %v91, 1
      %vm128 = vcmp.eq.s32.totalorder %v94, 1
      %vm129 = vcmp.eq.s32.totalorder %v97, 1
      %vm130 = vcmp.eq.s32.totalorder %v100, 1
      %vm131 = vcmp.eq.s32.totalorder %v103, 1
      %vm132 = vcmp.eq.s32.totalorder %v106, 1
      %vm133 = vcmp.eq.s32.totalorder %v109, 1
      %vm134 = vcmp.eq.s32.totalorder %v112, 1
      %vm135 = vcmp.eq.s32.totalorder %v115, 1
      %vm136 = vcmp.eq.s32.totalorder %v118, 1
      %vm137 = vcmp.eq.s32.totalorder %v121, 1
      %v138 = vlaneseq
      %v139 = vshrl.u32 %v138, 7
      %v140 = vsub.s32 3, %v139
      %v141 = vrot.slane %v22, %v140
      %v142 = vlaneseq
      %v143 = vshrl.u32 %v142, 7
      %v144 = vsub.s32 3, %v143
      %v145 = vrot.slane %v23, %v144
      %v146 = vlaneseq
      %v147 = vshrl.u32 %v146, 7
      %v148 = vsub.s32 3, %v147
      %v149 = vrot.slane %v24, %v148
      %v150 = vlaneseq
      %v151 = vshrl.u32 %v150, 7
      %v152 = vsub.s32 3, %v151
      %v153 = vrot.slane %v25, %v152
      %v154 = vlaneseq
      %v155 = vshrl.u32 %v154, 7
      %v156 = vsub.s32 0, %v155
      %v157 = vrot.slane %v22, %v156
      %v158 = vlaneseq
      %v159 = vshrl.u32 %v158, 7
      %v160 = vsub.s32 0, %v159
      %v161 = vrot.slane %v23, %v160
      %v162 = vlaneseq
      %v163 = vshrl.u32 %v162, 7
      %v164 = vsub.s32 0, %v163
      %v165 = vrot.slane %v24, %v164
      %v166 = vlaneseq
      %v167 = vshrl.u32 %v166, 7
      %v168 = vsub.s32 0, %v167
      %v169 = vrot.slane %v25, %v168
      %v170 = vsel %vm122, %v141, %v157
      %v171 = vsel %vm122, %v145, %v161
      %v172 = vsel %vm122, %v149, %v165
      %v173 = vsel %vm122, %v153, %v169
      %v174 = vsel %vm123, %v141, %v157
      %v175 = vsel %vm123, %v145, %v161
      %v176 = vsel %vm123, %v149, %v165
      %v177 = vsel %vm123, %v153, %v169
      %v178 = vsel %vm124, %v141, %v157
      %v179 = vsel %vm124, %v145, %v161
      %v180 = vsel %vm124, %v149, %v165
      %v181 = vsel %vm124, %v153, %v169
      %v182 = vsel %vm125, %v141, %v157
      %v183 = vsel %vm125, %v145, %v161
      %v184 = vsel %vm125, %v149, %v165
      %v185 = vsel %vm125, %v153, %v169
      %v186 = vsel %vm126, %v141, %v157
      %v187 = vsel %vm126, %v145, %v161
      %v188 = vsel %vm126, %v149, %v165
      %v189 = vsel %vm126, %v153, %v169
      %v190 = vsel %vm127, %v141, %v157
      %v191 = vsel %vm127, %v145, %v161
      %v192 = vsel %vm127, %v149, %v165
      %v193 = vsel %vm127, %v153, %v169
      %v194 = vsel %vm128, %v141, %v157
      %v195 = vsel %vm128, %v145, %v161
      %v196 = vsel %vm128, %v149, %v165
      %v197 = vsel %vm128, %v153, %v169
      %v198 = vsel %vm129, %v141, %v157
      %v199 = vsel %vm129, %v145, %v161
      %v200 = vsel %vm129, %v149, %v165
      %v201 = vsel %vm129, %v153, %v169
      %v202 = vsel %vm130, %v141, %v157
      %v203 = vsel %vm130, %v145, %v161
      %v204 = vsel %vm130, %v149, %v165
      %v205 = vsel %vm130, %v153, %v169
      %v206 = vsel %vm131, %v141, %v157
      %v207 = vsel %vm131, %v145, %v161
      %v208 = vsel %vm131, %v149, %v165
      %v209 = vsel %vm131, %v153, %v169
      %v210 = vsel %vm132, %v141, %v157
      %v211 = vsel %vm132, %v145, %v161
      %v212 = vsel %vm132, %v149, %v165
      %v213 = vsel %vm132, %v153, %v169
      %v214 = vsel %vm133, %v141, %v157
      %v215 = vsel %vm133, %v145, %v161
      %v216 = vsel %vm133, %v149, %v165
      %v217 = vsel %vm133, %v153, %v169
      %v218 = vsel %vm134, %v141, %v157
      %v219 = vsel %vm134, %v145, %v161
      %v220 = vsel %vm134, %v149, %v165
      %v221 = vsel %vm134, %v153, %v169
      %v222 = vsel %vm135, %v141, %v157
      %v223 = vsel %vm135, %v145, %v161
      %v224 = vsel %vm135, %v149, %v165
      %v225 = vsel %vm135, %v153, %v169
      %v226 = vsel %vm136, %v141, %v157
      %v227 = vsel %vm136, %v145, %v161
      %v228 = vsel %vm136, %v149, %v165
      %v229 = vsel %vm136, %v153, %v169
      %v230 = vsel %vm137, %v141, %v157
      %v231 = vsel %vm137, %v145, %v161
      %v232 = vsel %vm137, %v149, %v165
      %v233 = vsel %vm137, %v153, %v169
      %v234 = vlaneseq
      %v235 = vshrl.u32 %v234, 7
      %v236 = vsub.s32 5, %v235
      %v237 = vrot.slane %v22, %v236
      %v238 = vlaneseq
      %v239 = vshrl.u32 %v238, 7
      %v240 = vsub.s32 5, %v239
      %v241 = vrot.slane %v23, %v240
      %v242 = vlaneseq
      %v243 = vshrl.u32 %v242, 7
      %v244 = vsub.s32 5, %v243
      %v245 = vrot.slane %v24, %v244
      %v246 = vlaneseq
      %v247 = vshrl.u32 %v246, 7
      %v248 = vsub.s32 5, %v247
      %v249 = vrot.slane %v25, %v248
      %v250 = vlaneseq
      %v251 = vshrl.u32 %v250, 7
      %v252 = vsub.s32 2, %v251
      %v253 = vrot.slane %v22, %v252
      %v254 = vlaneseq
      %v255 = vshrl.u32 %v254, 7
      %v256 = vsub.s32 2, %v255
      %v257 = vrot.slane %v23, %v256
      %v258 = vlaneseq
      %v259 = vshrl.u32 %v258, 7
      %v260 = vsub.s32 2, %v259
      %v261 = vrot.slane %v24, %v260
      %v262 = vlaneseq
      %v263 = vshrl.u32 %v262, 7
      %v264 = vsub.s32 2, %v263
      %v265 = vrot.slane %v25, %v264
      %v266 = vsel %vm122, %v237, %v253
      %v267 = vsel %vm122, %v241, %v257
      %v268 = vsel %vm122, %v245, %v261
      %v269 = vsel %vm122, %v249, %v265
      %v270 = vsel %vm123, %v237, %v253
      %v271 = vsel %vm123, %v241, %v257
      %v272 = vsel %vm123, %v245, %v261
      %v273 = vsel %vm123, %v249, %v265
      %v274 = vsel %vm124, %v237, %v253
      %v275 = vsel %vm124, %v241, %v257
      %v276 = vsel %vm124, %v245, %v261
      %v277 = vsel %vm124, %v249, %v265
      %v278 = vsel %vm125, %v237, %v253
      %v279 = vsel %vm125, %v241, %v257
      %v280 = vsel %vm125, %v245, %v261
      %v281 = vsel %vm125, %v249, %v265
      %v282 = vsel %vm126, %v237, %v253
      %v283 = vsel %vm126, %v241, %v257
      %v284 = vsel %vm126, %v245, %v261
      %v285 = vsel %vm126, %v249, %v265
      %v286 = vsel %vm127, %v237, %v253
      %v287 = vsel %vm127, %v241, %v257
      %v288 = vsel %vm127, %v245, %v261
      %v289 = vsel %vm127, %v249, %v265
      %v290 = vsel %vm128, %v237, %v253
      %v291 = vsel %vm128, %v241, %v257
      %v292 = vsel %vm128, %v245, %v261
      %v293 = vsel %vm128, %v249, %v265
      %v294 = vsel %vm129, %v237, %v253
      %v295 = vsel %vm129, %v241, %v257
      %v296 = vsel %vm129, %v245, %v261
      %v297 = vsel %vm129, %v249, %v265
      %v298 = vsel %vm130, %v237, %v253
      %v299 = vsel %vm130, %v241, %v257
      %v300 = vsel %vm130, %v245, %v261
      %v301 = vsel %vm130, %v249, %v265
      %v302 = vsel %vm131, %v237, %v253
      %v303 = vsel %vm131, %v241, %v257
      %v304 = vsel %vm131, %v245, %v261
      %v305 = vsel %vm131, %v249, %v265
      %v306 = vsel %vm132, %v237, %v253
      %v307 = vsel %vm132, %v241, %v257
      %v308 = vsel %vm132, %v245, %v261
      %v309 = vsel %vm132, %v249, %v265
      %v310 = vsel %vm133, %v237, %v253
      %v311 = vsel %vm133, %v241, %v257
      %v312 = vsel %vm133, %v245, %v261
      %v313 = vsel %vm133, %v249, %v265
      %v314 = vsel %vm134, %v237, %v253
      %v315 = vsel %vm134, %v241, %v257
      %v316 = vsel %vm134, %v245, %v261
      %v317 = vsel %vm134, %v249, %v265
      %v318 = vsel %vm135, %v237, %v253
      %v319 = vsel %vm135, %v241, %v257
      %v320 = vsel %vm135, %v245, %v261
      %v321 = vsel %vm135, %v249, %v265
      %v322 = vsel %vm136, %v237, %v253
      %v323 = vsel %vm136, %v241, %v257
      %v324 = vsel %vm136, %v245, %v261
      %v325 = vsel %vm136, %v249, %v265
      %v326 = vsel %vm137, %v237, %v253
      %v327 = vsel %vm137, %v241, %v257
      %v328 = vsel %vm137, %v245, %v261
      %v329 = vsel %vm137, %v249, %v265
      %v330 = vlaneseq
      %v331 = vshrl.u32 %v330, 7
      %v332 = vsub.s32 4, %v331
      %v333 = vrot.slane %v22, %v332
      %v334 = vlaneseq
      %v335 = vshrl.u32 %v334, 7
      %v336 = vsub.s32 4, %v335
      %v337 = vrot.slane %v23, %v336
      %v338 = vlaneseq
      %v339 = vshrl.u32 %v338, 7
      %v340 = vsub.s32 4, %v339
      %v341 = vrot.slane %v24, %v340
      %v342 = vlaneseq
      %v343 = vshrl.u32 %v342, 7
      %v344 = vsub.s32 4, %v343
      %v345 = vrot.slane %v25, %v344
      %v346 = vlaneseq
      %v347 = vshrl.u32 %v346, 7
      %v348 = vsub.s32 1, %v347
      %v349 = vrot.slane %v22, %v348
      %v350 = vlaneseq
      %v351 = vshrl.u32 %v350, 7
      %v352 = vsub.s32 1, %v351
      %v353 = vrot.slane %v23, %v352
      %v354 = vlaneseq
      %v355 = vshrl.u32 %v354, 7
      %v356 = vsub.s32 1, %v355
      %v357 = vrot.slane %v24, %v356
      %v358 = vlaneseq
      %v359 = vshrl.u32 %v358, 7
      %v360 = vsub.s32 1, %v359
      %v361 = vrot.slane %v25, %v360
      %v362 = vsel %vm122, %v333, %v349
      %v363 = vsel %vm122, %v337, %v353
      %v364 = vsel %vm122, %v341, %v357
      %v365 = vsel %vm122, %v345, %v361
      %v366 = vsel %vm123, %v333, %v349
      %v367 = vsel %vm123, %v337, %v353
      %v368 = vsel %vm123, %v341, %v357
      %v369 = vsel %vm123, %v345, %v361
      %v370 = vsel %vm124, %v333, %v349
      %v371 = vsel %vm124, %v337, %v353
      %v372 = vsel %vm124, %v341, %v357
      %v373 = vsel %vm124, %v345, %v361
      %v374 = vsel %vm125, %v333, %v349
      %v375 = vsel %vm125, %v337, %v353
      %v376 = vsel %vm125, %v341, %v357
      %v377 = vsel %vm125, %v345, %v361
      %v378 = vsel %vm126, %v333, %v349
      %v379 = vsel %vm126, %v337, %v353
      %v380 = vsel %vm126, %v341, %v357
      %v381 = vsel %vm126, %v345, %v361
      %v382 = vsel %vm127, %v333, %v349
      %v383 = vsel %vm127, %v337, %v353
      %v384 = vsel %vm127, %v341, %v357
      %v385 = vsel %vm127, %v345, %v361
      %v386 = vsel %vm128, %v333, %v349
      %v387 = vsel %vm128, %v337, %v353
      %v388 = vsel %vm128, %v341, %v357
      %v389 = vsel %vm128, %v345, %v361
      %v390 = vsel %vm129, %v333, %v349
      %v391 = vsel %vm129, %v337, %v353
      %v392 = vsel %vm129, %v341, %v357
      %v393 = vsel %vm129, %v345, %v361
      %v394 = vsel %vm130, %v333, %v349
      %v395 = vsel %vm130, %v337, %v353
      %v396 = vsel %vm130, %v341, %v357
      %v397 = vsel %vm130, %v345, %v361
      %v398 = vsel %vm131, %v333, %v349
      %v399 = vsel %vm131, %v337, %v353
      %v400 = vsel %vm131, %v341, %v357
      %v401 = vsel %vm131, %v345, %v361
      %v402 = vsel %vm132, %v333, %v349
      %v403 = vsel %vm132, %v337, %v353
      %v404 = vsel %vm132, %v341, %v357
      %v405 = vsel %vm132, %v345, %v361
      %v406 = vsel %vm133, %v333, %v349
      %v407 = vsel %vm133, %v337, %v353
      %v408 = vsel %vm133, %v341, %v357
      %v409 = vsel %vm133, %v345, %v361
      %v410 = vsel %vm134, %v333, %v349
      %v411 = vsel %vm134, %v337, %v353
      %v412 = vsel %vm134, %v341, %v357
      %v413 = vsel %vm134, %v345, %v361
      %v414 = vsel %vm135, %v333, %v349
      %v415 = vsel %vm135, %v337, %v353
      %v416 = vsel %vm135, %v341, %v357
      %v417 = vsel %vm135, %v345, %v361
      %v418 = vsel %vm136, %v333, %v349
      %v419 = vsel %vm136, %v337, %v353
      %v420 = vsel %vm136, %v341, %v357
      %v421 = vsel %vm136, %v345, %v361
      %v422 = vsel %vm137, %v333, %v349
      %v423 = vsel %vm137, %v337, %v353
      %v424 = vsel %vm137, %v341, %v357
      %v425 = vsel %vm137, %v345, %v361
      %v426 = vsel %vm42, -8.0, -128.0
      %v427 = vsel %vm43, -8.0, -128.0
      %v428 = vsel %vm44, -8.0, -128.0
      %v429 = vsel %vm45, -8.0, -128.0
      %v430 = vsel %vm46, -8.0, -128.0
      %v431 = vsel %vm47, -8.0, -128.0
      %v432 = vsel %vm48, -8.0, -128.0
      %v433 = vsel %vm49, -8.0, -128.0
      %v434 = vsel %vm50, -8.0, -128.0
      %v435 = vsel %vm51, -8.0, -128.0
      %v436 = vsel %vm52, -8.0, -128.0
      %v437 = vsel %vm53, -8.0, -128.0
      %v438 = vsel %vm54, -8.0, -128.0
      %v439 = vsel %vm55, -8.0, -128.0
      %v440 = vsel %vm56, -8.0, -128.0
      %v441 = vsel %vm57, -8.0, -128.0
      %v442 = vsel %vm42, 7.0, 127.0
      %v443 = vsel %vm43, 7.0, 127.0
      %v444 = vsel %vm44, 7.0, 127.0
      %v445 = vsel %vm45, 7.0, 127.0
      %v446 = vsel %vm46, 7.0, 127.0
      %v447 = vsel %vm47, 7.0, 127.0
      %v448 = vsel %vm48, 7.0, 127.0
      %v449 = vsel %vm49, 7.0, 127.0
      %v450 = vsel %vm50, 7.0, 127.0
      %v451 = vsel %vm51, 7.0, 127.0
      %v452 = vsel %vm52, 7.0, 127.0
      %v453 = vsel %vm53, 7.0, 127.0
      %v454 = vsel %vm54, 7.0, 127.0
      %v455 = vsel %vm55, 7.0, 127.0
      %v456 = vsel %vm56, 7.0, 127.0
      %v457 = vsel %vm57, 7.0, 127.0
      %v458 = vld [vmem:[%s0] sm:$0xff]
      %v459 = vld [vmem:[%s0 + $0x8] sm:$0xff]
      %v460 = vld [vmem:[%s0 + $0x10] sm:$0xff]
      %v461 = vld [vmem:[%s0 + $0x18] sm:$0xff]
      %v462 = vld [vmem:[%s0 + $0x20] sm:$0xff]
      %v463 = vld [vmem:[%s0 + $0x28] sm:$0xff]
      %v464 = vld [vmem:[%s0 + $0x30] sm:$0xff]
      %v465 = vld [vmem:[%s0 + $0x38] sm:$0xff]
      %v466 = vld [vmem:[%s0 + $0x40] sm:$0xff]
      %v467 = vld [vmem:[%s0 + $0x48] sm:$0xff]
      %v468 = vld [vmem:[%s0 + $0x50] sm:$0xff]
      %v469 = vld [vmem:[%s0 + $0x58] sm:$0xff]
      %v470 = vld [vmem:[%s0 + $0x60] sm:$0xff]
      %v471 = vld [vmem:[%s0 + $0x68] sm:$0xff]
      %v472 = vld [vmem:[%s0 + $0x70] sm:$0xff]
      %v473 = vld [vmem:[%s0 + $0x78] sm:$0xff]
      %v474 = vld [vmem:[%s0 + $0x80] sm:$0xff]
      %v475 = vld [vmem:[%s0 + $0x88] sm:$0xff]
      %v476 = vld [vmem:[%s0 + $0x90] sm:$0xff]
      %v477 = vld [vmem:[%s0 + $0x98] sm:$0xff]
      %v478 = vld [vmem:[%s0 + $0xa0] sm:$0xff]
      %v479 = vld [vmem:[%s0 + $0xa8] sm:$0xff]
      %v480 = vld [vmem:[%s0 + $0xb0] sm:$0xff]
      %v481 = vld [vmem:[%s0 + $0xb8] sm:$0xff]
      %v482 = vld [vmem:[%s0 + $0xc0] sm:$0xff]
      %v483 = vld [vmem:[%s0 + $0xc8] sm:$0xff]
      %v484 = vld [vmem:[%s0 + $0xd0] sm:$0xff]
      %v485 = vld [vmem:[%s0 + $0xd8] sm:$0xff]
      %v486 = vld [vmem:[%s0 + $0xe0] sm:$0xff]
      %v487 = vld [vmem:[%s0 + $0xe8] sm:$0xff]
      %v488 = vld [vmem:[%s0 + $0xf0] sm:$0xff]
      %v489 = vld [vmem:[%s0 + $0xf8] sm:$0xff]
      %v490 = vunpack.c.l.bf16 %v458
      %v491 = vunpack.c.h.bf16 %v458
      %v492 = vunpack.c.l.bf16 %v459
      %v493 = vunpack.c.h.bf16 %v459
      %v494 = vunpack.c.l.bf16 %v460
      %v495 = vunpack.c.h.bf16 %v460
      %v496 = vunpack.c.l.bf16 %v461
      %v497 = vunpack.c.h.bf16 %v461
      %v498 = vunpack.c.l.bf16 %v462
      %v499 = vunpack.c.h.bf16 %v462
      %v500 = vunpack.c.l.bf16 %v463
      %v501 = vunpack.c.h.bf16 %v463
      %v502 = vunpack.c.l.bf16 %v464
      %v503 = vunpack.c.h.bf16 %v464
      %v504 = vunpack.c.l.bf16 %v465
      %v505 = vunpack.c.h.bf16 %v465
      %v506 = vunpack.c.l.bf16 %v466
      %v507 = vunpack.c.h.bf16 %v466
      %v508 = vunpack.c.l.bf16 %v467
      %v509 = vunpack.c.h.bf16 %v467
      %v510 = vunpack.c.l.bf16 %v468
      %v511 = vunpack.c.h.bf16 %v468
      %v512 = vunpack.c.l.bf16 %v469
      %v513 = vunpack.c.h.bf16 %v469
      %v514 = vunpack.c.l.bf16 %v470
      %v515 = vunpack.c.h.bf16 %v470
      %v516 = vunpack.c.l.bf16 %v471
      %v517 = vunpack.c.h.bf16 %v471
      %v518 = vunpack.c.l.bf16 %v472
      %v519 = vunpack.c.h.bf16 %v472
      %v520 = vunpack.c.l.bf16 %v473
      %v521 = vunpack.c.h.bf16 %v473
      %v522 = vunpack.c.l.bf16 %v474
      %v523 = vunpack.c.h.bf16 %v474
      %v524 = vunpack.c.l.bf16 %v475
      %v525 = vunpack.c.h.bf16 %v475
      %v526 = vunpack.c.l.bf16 %v476
      %v527 = vunpack.c.h.bf16 %v476
      %v528 = vunpack.c.l.bf16 %v477
      %v529 = vunpack.c.h.bf16 %v477
      %v530 = vunpack.c.l.bf16 %v478
      %v531 = vunpack.c.h.bf16 %v478
      %v532 = vunpack.c.l.bf16 %v479
      %v533 = vunpack.c.h.bf16 %v479
      %v534 = vunpack.c.l.bf16 %v480
      %v535 = vunpack.c.h.bf16 %v480
      %v536 = vunpack.c.l.bf16 %v481
      %v537 = vunpack.c.h.bf16 %v481
      %v538 = vunpack.c.l.bf16 %v482
      %v539 = vunpack.c.h.bf16 %v482
      %v540 = vunpack.c.l.bf16 %v483
      %v541 = vunpack.c.h.bf16 %v483
      %v542 = vunpack.c.l.bf16 %v484
      %v543 = vunpack.c.h.bf16 %v484
      %v544 = vunpack.c.l.bf16 %v485
      %v545 = vunpack.c.h.bf16 %v485
      %v546 = vunpack.c.l.bf16 %v486
      %v547 = vunpack.c.h.bf16 %v486
      %v548 = vunpack.c.l.bf16 %v487
      %v549 = vunpack.c.h.bf16 %v487
      %v550 = vunpack.c.l.bf16 %v488
      %v551 = vunpack.c.h.bf16 %v488
      %v552 = vunpack.c.l.bf16 %v489
      %v553 = vunpack.c.h.bf16 %v489
      %v554 = vmul.f32 %v490, %v266
      %v555 = vmul.f32 %v491, %v267
      %v556 = vmul.f32 %v492, %v268
      %v557 = vmul.f32 %v493, %v269
      %v558 = vmul.f32 %v494, %v270
      %v559 = vmul.f32 %v495, %v271
      %v560 = vmul.f32 %v496, %v272
      %v561 = vmul.f32 %v497, %v273
      %v562 = vmul.f32 %v498, %v274
      %v563 = vmul.f32 %v499, %v275
      %v564 = vmul.f32 %v500, %v276
      %v565 = vmul.f32 %v501, %v277
      %v566 = vmul.f32 %v502, %v278
      %v567 = vmul.f32 %v503, %v279
      %v568 = vmul.f32 %v504, %v280
      %v569 = vmul.f32 %v505, %v281
      %v570 = vmul.f32 %v506, %v282
      %v571 = vmul.f32 %v507, %v283
      %v572 = vmul.f32 %v508, %v284
      %v573 = vmul.f32 %v509, %v285
      %v574 = vmul.f32 %v510, %v286
      %v575 = vmul.f32 %v511, %v287
      %v576 = vmul.f32 %v512, %v288
      %v577 = vmul.f32 %v513, %v289
      %v578 = vmul.f32 %v514, %v290
      %v579 = vmul.f32 %v515, %v291
      %v580 = vmul.f32 %v516, %v292
      %v581 = vmul.f32 %v517, %v293
      %v582 = vmul.f32 %v518, %v294
      %v583 = vmul.f32 %v519, %v295
      %v584 = vmul.f32 %v520, %v296
      %v585 = vmul.f32 %v521, %v297
      %v586 = vmul.f32 %v522, %v298
      %v587 = vmul.f32 %v523, %v299
      %v588 = vmul.f32 %v524, %v300
      %v589 = vmul.f32 %v525, %v301
      %v590 = vmul.f32 %v526, %v302
      %v591 = vmul.f32 %v527, %v303
      %v592 = vmul.f32 %v528, %v304
      %v593 = vmul.f32 %v529, %v305
      %v594 = vmul.f32 %v530, %v306
      %v595 = vmul.f32 %v531, %v307
      %v596 = vmul.f32 %v532, %v308
      %v597 = vmul.f32 %v533, %v309
      %v598 = vmul.f32 %v534, %v310
      %v599 = vmul.f32 %v535, %v311
      %v600 = vmul.f32 %v536, %v312
      %v601 = vmul.f32 %v537, %v313
      %v602 = vmul.f32 %v538, %v314
      %v603 = vmul.f32 %v539, %v315
      %v604 = vmul.f32 %v540, %v316
      %v605 = vmul.f32 %v541, %v317
      %v606 = vmul.f32 %v542, %v318
      %v607 = vmul.f32 %v543, %v319
      %v608 = vmul.f32 %v544, %v320
      %v609 = vmul.f32 %v545, %v321
      %v610 = vmul.f32 %v546, %v322
      %v611 = vmul.f32 %v547, %v323
      %v612 = vmul.f32 %v548, %v324
      %v613 = vmul.f32 %v549, %v325
      %v614 = vmul.f32 %v550, %v326
      %v615 = vmul.f32 %v551, %v327
      %v616 = vmul.f32 %v552, %v328
      %v617 = vmul.f32 %v553, %v329
      %v618 = vadd.f32 %v554, %v362
      %v619 = vadd.f32 %v555, %v363
      %v620 = vadd.f32 %v556, %v364
      %v621 = vadd.f32 %v557, %v365
      %v622 = vadd.f32 %v558, %v366
      %v623 = vadd.f32 %v559, %v367
      %v624 = vadd.f32 %v560, %v368
      %v625 = vadd.f32 %v561, %v369
      %v626 = vadd.f32 %v562, %v370
      %v627 = vadd.f32 %v563, %v371
      %v628 = vadd.f32 %v564, %v372
      %v629 = vadd.f32 %v565, %v373
      %v630 = vadd.f32 %v566, %v374
      %v631 = vadd.f32 %v567, %v375
      %v632 = vadd.f32 %v568, %v376
      %v633 = vadd.f32 %v569, %v377
      %v634 = vadd.f32 %v570, %v378
      %v635 = vadd.f32 %v571, %v379
      %v636 = vadd.f32 %v572, %v380
      %v637 = vadd.f32 %v573, %v381
      %v638 = vadd.f32 %v574, %v382
      %v639 = vadd.f32 %v575, %v383
      %v640 = vadd.f32 %v576, %v384
      %v641 = vadd.f32 %v577, %v385
      %v642 = vadd.f32 %v578, %v386
      %v643 = vadd.f32 %v579, %v387
      %v644 = vadd.f32 %v580, %v388
      %v645 = vadd.f32 %v581, %v389
      %v646 = vadd.f32 %v582, %v390
      %v647 = vadd.f32 %v583, %v391
      %v648 = vadd.f32 %v584, %v392
      %v649 = vadd.f32 %v585, %v393
      %v650 = vadd.f32 %v586, %v394
      %v651 = vadd.f32 %v587, %v395
      %v652 = vadd.f32 %v588, %v396
      %v653 = vadd.f32 %v589, %v397
      %v654 = vadd.f32 %v590, %v398
      %v655 = vadd.f32 %v591, %v399
      %v656 = vadd.f32 %v592, %v400
      %v657 = vadd.f32 %v593, %v401
      %v658 = vadd.f32 %v594, %v402
      %v659 = vadd.f32 %v595, %v403
      %v660 = vadd.f32 %v596, %v404
      %v661 = vadd.f32 %v597, %v405
      %v662 = vadd.f32 %v598, %v406
      %v663 = vadd.f32 %v599, %v407
      %v664 = vadd.f32 %v600, %v408
      %v665 = vadd.f32 %v601, %v409
      %v666 = vadd.f32 %v602, %v410
      %v667 = vadd.f32 %v603, %v411
      %v668 = vadd.f32 %v604, %v412
      %v669 = vadd.f32 %v605, %v413
      %v670 = vadd.f32 %v606, %v414
      %v671 = vadd.f32 %v607, %v415
      %v672 = vadd.f32 %v608, %v416
      %v673 = vadd.f32 %v609, %v417
      %v674 = vadd.f32 %v610, %v418
      %v675 = vadd.f32 %v611, %v419
      %v676 = vadd.f32 %v612, %v420
      %v677 = vadd.f32 %v613, %v421
      %v678 = vadd.f32 %v614, %v422
      %v679 = vadd.f32 %v615, %v423
      %v680 = vadd.f32 %v616, %v424
      %v681 = vadd.f32 %v617, %v425
      %v682 = vround.ne.pseudo %v618
      %v683 = vround.ne.pseudo %v619
      %v684 = vround.ne.pseudo %v620
      %v685 = vround.ne.pseudo %v621
      %v686 = vround.ne.pseudo %v622
      %v687 = vround.ne.pseudo %v623
      %v688 = vround.ne.pseudo %v624
      %v689 = vround.ne.pseudo %v625
      %v690 = vround.ne.pseudo %v626
      %v691 = vround.ne.pseudo %v627
      %v692 = vround.ne.pseudo %v628
      %v693 = vround.ne.pseudo %v629
      %v694 = vround.ne.pseudo %v630
      %v695 = vround.ne.pseudo %v631
      %v696 = vround.ne.pseudo %v632
      %v697 = vround.ne.pseudo %v633
      %v698 = vround.ne.pseudo %v634
      %v699 = vround.ne.pseudo %v635
      %v700 = vround.ne.pseudo %v636
      %v701 = vround.ne.pseudo %v637
      %v702 = vround.ne.pseudo %v638
      %v703 = vround.ne.pseudo %v639
      %v704 = vround.ne.pseudo %v640
      %v705 = vround.ne.pseudo %v641
      %v706 = vround.ne.pseudo %v642
      %v707 = vround.ne.pseudo %v643
      %v708 = vround.ne.pseudo %v644
      %v709 = vround.ne.pseudo %v645
      %v710 = vround.ne.pseudo %v646
      %v711 = vround.ne.pseudo %v647
      %v712 = vround.ne.pseudo %v648
      %v713 = vround.ne.pseudo %v649
      %v714 = vround.ne.pseudo %v650
      %v715 = vround.ne.pseudo %v651
      %v716 = vround.ne.pseudo %v652
      %v717 = vround.ne.pseudo %v653
      %v718 = vround.ne.pseudo %v654
      %v719 = vround.ne.pseudo %v655
      %v720 = vround.ne.pseudo %v656
      %v721 = vround.ne.pseudo %v657
      %v722 = vround.ne.pseudo %v658
      %v723 = vround.ne.pseudo %v659
      %v724 = vround.ne.pseudo %v660
      %v725 = vround.ne.pseudo %v661
      %v726 = vround.ne.pseudo %v662
      %v727 = vround.ne.pseudo %v663
      %v728 = vround.ne.pseudo %v664
      %v729 = vround.ne.pseudo %v665
      %v730 = vround.ne.pseudo %v666
      %v731 = vround.ne.pseudo %v667
      %v732 = vround.ne.pseudo %v668
      %v733 = vround.ne.pseudo %v669
      %v734 = vround.ne.pseudo %v670
      %v735 = vround.ne.pseudo %v671
      %v736 = vround.ne.pseudo %v672
      %v737 = vround.ne.pseudo %v673
      %v738 = vround.ne.pseudo %v674
      %v739 = vround.ne.pseudo %v675
      %v740 = vround.ne.pseudo %v676
      %v741 = vround.ne.pseudo %v677
      %v742 = vround.ne.pseudo %v678
      %v743 = vround.ne.pseudo %v679
      %v744 = vround.ne.pseudo %v680
      %v745 = vround.ne.pseudo %v681
      %747 = vset.pattern.permute.xlu0 0
      %748 = vperm.xlu0 %747, %v426
      %v749 = vpop.permute.xlu0 %748
      %752 = vset.pattern.permute.xlu0 0
      %753 = vperm.xlu0 %752, %v427
      %v754 = vpop.permute.xlu0 %753
      %757 = vset.pattern.permute.xlu0 0
      %758 = vperm.xlu0 %757, %v428
      %v759 = vpop.permute.xlu0 %758
      %762 = vset.pattern.permute.xlu0 0
      %763 = vperm.xlu0 %762, %v429
      %v764 = vpop.permute.xlu0 %763
      %767 = vset.pattern.permute.xlu0 0
      %768 = vperm.xlu0 %767, %v430
      %v769 = vpop.permute.xlu0 %768
      %772 = vset.pattern.permute.xlu0 0
      %773 = vperm.xlu0 %772, %v431
      %v774 = vpop.permute.xlu0 %773
      %777 = vset.pattern.permute.xlu0 0
      %778 = vperm.xlu0 %777, %v432
      %v779 = vpop.permute.xlu0 %778
      %782 = vset.pattern.permute.xlu0 0
      %783 = vperm.xlu0 %782, %v433
      %v784 = vpop.permute.xlu0 %783
      %787 = vset.pattern.permute.xlu0 0
      %788 = vperm.xlu0 %787, %v434
      %v789 = vpop.permute.xlu0 %788
      %792 = vset.pattern.permute.xlu0 0
      %793 = vperm.xlu0 %792, %v435
      %v794 = vpop.permute.xlu0 %793
      %797 = vset.pattern.permute.xlu0 0
      %798 = vperm.xlu0 %797, %v436
      %v799 = vpop.permute.xlu0 %798
      %802 = vset.pattern.permute.xlu0 0
      %803 = vperm.xlu0 %802, %v437
      %v804 = vpop.permute.xlu0 %803
      %807 = vset.pattern.permute.xlu0 0
      %808 = vperm.xlu0 %807, %v438
      %v809 = vpop.permute.xlu0 %808
      %812 = vset.pattern.permute.xlu0 0
      %813 = vperm.xlu0 %812, %v439
      %v814 = vpop.permute.xlu0 %813
      %817 = vset.pattern.permute.xlu0 0
      %818 = vperm.xlu0 %817, %v440
      %v819 = vpop.permute.xlu0 %818
      %822 = vset.pattern.permute.xlu0 0
      %823 = vperm.xlu0 %822, %v441
      %v824 = vpop.permute.xlu0 %823
      %v826 = vmax.f32 %v749, %v682
      %v827 = vmax.f32 %v749, %v683
      %v828 = vmax.f32 %v749, %v684
      %v829 = vmax.f32 %v749, %v685
      %v830 = vmax.f32 %v754, %v686
      %v831 = vmax.f32 %v754, %v687
      %v832 = vmax.f32 %v754, %v688
      %v833 = vmax.f32 %v754, %v689
      %v834 = vmax.f32 %v759, %v690
      %v835 = vmax.f32 %v759, %v691
      %v836 = vmax.f32 %v759, %v692
      %v837 = vmax.f32 %v759, %v693
      %v838 = vmax.f32 %v764, %v694
      %v839 = vmax.f32 %v764, %v695
      %v840 = vmax.f32 %v764, %v696
      %v841 = vmax.f32 %v764, %v697
      %v842 = vmax.f32 %v769, %v698
      %v843 = vmax.f32 %v769, %v699
      %v844 = vmax.f32 %v769, %v700
      %v845 = vmax.f32 %v769, %v701
      %v846 = vmax.f32 %v774, %v702
      %v847 = vmax.f32 %v774, %v703
      %v848 = vmax.f32 %v774, %v704
      %v849 = vmax.f32 %v774, %v705
      %v850 = vmax.f32 %v779, %v706
      %v851 = vmax.f32 %v779, %v707
      %v852 = vmax.f32 %v779, %v708
      %v853 = vmax.f32 %v779, %v709
      %v854 = vmax.f32 %v784, %v710
      %v855 = vmax.f32 %v784, %v711
      %v856 = vmax.f32 %v784, %v712
      %v857 = vmax.f32 %v784, %v713
      %v858 = vmax.f32 %v789, %v714
      %v859 = vmax.f32 %v789, %v715
      %v860 = vmax.f32 %v789, %v716
      %v861 = vmax.f32 %v789, %v717
      %v862 = vmax.f32 %v794, %v718
      %v863 = vmax.f32 %v794, %v719
      %v864 = vmax.f32 %v794, %v720
      %v865 = vmax.f32 %v794, %v721
      %v866 = vmax.f32 %v799, %v722
      %v867 = vmax.f32 %v799, %v723
      %v868 = vmax.f32 %v799, %v724
      %v869 = vmax.f32 %v799, %v725
      %v870 = vmax.f32 %v804, %v726
      %v871 = vmax.f32 %v804, %v727
      %v872 = vmax.f32 %v804, %v728
      %v873 = vmax.f32 %v804, %v729
      %v874 = vmax.f32 %v809, %v730
      %v875 = vmax.f32 %v809, %v731
      %v876 = vmax.f32 %v809, %v732
      %v877 = vmax.f32 %v809, %v733
      %v878 = vmax.f32 %v814, %v734
      %v879 = vmax.f32 %v814, %v735
      %v880 = vmax.f32 %v814, %v736
      %v881 = vmax.f32 %v814, %v737
      %v882 = vmax.f32 %v819, %v738
      %v883 = vmax.f32 %v819, %v739
      %v884 = vmax.f32 %v819, %v740
      %v885 = vmax.f32 %v819, %v741
      %v886 = vmax.f32 %v824, %v742
      %v887 = vmax.f32 %v824, %v743
      %v888 = vmax.f32 %v824, %v744
      %v889 = vmax.f32 %v824, %v745
      %891 = vset.pattern.permute.xlu0 0
      %892 = vperm.xlu0 %891, %v442
      %v893 = vpop.permute.xlu0 %892
      %896 = vset.pattern.permute.xlu0 0
      %897 = vperm.xlu0 %896, %v443
      %v898 = vpop.permute.xlu0 %897
      %901 = vset.pattern.permute.xlu0 0
      %902 = vperm.xlu0 %901, %v444
      %v903 = vpop.permute.xlu0 %902
      %906 = vset.pattern.permute.xlu0 0
      %907 = vperm.xlu0 %906, %v445
      %v908 = vpop.permute.xlu0 %907
      %911 = vset.pattern.permute.xlu0 0
      %912 = vperm.xlu0 %911, %v446
      %v913 = vpop.permute.xlu0 %912
      %916 = vset.pattern.permute.xlu0 0
      %917 = vperm.xlu0 %916, %v447
      %v918 = vpop.permute.xlu0 %917
      %921 = vset.pattern.permute.xlu0 0
      %922 = vperm.xlu0 %921, %v448
      %v923 = vpop.permute.xlu0 %922
      %926 = vset.pattern.permute.xlu0 0
      %927 = vperm.xlu0 %926, %v449
      %v928 = vpop.permute.xlu0 %927
      %931 = vset.pattern.permute.xlu0 0
      %932 = vperm.xlu0 %931, %v450
      %v933 = vpop.permute.xlu0 %932
      %936 = vset.pattern.permute.xlu0 0
      %937 = vperm.xlu0 %936, %v451
      %v938 = vpop.permute.xlu0 %937
      %941 = vset.pattern.permute.xlu0 0
      %942 = vperm.xlu0 %941, %v452
      %v943 = vpop.permute.xlu0 %942
      %946 = vset.pattern.permute.xlu0 0
      %947 = vperm.xlu0 %946, %v453
      %v948 = vpop.permute.xlu0 %947
      %951 = vset.pattern.permute.xlu0 0
      %952 = vperm.xlu0 %951, %v454
      %v953 = vpop.permute.xlu0 %952
      %956 = vset.pattern.permute.xlu0 0
      %957 = vperm.xlu0 %956, %v455
      %v958 = vpop.permute.xlu0 %957
      %961 = vset.pattern.permute.xlu0 0
      %962 = vperm.xlu0 %961, %v456
      %v963 = vpop.permute.xlu0 %962
      %966 = vset.pattern.permute.xlu0 0
      %967 = vperm.xlu0 %966, %v457
      %v968 = vpop.permute.xlu0 %967
      %v970 = vmin.f32 %v893, %v826
      %v971 = vmin.f32 %v893, %v827
      %v972 = vmin.f32 %v893, %v828
      %v973 = vmin.f32 %v893, %v829
      %v974 = vmin.f32 %v898, %v830
      %v975 = vmin.f32 %v898, %v831
      %v976 = vmin.f32 %v898, %v832
      %v977 = vmin.f32 %v898, %v833
      %v978 = vmin.f32 %v903, %v834
      %v979 = vmin.f32 %v903, %v835
      %v980 = vmin.f32 %v903, %v836
      %v981 = vmin.f32 %v903, %v837
      %v982 = vmin.f32 %v908, %v838
      %v983 = vmin.f32 %v908, %v839
      %v984 = vmin.f32 %v908, %v840
      %v985 = vmin.f32 %v908, %v841
      %v986 = vmin.f32 %v913, %v842
      %v987 = vmin.f32 %v913, %v843
      %v988 = vmin.f32 %v913, %v844
      %v989 = vmin.f32 %v913, %v845
      %v990 = vmin.f32 %v918, %v846
      %v991 = vmin.f32 %v918, %v847
      %v992 = vmin.f32 %v918, %v848
      %v993 = vmin.f32 %v918, %v849
      %v994 = vmin.f32 %v923, %v850
      %v995 = vmin.f32 %v923, %v851
      %v996 = vmin.f32 %v923, %v852
      %v997 = vmin.f32 %v923, %v853
      %v998 = vmin.f32 %v928, %v854
      %v999 = vmin.f32 %v928, %v855
      %v1000 = vmin.f32 %v928, %v856
      %v1001 = vmin.f32 %v928, %v857
      %v1002 = vmin.f32 %v933, %v858
      %v1003 = vmin.f32 %v933, %v859
      %v1004 = vmin.f32 %v933, %v860
      %v1005 = vmin.f32 %v933, %v861
      %v1006 = vmin.f32 %v938, %v862
      %v1007 = vmin.f32 %v938, %v863
      %v1008 = vmin.f32 %v938, %v864
      %v1009 = vmin.f32 %v938, %v865
      %v1010 = vmin.f32 %v943, %v866
      %v1011 = vmin.f32 %v943, %v867
      %v1012 = vmin.f32 %v943, %v868
      %v1013 = vmin.f32 %v943, %v869
      %v1014 = vmin.f32 %v948, %v870
      %v1015 = vmin.f32 %v948, %v871
      %v1016 = vmin.f32 %v948, %v872
      %v1017 = vmin.f32 %v948, %v873
      %v1018 = vmin.f32 %v953, %v874
      %v1019 = vmin.f32 %v953, %v875
      %v1020 = vmin.f32 %v953, %v876
      %v1021 = vmin.f32 %v953, %v877
      %v1022 = vmin.f32 %v958, %v878
      %v1023 = vmin.f32 %v958, %v879
      %v1024 = vmin.f32 %v958, %v880
      %v1025 = vmin.f32 %v958, %v881
      %v1026 = vmin.f32 %v963, %v882
      %v1027 = vmin.f32 %v963, %v883
      %v1028 = vmin.f32 %v963, %v884
      %v1029 = vmin.f32 %v963, %v885
      %v1030 = vmin.f32 %v968, %v886
      %v1031 = vmin.f32 %v968, %v887
      %v1032 = vmin.f32 %v968, %v888
      %v1033 = vmin.f32 %v968, %v889
      %v1034 = vsub.f32 %v970, %v362
      %v1035 = vsub.f32 %v971, %v363
      %v1036 = vsub.f32 %v972, %v364
      %v1037 = vsub.f32 %v973, %v365
      %v1038 = vsub.f32 %v974, %v366
      %v1039 = vsub.f32 %v975, %v367
      %v1040 = vsub.f32 %v976, %v368
      %v1041 = vsub.f32 %v977, %v369
      %v1042 = vsub.f32 %v978, %v370
      %v1043 = vsub.f32 %v979, %v371
      %v1044 = vsub.f32 %v980, %v372
      %v1045 = vsub.f32 %v981, %v373
      %v1046 = vsub.f32 %v982, %v374
      %v1047 = vsub.f32 %v983, %v375
      %v1048 = vsub.f32 %v984, %v376
      %v1049 = vsub.f32 %v985, %v377
      %v1050 = vsub.f32 %v986, %v378
      %v1051 = vsub.f32 %v987, %v379
      %v1052 = vsub.f32 %v988, %v380
      %v1053 = vsub.f32 %v989, %v381
      %v1054 = vsub.f32 %v990, %v382
      %v1055 = vsub.f32 %v991, %v383
      %v1056 = vsub.f32 %v992, %v384
      %v1057 = vsub.f32 %v993, %v385
      %v1058 = vsub.f32 %v994, %v386
      %v1059 = vsub.f32 %v995, %v387
      %v1060 = vsub.f32 %v996, %v388
      %v1061 = vsub.f32 %v997, %v389
      %v1062 = vsub.f32 %v998, %v390
      %v1063 = vsub.f32 %v999, %v391
      %v1064 = vsub.f32 %v1000, %v392
      %v1065 = vsub.f32 %v1001, %v393
      %v1066 = vsub.f32 %v1002, %v394
      %v1067 = vsub.f32 %v1003, %v395
      %v1068 = vsub.f32 %v1004, %v396
      %v1069 = vsub.f32 %v1005, %v397
      %v1070 = vsub.f32 %v1006, %v398
      %v1071 = vsub.f32 %v1007, %v399
      %v1072 = vsub.f32 %v1008, %v400
      %v1073 = vsub.f32 %v1009, %v401
      %v1074 = vsub.f32 %v1010, %v402
      %v1075 = vsub.f32 %v1011, %v403
      %v1076 = vsub.f32 %v1012, %v404
      %v1077 = vsub.f32 %v1013, %v405
      %v1078 = vsub.f32 %v1014, %v406
      %v1079 = vsub.f32 %v1015, %v407
      %v1080 = vsub.f32 %v1016, %v408
      %v1081 = vsub.f32 %v1017, %v409
      %v1082 = vsub.f32 %v1018, %v410
      %v1083 = vsub.f32 %v1019, %v411
      %v1084 = vsub.f32 %v1020, %v412
      %v1085 = vsub.f32 %v1021, %v413
      %v1086 = vsub.f32 %v1022, %v414
      %v1087 = vsub.f32 %v1023, %v415
      %v1088 = vsub.f32 %v1024, %v416
      %v1089 = vsub.f32 %v1025, %v417
      %v1090 = vsub.f32 %v1026, %v418
      %v1091 = vsub.f32 %v1027, %v419
      %v1092 = vsub.f32 %v1028, %v420
      %v1093 = vsub.f32 %v1029, %v421
      %v1094 = vsub.f32 %v1030, %v422
      %v1095 = vsub.f32 %v1031, %v423
      %v1096 = vsub.f32 %v1032, %v424
      %v1097 = vsub.f32 %v1033, %v425
      %v1098 = vmul.f32 %v1034, %v170
      %v1099 = vmul.f32 %v1035, %v171
      %v1100 = vmul.f32 %v1036, %v172
      %v1101 = vmul.f32 %v1037, %v173
      %v1102 = vmul.f32 %v1038, %v174
      %v1103 = vmul.f32 %v1039, %v175
      %v1104 = vmul.f32 %v1040, %v176
      %v1105 = vmul.f32 %v1041, %v177
      %v1106 = vmul.f32 %v1042, %v178
      %v1107 = vmul.f32 %v1043, %v179
      %v1108 = vmul.f32 %v1044, %v180
      %v1109 = vmul.f32 %v1045, %v181
      %v1110 = vmul.f32 %v1046, %v182
      %v1111 = vmul.f32 %v1047, %v183
      %v1112 = vmul.f32 %v1048, %v184
      %v1113 = vmul.f32 %v1049, %v185
      %v1114 = vmul.f32 %v1050, %v186
      %v1115 = vmul.f32 %v1051, %v187
      %v1116 = vmul.f32 %v1052, %v188
      %v1117 = vmul.f32 %v1053, %v189
      %v1118 = vmul.f32 %v1054, %v190
      %v1119 = vmul.f32 %v1055, %v191
      %v1120 = vmul.f32 %v1056, %v192
      %v1121 = vmul.f32 %v1057, %v193
      %v1122 = vmul.f32 %v1058, %v194
      %v1123 = vmul.f32 %v1059, %v195
      %v1124 = vmul.f32 %v1060, %v196
      %v1125 = vmul.f32 %v1061, %v197
      %v1126 = vmul.f32 %v1062, %v198
      %v1127 = vmul.f32 %v1063, %v199
      %v1128 = vmul.f32 %v1064, %v200
      %v1129 = vmul.f32 %v1065, %v201
      %v1130 = vmul.f32 %v1066, %v202
      %v1131 = vmul.f32 %v1067, %v203
      %v1132 = vmul.f32 %v1068, %v204
      %v1133 = vmul.f32 %v1069, %v205
      %v1134 = vmul.f32 %v1070, %v206
      %v1135 = vmul.f32 %v1071, %v207
      %v1136 = vmul.f32 %v1072, %v208
      %v1137 = vmul.f32 %v1073, %v209
      %v1138 = vmul.f32 %v1074, %v210
      %v1139 = vmul.f32 %v1075, %v211
      %v1140 = vmul.f32 %v1076, %v212
      %v1141 = vmul.f32 %v1077, %v213
      %v1142 = vmul.f32 %v1078, %v214
      %v1143 = vmul.f32 %v1079, %v215
      %v1144 = vmul.f32 %v1080, %v216
      %v1145 = vmul.f32 %v1081, %v217
      %v1146 = vmul.f32 %v1082, %v218
      %v1147 = vmul.f32 %v1083, %v219
      %v1148 = vmul.f32 %v1084, %v220
      %v1149 = vmul.f32 %v1085, %v221
      %v1150 = vmul.f32 %v1086, %v222
      %v1151 = vmul.f32 %v1087, %v223
      %v1152 = vmul.f32 %v1088, %v224
      %v1153 = vmul.f32 %v1089, %v225
      %v1154 = vmul.f32 %v1090, %v226
      %v1155 = vmul.f32 %v1091, %v227
      %v1156 = vmul.f32 %v1092, %v228
      %v1157 = vmul.f32 %v1093, %v229
      %v1158 = vmul.f32 %v1094, %v230
      %v1159 = vmul.f32 %v1095, %v231
      %v1160 = vmul.f32 %v1096, %v232
      %v1161 = vmul.f32 %v1097, %v233
      %v1162 = vpack.c.bf16 %v1102, %v1098
      %v1163 = vpack.c.bf16 %v1103, %v1099
      %v1164 = vpack.c.bf16 %v1104, %v1100
      %v1165 = vpack.c.bf16 %v1105, %v1101
      %v1166 = vpack.c.bf16 %v1110, %v1106
      %v1167 = vpack.c.bf16 %v1111, %v1107
      %v1168 = vpack.c.bf16 %v1112, %v1108
      %v1169 = vpack.c.bf16 %v1113, %v1109
      %v1170 = vpack.c.bf16 %v1118, %v1114
      %v1171 = vpack.c.bf16 %v1119, %v1115
      %v1172 = vpack.c.bf16 %v1120, %v1116
      %v1173 = vpack.c.bf16 %v1121, %v1117
      %v1174 = vpack.c.bf16 %v1126, %v1122
      %v1175 = vpack.c.bf16 %v1127, %v1123
      %v1176 = vpack.c.bf16 %v1128, %v1124
      %v1177 = vpack.c.bf16 %v1129, %v1125
      %v1178 = vpack.c.bf16 %v1134, %v1130
      %v1179 = vpack.c.bf16 %v1135, %v1131
      %v1180 = vpack.c.bf16 %v1136, %v1132
      %v1181 = vpack.c.bf16 %v1137, %v1133
      %v1182 = vpack.c.bf16 %v1142, %v1138
      %v1183 = vpack.c.bf16 %v1143, %v1139
      %v1184 = vpack.c.bf16 %v1144, %v1140
      %v1185 = vpack.c.bf16 %v1145, %v1141
      %v1186 = vpack.c.bf16 %v1150, %v1146
      %v1187 = vpack.c.bf16 %v1151, %v1147
      %v1188 = vpack.c.bf16 %v1152, %v1148
      %v1189 = vpack.c.bf16 %v1153, %v1149
      %v1190 = vpack.c.bf16 %v1158, %v1154
      %v1191 = vpack.c.bf16 %v1159, %v1155
      %v1192 = vpack.c.bf16 %v1160, %v1156
      %v1193 = vpack.c.bf16 %v1161, %v1157
      %v1226 = vunpack.c.l.b16 %v1162
      %v1227 = vunpack.c.l.b16 %v1163
      %v1228 = vunpack.c.l.b16 %v1164
      %v1229 = vunpack.c.l.b16 %v1165
      %v1230 = vunpack.c.h.b16 %v1162
      %v1231 = vunpack.c.h.b16 %v1163
      %v1232 = vunpack.c.h.b16 %v1164
      %v1233 = vunpack.c.h.b16 %v1165
      %v1234 = vunpack.c.l.b16 %v1166
      %v1235 = vunpack.c.l.b16 %v1167
      %v1236 = vunpack.c.l.b16 %v1168
      %v1237 = vunpack.c.l.b16 %v1169
      %v1238 = vunpack.c.h.b16 %v1166
      %v1239 = vunpack.c.h.b16 %v1167
      %v1240 = vunpack.c.h.b16 %v1168
      %v1241 = vunpack.c.h.b16 %v1169
      %v1242 = vunpack.c.l.b16 %v1170
      %v1243 = vunpack.c.l.b16 %v1171
      %v1244 = vunpack.c.l.b16 %v1172
      %v1245 = vunpack.c.l.b16 %v1173
      %v1246 = vunpack.c.h.b16 %v1170
      %v1247 = vunpack.c.h.b16 %v1171
      %v1248 = vunpack.c.h.b16 %v1172
      %v1249 = vunpack.c.h.b16 %v1173
      %v1250 = vunpack.c.l.b16 %v1174
      %v1251 = vunpack.c.l.b16 %v1175
      %v1252 = vunpack.c.l.b16 %v1176
      %v1253 = vunpack.c.l.b16 %v1177
      %v1254 = vunpack.c.h.b16 %v1174
      %v1255 = vunpack.c.h.b16 %v1175
      %v1256 = vunpack.c.h.b16 %v1176
      %v1257 = vunpack.c.h.b16 %v1177
      %v1258 = vunpack.c.l.b16 %v1178
      %v1259 = vunpack.c.l.b16 %v1179
      %v1260 = vunpack.c.l.b16 %v1180
      %v1261 = vunpack.c.l.b16 %v1181
      %v1262 = vunpack.c.h.b16 %v1178
      %v1263 = vunpack.c.h.b16 %v1179
      %v1264 = vunpack.c.h.b16 %v1180
      %v1265 = vunpack.c.h.b16 %v1181
      %v1266 = vunpack.c.l.b16 %v1182
      %v1267 = vunpack.c.l.b16 %v1183
      %v1268 = vunpack.c.l.b16 %v1184
      %v1269 = vunpack.c.l.b16 %v1185
      %v1270 = vunpack.c.h.b16 %v1182
      %v1271 = vunpack.c.h.b16 %v1183
      %v1272 = vunpack.c.h.b16 %v1184
      %v1273 = vunpack.c.h.b16 %v1185
      %v1274 = vunpack.c.l.b16 %v1186
      %v1275 = vunpack.c.l.b16 %v1187
      %v1276 = vunpack.c.l.b16 %v1188
      %v1277 = vunpack.c.l.b16 %v1189
      %v1278 = vunpack.c.h.b16 %v1186
      %v1279 = vunpack.c.h.b16 %v1187
      %v1280 = vunpack.c.h.b16 %v1188
      %v1281 = vunpack.c.h.b16 %v1189
      %v1282 = vunpack.c.l.b16 %v1190
      %v1283 = vunpack.c.l.b16 %v1191
      %v1284 = vunpack.c.l.b16 %v1192
      %v1285 = vunpack.c.l.b16 %v1193
      %v1286 = vunpack.c.h.b16 %v1190
      %v1287 = vunpack.c.h.b16 %v1191
      %v1288 = vunpack.c.h.b16 %v1192
      %v1289 = vunpack.c.h.b16 %v1193
      %v1290 = vpack.c.b16 %v1227, %v1226
      %v1291 = vpack.c.b16 %v1229, %v1228
      %v1292 = vpack.c.b16 %v1231, %v1230
      %v1293 = vpack.c.b16 %v1233, %v1232
      %v1294 = vpack.c.b16 %v1235, %v1234
      %v1295 = vpack.c.b16 %v1237, %v1236
      %v1296 = vpack.c.b16 %v1239, %v1238
      %v1297 = vpack.c.b16 %v1241, %v1240
      %v1298 = vpack.c.b16 %v1243, %v1242
      %v1299 = vpack.c.b16 %v1245, %v1244
      %v1300 = vpack.c.b16 %v1247, %v1246
      %v1301 = vpack.c.b16 %v1249, %v1248
      %v1302 = vpack.c.b16 %v1251, %v1250
      %v1303 = vpack.c.b16 %v1253, %v1252
      %v1304 = vpack.c.b16 %v1255, %v1254
      %v1305 = vpack.c.b16 %v1257, %v1256
      %v1306 = vpack.c.b16 %v1259, %v1258
      %v1307 = vpack.c.b16 %v1261, %v1260
      %v1308 = vpack.c.b16 %v1263, %v1262
      %v1309 = vpack.c.b16 %v1265, %v1264
      %v1310 = vpack.c.b16 %v1267, %v1266
      %v1311 = vpack.c.b16 %v1269, %v1268
      %v1312 = vpack.c.b16 %v1271, %v1270
      %v1313 = vpack.c.b16 %v1273, %v1272
      %v1314 = vpack.c.b16 %v1275, %v1274
      %v1315 = vpack.c.b16 %v1277, %v1276
      %v1316 = vpack.c.b16 %v1279, %v1278
      %v1317 = vpack.c.b16 %v1281, %v1280
      %v1318 = vpack.c.b16 %v1283, %v1282
      %v1319 = vpack.c.b16 %v1285, %v1284
      %v1320 = vpack.c.b16 %v1287, %v1286
      %v1321 = vpack.c.b16 %v1289, %v1288
      %1354 = vst [vmem:[#allocation3] sm:$0xff] %v1290
      %1355 = vst [vmem:[#allocation3 + $0x8] sm:$0xff] %v1291
      %1356 = vst [vmem:[#allocation3 + $0x10] sm:$0xff] %v1292
      %1357 = vst [vmem:[#allocation3 + $0x18] sm:$0xff] %v1293
      %1358 = vst [vmem:[#allocation3 + $0x20] sm:$0xff] %v1294
      %1359 = vst [vmem:[#allocation3 + $0x28] sm:$0xff] %v1295
      %1360 = vst [vmem:[#allocation3 + $0x30] sm:$0xff] %v1296
      %1361 = vst [vmem:[#allocation3 + $0x38] sm:$0xff] %v1297
      %1362 = vst [vmem:[#allocation3 + $0x40] sm:$0xff] %v1298
      %1363 = vst [vmem:[#allocation3 + $0x48] sm:$0xff] %v1299
      %1364 = vst [vmem:[#allocation3 + $0x50] sm:$0xff] %v1300
      %1365 = vst [vmem:[#allocation3 + $0x58] sm:$0xff] %v1301
      %1366 = vst [vmem:[#allocation3 + $0x60] sm:$0xff] %v1302
      %1367 = vst [vmem:[#allocation3 + $0x68] sm:$0xff] %v1303
      %1368 = vst [vmem:[#allocation3 + $0x70] sm:$0xff] %v1304
      %1369 = vst [vmem:[#allocation3 + $0x78] sm:$0xff] %v1305
      %1370 = vst [vmem:[#allocation3 + $0x80] sm:$0xff] %v1306
      %1371 = vst [vmem:[#allocation3 + $0x88] sm:$0xff] %v1307
      %1372 = vst [vmem:[#allocation3 + $0x90] sm:$0xff] %v1308
      %1373 = vst [vmem:[#allocation3 + $0x98] sm:$0xff] %v1309
      %1374 = vst [vmem:[#allocation3 + $0xa0] sm:$0xff] %v1310
      %1375 = vst [vmem:[#allocation3 + $0xa8] sm:$0xff] %v1311
      %1376 = vst [vmem:[#allocation3 + $0xb0] sm:$0xff] %v1312
      %1377 = vst [vmem:[#allocation3 + $0xb8] sm:$0xff] %v1313
      %1378 = vst [vmem:[#allocation3 + $0xc0] sm:$0xff] %v1314
      %1379 = vst [vmem:[#allocation3 + $0xc8] sm:$0xff] %v1315
      %1380 = vst [vmem:[#allocation3 + $0xd0] sm:$0xff] %v1316
      %1381 = vst [vmem:[#allocation3 + $0xd8] sm:$0xff] %v1317
      %1382 = vst [vmem:[#allocation3 + $0xe0] sm:$0xff] %v1318
      %1383 = vst [vmem:[#allocation3 + $0xe8] sm:$0xff] %v1319
      %1384 = vst [vmem:[#allocation3 + $0xf0] sm:$0xff] %v1320
      %1385 = vst [vmem:[#allocation3 + $0xf8] sm:$0xff] %v1321
    $region21: #{llama_mlp_forward.3} parent=1 // pred_fallthru
      _
    %s1386 = smul.u32 0, 256
    %v1387 = vld [vmem:[#allocation3] sm:$0xff]
    %v1388 = vld [vmem:[#allocation3 + $0x8] sm:$0xff]
    %v1389 = vld [vmem:[#allocation3 + $0x10] sm:$0xff]
    %v1390 = vld [vmem:[#allocation3 + $0x18] sm:$0xff]
    %v1391 = vld [vmem:[#allocation3 + $0x20] sm:$0xff]
    %v1392 = vld [vmem:[#allocation3 + $0x28] sm:$0xff]
    %v1393 = vld [vmem:[#allocation3 + $0x30] sm:$0xff]
    %v1394 = vld [vmem:[#allocation3 + $0x38] sm:$0xff]
    %v1395 = vld [vmem:[#allocation3 + $0x40] sm:$0xff]
    %v1396 = vld [vmem:[#allocation3 + $0x48] sm:$0xff]
    %v1397 = vld [vmem:[#allocation3 + $0x50] sm:$0xff]
    %v1398 = vld [vmem:[#allocation3 + $0x58] sm:$0xff]
    %v1399 = vld [vmem:[#allocation3 + $0x60] sm:$0xff]
    %v1400 = vld [vmem:[#allocation3 + $0x68] sm:$0xff]
    %v1401 = vld [vmem:[#allocation3 + $0x70] sm:$0xff]
    %v1402 = vld [vmem:[#allocation3 + $0x78] sm:$0xff]
    %v1403 = vld [vmem:[#allocation3 + $0x80] sm:$0xff]
    %v1404 = vld [vmem:[#allocation3 + $0x88] sm:$0xff]
    %v1405 = vld [vmem:[#allocation3 + $0x90] sm:$0xff]
    %v1406 = vld [vmem:[#allocation3 + $0x98] sm:$0xff]
    %v1407 = vld [vmem:[#allocation3 + $0xa0] sm:$0xff]
    %v1408 = vld [vmem:[#allocation3 + $0xa8] sm:$0xff]
    %v1409 = vld [vmem:[#allocation3 + $0xb0] sm:$0xff]
    %v1410 = vld [vmem:[#allocation3 + $0xb8] sm:$0xff]
    %v1411 = vld [vmem:[#allocation3 + $0xc0] sm:$0xff]
    %v1412 = vld [vmem:[#allocation3 + $0xc8] sm:$0xff]
    %v1413 = vld [vmem:[#allocation3 + $0xd0] sm:$0xff]
    %v1414 = vld [vmem:[#allocation3 + $0xd8] sm:$0xff]
    %v1415 = vld [vmem:[#allocation3 + $0xe0] sm:$0xff]
    %v1416 = vld [vmem:[#allocation3 + $0xe8] sm:$0xff]
    %v1417 = vld [vmem:[#allocation3 + $0xf0] sm:$0xff]
    %v1418 = vld [vmem:[#allocation3 + $0xf8] sm:$0xff]
    %v1419 = vld [vmem:[%s3] sm:$0xff]
    %v1420 = vld [vmem:[%s3 + $0x8] sm:$0xff]
    %v1421 = vld [vmem:[%s3 + $0x10] sm:$0xff]
    %v1422 = vld [vmem:[%s3 + $0x18] sm:$0xff]
    %v1423 = vld [vmem:[%s3 + $0x20] sm:$0xff]
    %v1424 = vld [vmem:[%s3 + $0x28] sm:$0xff]
    %v1425 = vld [vmem:[%s3 + $0x30] sm:$0xff]
    %v1426 = vld [vmem:[%s3 + $0x38] sm:$0xff]
    %v1427 = vld [vmem:[%s3 + $0x40] sm:$0xff]
    %v1428 = vld [vmem:[%s3 + $0x48] sm:$0xff]
    %v1429 = vld [vmem:[%s3 + $0x50] sm:$0xff]
    %v1430 = vld [vmem:[%s3 + $0x58] sm:$0xff]
    %v1431 = vld [vmem:[%s3 + $0x60] sm:$0xff]
    %v1432 = vld [vmem:[%s3 + $0x68] sm:$0xff]
    %v1433 = vld [vmem:[%s3 + $0x70] sm:$0xff]
    %v1434 = vld [vmem:[%s3 + $0x78] sm:$0xff]
    %v1435 = vld [vmem:[%s3 + $0x80] sm:$0xff]
    %v1436 = vld [vmem:[%s3 + $0x88] sm:$0xff]
    %v1437 = vld [vmem:[%s3 + $0x90] sm:$0xff]
    %v1438 = vld [vmem:[%s3 + $0x98] sm:$0xff]
    %v1439 = vld [vmem:[%s3 + $0xa0] sm:$0xff]
    %v1440 = vld [vmem:[%s3 + $0xa8] sm:$0xff]
    %v1441 = vld [vmem:[%s3 + $0xb0] sm:$0xff]
    %v1442 = vld [vmem:[%s3 + $0xb8] sm:$0xff]
    %v1443 = vld [vmem:[%s3 + $0xc0] sm:$0xff]
    %v1444 = vld [vmem:[%s3 + $0xc8] sm:$0xff]
    %v1445 = vld [vmem:[%s3 + $0xd0] sm:$0xff]
    %v1446 = vld [vmem:[%s3 + $0xd8] sm:$0xff]
    %v1447 = vld [vmem:[%s3 + $0xe0] sm:$0xff]
    %v1448 = vld [vmem:[%s3 + $0xe8] sm:$0xff]
    %v1449 = vld [vmem:[%s3 + $0xf0] sm:$0xff]
    %v1450 = vld [vmem:[%s3 + $0xf8] sm:$0xff]
    %v1451 = vld [vmem:[%s3 + $0x100] sm:$0xff]
    %v1452 = vld [vmem:[%s3 + $0x108] sm:$0xff]
    %v1453 = vld [vmem:[%s3 + $0x110] sm:$0xff]
    %v1454 = vld [vmem:[%s3 + $0x118] sm:$0xff]
    %v1455 = vld [vmem:[%s3 + $0x120] sm:$0xff]
    %v1456 = vld [vmem:[%s3 + $0x128] sm:$0xff]
    %v1457 = vld [vmem:[%s3 + $0x130] sm:$0xff]
    %v1458 = vld [vmem:[%s3 + $0x138] sm:$0xff]
    %v1459 = vld [vmem:[%s3 + $0x140] sm:$0xff]
    %v1460 = vld [vmem:[%s3 + $0x148] sm:$0xff]
    %v1461 = vld [vmem:[%s3 + $0x150] sm:$0xff]
    %v1462 = vld [vmem:[%s3 + $0x158] sm:$0xff]
    %v1463 = vld [vmem:[%s3 + $0x160] sm:$0xff]
    %v1464 = vld [vmem:[%s3 + $0x168] sm:$0xff]
    %v1465 = vld [vmem:[%s3 + $0x170] sm:$0xff]
    %v1466 = vld [vmem:[%s3 + $0x178] sm:$0xff]
    %v1467 = vld [vmem:[%s3 + $0x180] sm:$0xff]
    %v1468 = vld [vmem:[%s3 + $0x188] sm:$0xff]
    %v1469 = vld [vmem:[%s3 + $0x190] sm:$0xff]
    %v1470 = vld [vmem:[%s3 + $0x198] sm:$0xff]
    %v1471 = vld [vmem:[%s3 + $0x1a0] sm:$0xff]
    %v1472 = vld [vmem:[%s3 + $0x1a8] sm:$0xff]
    %v1473 = vld [vmem:[%s3 + $0x1b0] sm:$0xff]
    %v1474 = vld [vmem:[%s3 + $0x1b8] sm:$0xff]
    %v1475 = vld [vmem:[%s3 + $0x1c0] sm:$0xff]
    %v1476 = vld [vmem:[%s3 + $0x1c8] sm:$0xff]
    %v1477 = vld [vmem:[%s3 + $0x1d0] sm:$0xff]
    %v1478 = vld [vmem:[%s3 + $0x1d8] sm:$0xff]
    %v1479 = vld [vmem:[%s3 + $0x1e0] sm:$0xff]
    %v1480 = vld [vmem:[%s3 + $0x1e8] sm:$0xff]
    %v1481 = vld [vmem:[%s3 + $0x1f0] sm:$0xff]
    %v1482 = vld [vmem:[%s3 + $0x1f8] sm:$0xff]
    %v1515 = vunpack.c.l.b16 %v1387
    %v1516 = vunpack.c.h.b16 %v1387
    %v1517 = vunpack.c.l.b16 %v1388
    %v1518 = vunpack.c.h.b16 %v1388
    %v1519 = vunpack.c.l.b16 %v1389
    %v1520 = vunpack.c.h.b16 %v1389
    %v1521 = vunpack.c.l.b16 %v1390
    %v1522 = vunpack.c.h.b16 %v1390
    %v1523 = vunpack.c.l.b16 %v1391
    %v1524 = vunpack.c.h.b16 %v1391
    %v1525 = vunpack.c.l.b16 %v1392
    %v1526 = vunpack.c.h.b16 %v1392
    %v1527 = vunpack.c.l.b16 %v1393
    %v1528 = vunpack.c.h.b16 %v1393
    %v1529 = vunpack.c.l.b16 %v1394
    %v1530 = vunpack.c.h.b16 %v1394
    %v1531 = vunpack.c.l.b16 %v1395
    %v1532 = vunpack.c.h.b16 %v1395
    %v1533 = vunpack.c.l.b16 %v1396
    %v1534 = vunpack.c.h.b16 %v1396
    %v1535 = vunpack.c.l.b16 %v1397
    %v1536 = vunpack.c.h.b16 %v1397
    %v1537 = vunpack.c.l.b16 %v1398
    %v1538 = vunpack.c.h.b16 %v1398
    %v1539 = vunpack.c.l.b16 %v1399
    %v1540 = vunpack.c.h.b16 %v1399
    %v1541 = vunpack.c.l.b16 %v1400
    %v1542 = vunpack.c.h.b16 %v1400
    %v1543 = vunpack.c.l.b16 %v1401
    %v1544 = vunpack.c.h.b16 %v1401
    %v1545 = vunpack.c.l.b16 %v1402
    %v1546 = vunpack.c.h.b16 %v1402
    %v1547 = vunpack.c.l.b16 %v1403
    %v1548 = vunpack.c.h.b16 %v1403
    %v1549 = vunpack.c.l.b16 %v1404
    %v1550 = vunpack.c.h.b16 %v1404
    %v1551 = vunpack.c.l.b16 %v1405
    %v1552 = vunpack.c.h.b16 %v1405
    %v1553 = vunpack.c.l.b16 %v1406
    %v1554 = vunpack.c.h.b16 %v1406
    %v1555 = vunpack.c.l.b16 %v1407
    %v1556 = vunpack.c.h.b16 %v1407
    %v1557 = vunpack.c.l.b16 %v1408
    %v1558 = vunpack.c.h.b16 %v1408
    %v1559 = vunpack.c.l.b16 %v1409
    %v1560 = vunpack.c.h.b16 %v1409
    %v1561 = vunpack.c.l.b16 %v1410
    %v1562 = vunpack.c.h.b16 %v1410
    %v1563 = vunpack.c.l.b16 %v1411
    %v1564 = vunpack.c.h.b16 %v1411
    %v1565 = vunpack.c.l.b16 %v1412
    %v1566 = vunpack.c.h.b16 %v1412
    %v1567 = vunpack.c.l.b16 %v1413
    %v1568 = vunpack.c.h.b16 %v1413
    %v1569 = vunpack.c.l.b16 %v1414
    %v1570 = vunpack.c.h.b16 %v1414
    %v1571 = vunpack.c.l.b16 %v1415
    %v1572 = vunpack.c.h.b16 %v1415
    %v1573 = vunpack.c.l.b16 %v1416
    %v1574 = vunpack.c.h.b16 %v1416
    %v1575 = vunpack.c.l.b16 %v1417
    %v1576 = vunpack.c.h.b16 %v1417
    %v1577 = vunpack.c.l.b16 %v1418
    %v1578 = vunpack.c.h.b16 %v1418
    %v1579 = vpack.c.b16 %v1519, %v1515
    %v1580 = vpack.c.b16 %v1520, %v1516
    %v1581 = vpack.c.b16 %v1521, %v1517
    %v1582 = vpack.c.b16 %v1522, %v1518
    %v1583 = vpack.c.b16 %v1527, %v1523
    %v1584 = vpack.c.b16 %v1528, %v1524
    %v1585 = vpack.c.b16 %v1529, %v1525
    %v1586 = vpack.c.b16 %v1530, %v1526
    %v1587 = vpack.c.b16 %v1535, %v1531
    %v1588 = vpack.c.b16 %v1536, %v1532
    %v1589 = vpack.c.b16 %v1537, %v1533
    %v1590 = vpack.c.b16 %v1538, %v1534
    %v1591 = vpack.c.b16 %v1543, %v1539
    %v1592 = vpack.c.b16 %v1544, %v1540
    %v1593 = vpack.c.b16 %v1545, %v1541
    %v1594 = vpack.c.b16 %v1546, %v1542
    %v1595 = vpack.c.b16 %v1551, %v1547
    %v1596 = vpack.c.b16 %v1552, %v1548
    %v1597 = vpack.c.b16 %v1553, %v1549
    %v1598 = vpack.c.b16 %v1554, %v1550
    %v1599 = vpack.c.b16 %v1559, %v1555
    %v1600 = vpack.c.b16 %v1560, %v1556
    %v1601 = vpack.c.b16 %v1561, %v1557
    %v1602 = vpack.c.b16 %v1562, %v1558
    %v1603 = vpack.c.b16 %v1567, %v1563
    %v1604 = vpack.c.b16 %v1568, %v1564
    %v1605 = vpack.c.b16 %v1569, %v1565
    %v1606 = vpack.c.b16 %v1570, %v1566
    %v1607 = vpack.c.b16 %v1575, %v1571
    %v1608 = vpack.c.b16 %v1576, %v1572
    %v1609 = vpack.c.b16 %v1577, %v1573
    %v1610 = vpack.c.b16 %v1578, %v1574
    %v1707 = vunpack.c.l.b16 %v1419
    %v1708 = vunpack.c.h.b16 %v1419
    %v1709 = vunpack.c.l.b16 %v1420
    %v1710 = vunpack.c.h.b16 %v1420
    %v1711 = vunpack.c.l.b16 %v1421
    %v1712 = vunpack.c.h.b16 %v1421
    %v1713 = vunpack.c.l.b16 %v1422
    %v1714 = vunpack.c.h.b16 %v1422
    %v1715 = vunpack.c.l.b16 %v1423
    %v1716 = vunpack.c.h.b16 %v1423
    %v1717 = vunpack.c.l.b16 %v1424
    %v1718 = vunpack.c.h.b16 %v1424
    %v1719 = vunpack.c.l.b16 %v1425
    %v1720 = vunpack.c.h.b16 %v1425
    %v1721 = vunpack.c.l.b16 %v1426
    %v1722 = vunpack.c.h.b16 %v1426
    %v1723 = vunpack.c.l.b16 %v1427
    %v1724 = vunpack.c.h.b16 %v1427
    %v1725 = vunpack.c.l.b16 %v1428
    %v1726 = vunpack.c.h.b16 %v1428
    %v1727 = vunpack.c.l.b16 %v1429
    %v1728 = vunpack.c.h.b16 %v1429
    %v1729 = vunpack.c.l.b16 %v1430
    %v1730 = vunpack.c.h.b16 %v1430
    %v1731 = vunpack.c.l.b16 %v1431
    %v1732 = vunpack.c.h.b16 %v1431
    %v1733 = vunpack.c.l.b16 %v1432
    %v1734 = vunpack.c.h.b16 %v1432
    %v1735 = vunpack.c.l.b16 %v1433
    %v1736 = vunpack.c.h.b16 %v1433
    %v1737 = vunpack.c.l.b16 %v1434
    %v1738 = vunpack.c.h.b16 %v1434
    %v1739 = vunpack.c.l.b16 %v1435
    %v1740 = vunpack.c.h.b16 %v1435
    %v1741 = vunpack.c.l.b16 %v1436
    %v1742 = vunpack.c.h.b16 %v1436
    %v1743 = vunpack.c.l.b16 %v1437
    %v1744 = vunpack.c.h.b16 %v1437
    %v1745 = vunpack.c.l.b16 %v1438
    %v1746 = vunpack.c.h.b16 %v1438
    %v1747 = vunpack.c.l.b16 %v1439
    %v1748 = vunpack.c.h.b16 %v1439
    %v1749 = vunpack.c.l.b16 %v1440
    %v1750 = vunpack.c.h.b16 %v1440
    %v1751 = vunpack.c.l.b16 %v1441
    %v1752 = vunpack.c.h.b16 %v1441
    %v1753 = vunpack.c.l.b16 %v1442
    %v1754 = vunpack.c.h.b16 %v1442
    %v1755 = vunpack.c.l.b16 %v1443
    %v1756 = vunpack.c.h.b16 %v1443
    %v1757 = vunpack.c.l.b16 %v1444
    %v1758 = vunpack.c.h.b16 %v1444
    %v1759 = vunpack.c.l.b16 %v1445
    %v1760 = vunpack.c.h.b16 %v1445
    %v1761 = vunpack.c.l.b16 %v1446
    %v1762 = vunpack.c.h.b16 %v1446
    %v1763 = vunpack.c.l.b16 %v1447
    %v1764 = vunpack.c.h.b16 %v1447
    %v1765 = vunpack.c.l.b16 %v1448
    %v1766 = vunpack.c.h.b16 %v1448
    %v1767 = vunpack.c.l.b16 %v1449
    %v1768 = vunpack.c.h.b16 %v1449
    %v1769 = vunpack.c.l.b16 %v1450
    %v1770 = vunpack.c.h.b16 %v1450
    %v1771 = vunpack.c.l.b16 %v1451
    %v1772 = vunpack.c.h.b16 %v1451
    %v1773 = vunpack.c.l.b16 %v1452
    %v1774 = vunpack.c.h.b16 %v1452
    %v1775 = vunpack.c.l.b16 %v1453
    %v1776 = vunpack.c.h.b16 %v1453
    %v1777 = vunpack.c.l.b16 %v1454
    %v1778 = vunpack.c.h.b16 %v1454
    %v1779 = vunpack.c.l.b16 %v1455
    %v1780 = vunpack.c.h.b16 %v1455
    %v1781 = vunpack.c.l.b16 %v1456
    %v1782 = vunpack.c.h.b16 %v1456
    %v1783 = vunpack.c.l.b16 %v1457
    %v1784 = vunpack.c.h.b16 %v1457
    %v1785 = vunpack.c.l.b16 %v1458
    %v1786 = vunpack.c.h.b16 %v1458
    %v1787 = vunpack.c.l.b16 %v1459
    %v1788 = vunpack.c.h.b16 %v1459
    %v1789 = vunpack.c.l.b16 %v1460
    %v1790 = vunpack.c.h.b16 %v1460
    %v1791 = vunpack.c.l.b16 %v1461
    %v1792 = vunpack.c.h.b16 %v1461
    %v1793 = vunpack.c.l.b16 %v1462
    %v1794 = vunpack.c.h.b16 %v1462
    %v1795 = vunpack.c.l.b16 %v1463
    %v1796 = vunpack.c.h.b16 %v1463
    %v1797 = vunpack.c.l.b16 %v1464
    %v1798 = vunpack.c.h.b16 %v1464
    %v1799 = vunpack.c.l.b16 %v1465
    %v1800 = vunpack.c.h.b16 %v1465
    %v1801 = vunpack.c.l.b16 %v1466
    %v1802 = vunpack.c.h.b16 %v1466
    %v1803 = vunpack.c.l.b16 %v1467
    %v1804 = vunpack.c.h.b16 %v1467
    %v1805 = vunpack.c.l.b16 %v1468
    %v1806 = vunpack.c.h.b16 %v1468
    %v1807 = vunpack.c.l.b16 %v1469
    %v1808 = vunpack.c.h.b16 %v1469
    %v1809 = vunpack.c.l.b16 %v1470
    %v1810 = vunpack.c.h.b16 %v1470
    %v1811 = vunpack.c.l.b16 %v1471
    %v1812 = vunpack.c.h.b16 %v1471
    %v1813 = vunpack.c.l.b16 %v1472
    %v1814 = vunpack.c.h.b16 %v1472
    %v1815 = vunpack.c.l.b16 %v1473
    %v1816 = vunpack.c.h.b16 %v1473
    %v1817 = vunpack.c.l.b16 %v1474
    %v1818 = vunpack.c.h.b16 %v1474
    %v1819 = vunpack.c.l.b16 %v1475
    %v1820 = vunpack.c.h.b16 %v1475
    %v1821 = vunpack.c.l.b16 %v1476
    %v1822 = vunpack.c.h.b16 %v1476
    %v1823 = vunpack.c.l.b16 %v1477
    %v1824 = vunpack.c.h.b16 %v1477
    %v1825 = vunpack.c.l.b16 %v1478
    %v1826 = vunpack.c.h.b16 %v1478
    %v1827 = vunpack.c.l.b16 %v1479
    %v1828 = vunpack.c.h.b16 %v1479
    %v1829 = vunpack.c.l.b16 %v1480
    %v1830 = vunpack.c.h.b16 %v1480
    %v1831 = vunpack.c.l.b16 %v1481
    %v1832 = vunpack.c.h.b16 %v1481
    %v1833 = vunpack.c.l.b16 %v1482
    %v1834 = vunpack.c.h.b16 %v1482
    %v1835 = vpack.c.b16 %v1709, %v1707
    %v1836 = vpack.c.b16 %v1710, %v1708
    %v1837 = vpack.c.b16 %v1713, %v1711
    %v1838 = vpack.c.b16 %v1714, %v1712
    %v1839 = vpack.c.b16 %v1717, %v1715
    %v1840 = vpack.c.b16 %v1718, %v1716
    %v1841 = vpack.c.b16 %v1721, %v1719
    %v1842 = vpack.c.b16 %v1722, %v1720
    %v1843 = vpack.c.b16 %v1725, %v1723
    %v1844 = vpack.c.b16 %v1726, %v1724
    %v1845 = vpack.c.b16 %v1729, %v1727
    %v1846 = vpack.c.b16 %v1730, %v1728
    %v1847 = vpack.c.b16 %v1733, %v1731
    %v1848 = vpack.c.b16 %v1734, %v1732
    %v1849 = vpack.c.b16 %v1737, %v1735
    %v1850 = vpack.c.b16 %v1738, %v1736
    %v1851 = vpack.c.b16 %v1741, %v1739
    %v1852 = vpack.c.b16 %v1742, %v1740
    %v1853 = vpack.c.b16 %v1745, %v1743
    %v1854 = vpack.c.b16 %v1746, %v1744
    %v1855 = vpack.c.b16 %v1749, %v1747
    %v1856 = vpack.c.b16 %v1750, %v1748
    %v1857 = vpack.c.b16 %v1753, %v1751
    %v1858 = vpack.c.b16 %v1754, %v1752
    %v1859 = vpack.c.b16 %v1757, %v1755
    %v1860 = vpack.c.b16 %v1758, %v1756
    %v1861 = vpack.c.b16 %v1761, %v1759
    %v1862 = vpack.c.b16 %v1762, %v1760
    %v1863 = vpack.c.b16 %v1765, %v1763
    %v1864 = vpack.c.b16 %v1766, %v1764
    %v1865 = vpack.c.b16 %v1769, %v1767
    %v1866 = vpack.c.b16 %v1770, %v1768
    %v1867 = vpack.c.b16 %v1773, %v1771
    %v1868 = vpack.c.b16 %v1774, %v1772
    %v1869 = vpack.c.b16 %v1777, %v1775
    %v1870 = vpack.c.b16 %v1778, %v1776
    %v1871 = vpack.c.b16 %v1781, %v1779
    %v1872 = vpack.c.b16 %v1782, %v1780
    %v1873 = vpack.c.b16 %v1785, %v1783
    %v1874 = vpack.c.b16 %v1786, %v1784
    %v1875 = vpack.c.b16 %v1789, %v1787
    %v1876 = vpack.c.b16 %v1790, %v1788
    %v1877 = vpack.c.b16 %v1793, %v1791
    %v1878 = vpack.c.b16 %v1794, %v1792
    %v1879 = vpack.c.b16 %v1797, %v1795
    %v1880 = vpack.c.b16 %v1798, %v1796
    %v1881 = vpack.c.b16 %v1801, %v1799
    %v1882 = vpack.c.b16 %v1802, %v1800
    %v1883 = vpack.c.b16 %v1805, %v1803
    %v1884 = vpack.c.b16 %v1806, %v1804
    %v1885 = vpack.c.b16 %v1809, %v1807
    %v1886 = vpack.c.b16 %v1810, %v1808
    %v1887 = vpack.c.b16 %v1813, %v1811
    %v1888 = vpack.c.b16 %v1814, %v1812
    %v1889 = vpack.c.b16 %v1817, %v1815
    %v1890 = vpack.c.b16 %v1818, %v1816
    %v1891 = vpack.c.b16 %v1821, %v1819
    %v1892 = vpack.c.b16 %v1822, %v1820
    %v1893 = vpack.c.b16 %v1825, %v1823
    %v1894 = vpack.c.b16 %v1826, %v1824
    %v1895 = vpack.c.b16 %v1829, %v1827
    %v1896 = vpack.c.b16 %v1830, %v1828
    %v1897 = vpack.c.b16 %v1833, %v1831
    %v1898 = vpack.c.b16 %v1834, %v1832
    %1963 = vmatprep.subr.bf16.mxu0 %v1850
    %1964 = vmatpush1.bf16.msra.mxu0 %v1849
    %1965 = vmatprep.subr.bf16.mxu0 %v1848
    %1966 = vmatpush1.bf16.msra.mxu0 %v1847
    %1967 = vmatprep.subr.bf16.mxu0 %v1846
    %1968 = vmatpush1.bf16.msra.mxu0 %v1845
    %1969 = vmatprep.subr.bf16.mxu0 %v1844
    %1970 = vmatpush1.bf16.msra.mxu0 %v1843
    %1971 = vmatprep.subr.bf16.mxu0 %v1842
    %1972 = vmatpush1.bf16.msra.mxu0 %v1841
    %1973 = vmatprep.subr.bf16.mxu0 %v1840
    %1974 = vmatpush1.bf16.msra.mxu0 %v1839
    %1975 = vmatprep.subr.bf16.mxu0 %v1838
    %1976 = vmatpush1.bf16.msra.mxu0 %v1837
    %1977 = vmatprep.subr.bf16.mxu0 %v1836
    %1978 = vmatpush1.bf16.msra.mxu0 %v1835
    %1979 = vmatprep.subr.bf16.mxu0 %v1866
    %1980 = vmatpush2.bf16.msra.mxu0 %v1865
    %1981 = vmatprep.subr.bf16.mxu0 %v1864
    %1982 = vmatpush2.bf16.msra.mxu0 %v1863
    %1983 = vmatprep.subr.bf16.mxu0 %v1862
    %1984 = vmatpush2.bf16.msra.mxu0 %v1861
    %1985 = vmatprep.subr.bf16.mxu0 %v1860
    %1986 = vmatpush2.bf16.msra.mxu0 %v1859
    %1987 = vmatprep.subr.bf16.mxu0 %v1858
    %1988 = vmatpush2.bf16.msra.mxu0 %v1857
    %1989 = vmatprep.subr.bf16.mxu0 %v1856
    %1990 = vmatpush2.bf16.msra.mxu0 %v1855
    %1991 = vmatprep.subr.bf16.mxu0 %v1854
    %1992 = vmatpush2.bf16.msra.mxu0 %v1853
    %1993 = vmatprep.subr.bf16.mxu0 %v1852
    %1994 = vmatpush2.bf16.msra.mxu0 %v1851
    %1995 = vmatprep.mubr.bf16.mxu0 %v1580
    %1996 = vmatmul.mubr.bf16.gmra.mxu0 %v1579
    %v1997 = vpop.f32.mrf.mxu0
    %v1998 = vadd.f32 0.0, %v1997
    %v1999 = vpop.f32.mrf.mxu0
    %v2000 = vadd.f32 0.0, %v1999
    %v2001 = vpop.f32.mrf.mxu0
    %v2002 = vadd.f32 0.0, %v2001
    %v2003 = vpop.f32.mrf.mxu0
    %v2004 = vadd.f32 0.0, %v2003
    %2005 = vmatprep.mubr.bf16.mxu0 %v1584
    %2006 = vmatmul.mubr.bf16.gmra.mxu0 %v1583
    %v2007 = vpop.f32.mrf.mxu0
    %v2008 = vadd.f32 0.0, %v2007
    %v2009 = vpop.f32.mrf.mxu0
    %v2010 = vadd.f32 0.0, %v2009
    %v2011 = vpop.f32.mrf.mxu0
    %v2012 = vadd.f32 0.0, %v2011
    %v2013 = vpop.f32.mrf.mxu0
    %v2014 = vadd.f32 0.0, %v2013
    %2015 = vmatprep.mubr.bf16.mxu0 %v1588
    %2016 = vmatmul.mubr.bf16.gmra.mxu0 %v1587
    %v2017 = vpop.f32.mrf.mxu0
    %v2018 = vadd.f32 0.0, %v2017
    %v2019 = vpop.f32.mrf.mxu0
    %v2020 = vadd.f32 0.0, %v2019
    %v2021 = vpop.f32.mrf.mxu0
    %v2022 = vadd.f32 0.0, %v2021
    %v2023 = vpop.f32.mrf.mxu0
    %v2024 = vadd.f32 0.0, %v2023
    %2025 = vmatprep.mubr.bf16.mxu0 %v1592
    %2026 = vmatmul.mubr.bf16.gmra.mxu0 %v1591
    %v2027 = vpop.f32.mrf.mxu0
    %v2028 = vadd.f32 0.0, %v2027
    %v2029 = vpop.f32.mrf.mxu0
    %v2030 = vadd.f32 0.0, %v2029
    %v2031 = vpop.f32.mrf.mxu0
    %v2032 = vadd.f32 0.0, %v2031
    %v2033 = vpop.f32.mrf.mxu0
    %v2034 = vadd.f32 0.0, %v2033
    %2035 = vmatprep.mubr.bf16.mxu0 %v1596
    %2036 = vmatmul.mubr.bf16.gmra.mxu0 %v1595
    %v2037 = vpop.f32.mrf.mxu0
    %v2038 = vadd.f32 0.0, %v2037
    %v2039 = vpop.f32.mrf.mxu0
    %v2040 = vadd.f32 0.0, %v2039
    %v2041 = vpop.f32.mrf.mxu0
    %v2042 = vadd.f32 0.0, %v2041
    %v2043 = vpop.f32.mrf.mxu0
    %v2044 = vadd.f32 0.0, %v2043
    %2045 = vmatprep.mubr.bf16.mxu0 %v1600
    %2046 = vmatmul.mubr.bf16.gmra.mxu0 %v1599
    %v2047 = vpop.f32.mrf.mxu0
    %v2048 = vadd.f32 0.0, %v2047
    %v2049 = vpop.f32.mrf.mxu0
    %v2050 = vadd.f32 0.0, %v2049
    %v2051 = vpop.f32.mrf.mxu0
    %v2052 = vadd.f32 0.0, %v2051
    %v2053 = vpop.f32.mrf.mxu0
    %v2054 = vadd.f32 0.0, %v2053
    %2055 = vmatprep.mubr.bf16.mxu0 %v1604
    %2056 = vmatmul.mubr.bf16.gmra.mxu0 %v1603
    %v2057 = vpop.f32.mrf.mxu0
    %v2058 = vadd.f32 0.0, %v2057
    %v2059 = vpop.f32.mrf.mxu0
    %v2060 = vadd.f32 0.0, %v2059
    %v2061 = vpop.f32.mrf.mxu0
    %v2062 = vadd.f32 0.0, %v2061
    %v2063 = vpop.f32.mrf.mxu0
    %v2064 = vadd.f32 0.0, %v2063
    %2065 = vmatprep.mubr.bf16.mxu0 %v1608
    %2066 = vmatmul.mubr.bf16.gmra.mxu0 %v1607
    %v2067 = vpop.f32.mrf.mxu0
    %v2068 = vadd.f32 0.0, %v2067
    %v2069 = vpop.f32.mrf.mxu0
    %v2070 = vadd.f32 0.0, %v2069
    %v2071 = vpop.f32.mrf.mxu0
    %v2072 = vadd.f32 0.0, %v2071
    %v2073 = vpop.f32.mrf.mxu0
    %v2074 = vadd.f32 0.0, %v2073
    %2075 = vdwg.mxu0
    %2076 = vmatprep.subr.bf16.mxu0 %v1882
    %2077 = vmatpush1.bf16.msra.mxu0 %v1881
    %2078 = vmatprep.subr.bf16.mxu0 %v1880
    %2079 = vmatpush1.bf16.msra.mxu0 %v1879
    %2080 = vmatprep.subr.bf16.mxu0 %v1878
    %2081 = vmatpush1.bf16.msra.mxu0 %v1877
    %2082 = vmatprep.subr.bf16.mxu0 %v1876
    %2083 = vmatpush1.bf16.msra.mxu0 %v1875
    %2084 = vmatprep.subr.bf16.mxu0 %v1874
    %2085 = vmatpush1.bf16.msra.mxu0 %v1873
    %2086 = vmatprep.subr.bf16.mxu0 %v1872
    %2087 = vmatpush1.bf16.msra.mxu0 %v1871
    %2088 = vmatprep.subr.bf16.mxu0 %v1870
    %2089 = vmatpush1.bf16.msra.mxu0 %v1869
    %2090 = vmatprep.subr.bf16.mxu0 %v1868
    %2091 = vmatpush1.bf16.msra.mxu0 %v1867
    %2092 = vmatprep.subr.bf16.mxu0 %v1898
    %2093 = vmatpush2.bf16.msra.mxu0 %v1897
    %2094 = vmatprep.subr.bf16.mxu0 %v1896
    %2095 = vmatpush2.bf16.msra.mxu0 %v1895
    %2096 = vmatprep.subr.bf16.mxu0 %v1894
    %2097 = vmatpush2.bf16.msra.mxu0 %v1893
    %2098 = vmatprep.subr.bf16.mxu0 %v1892
    %2099 = vmatpush2.bf16.msra.mxu0 %v1891
    %2100 = vmatprep.subr.bf16.mxu0 %v1890
    %2101 = vmatpush2.bf16.msra.mxu0 %v1889
    %2102 = vmatprep.subr.bf16.mxu0 %v1888
    %2103 = vmatpush2.bf16.msra.mxu0 %v1887
    %2104 = vmatprep.subr.bf16.mxu0 %v1886
    %2105 = vmatpush2.bf16.msra.mxu0 %v1885
    %2106 = vmatprep.subr.bf16.mxu0 %v1884
    %2107 = vmatpush2.bf16.msra.mxu0 %v1883
    %2108 = vmatprep.mubr.bf16.mxu0 %v1582
    %2109 = vmatmul.mubr.bf16.gmra.mxu0 %v1581
    %v2110 = vpop.f32.mrf.mxu0
    %v2111 = vadd.f32 %v1998, %v2110
    %v2112 = vpop.f32.mrf.mxu0
    %v2113 = vadd.f32 %v2000, %v2112
    %v2114 = vpop.f32.mrf.mxu0
    %v2115 = vadd.f32 %v2002, %v2114
    %v2116 = vpop.f32.mrf.mxu0
    %v2117 = vadd.f32 %v2004, %v2116
    %2118 = vmatprep.mubr.bf16.mxu0 %v1586
    %2119 = vmatmul.mubr.bf16.gmra.mxu0 %v1585
    %v2120 = vpop.f32.mrf.mxu0
    %v2121 = vadd.f32 %v2008, %v2120
    %v2122 = vpop.f32.mrf.mxu0
    %v2123 = vadd.f32 %v2010, %v2122
    %v2124 = vpop.f32.mrf.mxu0
    %v2125 = vadd.f32 %v2012, %v2124
    %v2126 = vpop.f32.mrf.mxu0
    %v2127 = vadd.f32 %v2014, %v2126
    %2128 = vmatprep.mubr.bf16.mxu0 %v1590
    %2129 = vmatmul.mubr.bf16.gmra.mxu0 %v1589
    %v2130 = vpop.f32.mrf.mxu0
    %v2131 = vadd.f32 %v2018, %v2130
    %v2132 = vpop.f32.mrf.mxu0
    %v2133 = vadd.f32 %v2020, %v2132
    %v2134 = vpop.f32.mrf.mxu0
    %v2135 = vadd.f32 %v2022, %v2134
    %v2136 = vpop.f32.mrf.mxu0
    %v2137 = vadd.f32 %v2024, %v2136
    %2138 = vmatprep.mubr.bf16.mxu0 %v1594
    %2139 = vmatmul.mubr.bf16.gmra.mxu0 %v1593
    %v2140 = vpop.f32.mrf.mxu0
    %v2141 = vadd.f32 %v2028, %v2140
    %v2142 = vpop.f32.mrf.mxu0
    %v2143 = vadd.f32 %v2030, %v2142
    %v2144 = vpop.f32.mrf.mxu0
    %v2145 = vadd.f32 %v2032, %v2144
    %v2146 = vpop.f32.mrf.mxu0
    %v2147 = vadd.f32 %v2034, %v2146
    %2148 = vmatprep.mubr.bf16.mxu0 %v1598
    %2149 = vmatmul.mubr.bf16.gmra.mxu0 %v1597
    %v2150 = vpop.f32.mrf.mxu0
    %v2151 = vadd.f32 %v2038, %v2150
    %v2152 = vpop.f32.mrf.mxu0
    %v2153 = vadd.f32 %v2040, %v2152
    %v2154 = vpop.f32.mrf.mxu0
    %v2155 = vadd.f32 %v2042, %v2154
    %v2156 = vpop.f32.mrf.mxu0
    %v2157 = vadd.f32 %v2044, %v2156
    %2158 = vmatprep.mubr.bf16.mxu0 %v1602
    %2159 = vmatmul.mubr.bf16.gmra.mxu0 %v1601
    %v2160 = vpop.f32.mrf.mxu0
    %v2161 = vadd.f32 %v2048, %v2160
    %v2162 = vpop.f32.mrf.mxu0
    %v2163 = vadd.f32 %v2050, %v2162
    %v2164 = vpop.f32.mrf.mxu0
    %v2165 = vadd.f32 %v2052, %v2164
    %v2166 = vpop.f32.mrf.mxu0
    %v2167 = vadd.f32 %v2054, %v2166
    %2168 = vmatprep.mubr.bf16.mxu0 %v1606
    %2169 = vmatmul.mubr.bf16.gmra.mxu0 %v1605
    %v2170 = vpop.f32.mrf.mxu0
    %v2171 = vadd.f32 %v2058, %v2170
    %v2172 = vpop.f32.mrf.mxu0
    %v2173 = vadd.f32 %v2060, %v2172
    %v2174 = vpop.f32.mrf.mxu0
    %v2175 = vadd.f32 %v2062, %v2174
    %v2176 = vpop.f32.mrf.mxu0
    %v2177 = vadd.f32 %v2064, %v2176
    %2178 = vmatprep.mubr.bf16.mxu0 %v1610
    %2179 = vmatmul.mubr.bf16.gmra.mxu0 %v1609
    %v2180 = vpop.f32.mrf.mxu0
    %v2181 = vadd.f32 %v2068, %v2180
    %v2182 = vpop.f32.mrf.mxu0
    %v2183 = vadd.f32 %v2070, %v2182
    %v2184 = vpop.f32.mrf.mxu0
    %v2185 = vadd.f32 %v2072, %v2184
    %v2186 = vpop.f32.mrf.mxu0
    %v2187 = vadd.f32 %v2074, %v2186
    %2188 = vdwg.mxu0
    %p2189 = scmp.eq.s32.totalorder 0, 0
    // Predicated region
    $region22: #{llama_mlp_forward.3} parent=1 // pred_check
      %p2190 = pneg %p2189
    $region23: #{llama_mlp_forward.3} parent=1 // pred_check_branch
      %2192 = sbr.rel (%p2190) target = $region25
    $region24: #{llama_mlp_forward.3} parent=1 // pred_region
      %s2193 = sshra.s32 %s1386, 7
      %s2194 = sand.u32 %s1386, 127
      %s2195 = smul.addr %s2193, 8
      %s2196 = scalar_lea.vmem [#allocation2], %s2195
      %2197 = vst [vmem:[%s2196] sm:$0xff] %v2111
      %2198 = vst [vmem:[%s2196 + $0x8] sm:$0xff] %v2113
      %2199 = vst [vmem:[%s2196 + $0x10] sm:$0xff] %v2115
      %2200 = vst [vmem:[%s2196 + $0x18] sm:$0xff] %v2117
      %2201 = vst [vmem:[%s2196 + $0x20] sm:$0xff] %v2121
      %2202 = vst [vmem:[%s2196 + $0x28] sm:$0xff] %v2123
      %2203 = vst [vmem:[%s2196 + $0x30] sm:$0xff] %v2125
      %2204 = vst [vmem:[%s2196 + $0x38] sm:$0xff] %v2127
      %2205 = vst [vmem:[%s2196 + $0x40] sm:$0xff] %v2131
      %2206 = vst [vmem:[%s2196 + $0x48] sm:$0xff] %v2133
      %2207 = vst [vmem:[%s2196 + $0x50] sm:$0xff] %v2135
      %2208 = vst [vmem:[%s2196 + $0x58] sm:$0xff] %v2137
      %2209 = vst [vmem:[%s2196 + $0x60] sm:$0xff] %v2141
      %2210 = vst [vmem:[%s2196 + $0x68] sm:$0xff] %v2143
      %2211 = vst [vmem:[%s2196 + $0x70] sm:$0xff] %v2145
      %2212 = vst [vmem:[%s2196 + $0x78] sm:$0xff] %v2147
      %2213 = vst [vmem:[%s2196 + $0x80] sm:$0xff] %v2151
      %2214 = vst [vmem:[%s2196 + $0x88] sm:$0xff] %v2153
      %2215 = vst [vmem:[%s2196 + $0x90] sm:$0xff] %v2155
      %2216 = vst [vmem:[%s2196 + $0x98] sm:$0xff] %v2157
      %2217 = vst [vmem:[%s2196 + $0xa0] sm:$0xff] %v2161
      %2218 = vst [vmem:[%s2196 + $0xa8] sm:$0xff] %v2163
      %2219 = vst [vmem:[%s2196 + $0xb0] sm:$0xff] %v2165
      %2220 = vst [vmem:[%s2196 + $0xb8] sm:$0xff] %v2167
      %2221 = vst [vmem:[%s2196 + $0xc0] sm:$0xff] %v2171
      %2222 = vst [vmem:[%s2196 + $0xc8] sm:$0xff] %v2173
      %2223 = vst [vmem:[%s2196 + $0xd0] sm:$0xff] %v2175
      %2224 = vst [vmem:[%s2196 + $0xd8] sm:$0xff] %v2177
      %2225 = vst [vmem:[%s2196 + $0xe0] sm:$0xff] %v2181
      %2226 = vst [vmem:[%s2196 + $0xe8] sm:$0xff] %v2183
      %2227 = vst [vmem:[%s2196 + $0xf0] sm:$0xff] %v2185
      %2228 = vst [vmem:[%s2196 + $0xf8] sm:$0xff] %v2187
    $region25: #{llama_mlp_forward.3} parent=1 // pred_fallthru
      _
    %p2229 = scmp.gt.s32.totalorder 0, 0
    // Predicated region
    $region26: #{llama_mlp_forward.3} parent=1 // pred_check
      %p2230 = pneg %p2229
    $region27: #{llama_mlp_forward.3} parent=1 // pred_check_branch
      %2232 = sbr.rel (%p2230) target = $region29
    $region28: #{llama_mlp_forward.3} parent=1 // pred_region
      %s2233 = sshra.s32 %s1386, 7
      %s2234 = sand.u32 %s1386, 127
      %s2235 = smul.addr %s2233, 8
      %s2236 = scalar_lea.vmem [#allocation2], %s2235
      %v2237 = vld [vmem:[%s2236] sm:$0xff]
      %v2238 = vld [vmem:[%s2236 + $0x8] sm:$0xff]
      %v2239 = vld [vmem:[%s2236 + $0x10] sm:$0xff]
      %v2240 = vld [vmem:[%s2236 + $0x18] sm:$0xff]
      %v2241 = vld [vmem:[%s2236 + $0x20] sm:$0xff]
      %v2242 = vld [vmem:[%s2236 + $0x28] sm:$0xff]
      %v2243 = vld [vmem:[%s2236 + $0x30] sm:$0xff]
      %v2244 = vld [vmem:[%s2236 + $0x38] sm:$0xff]
      %v2245 = vld [vmem:[%s2236 + $0x40] sm:$0xff]
      %v2246 = vld [vmem:[%s2236 + $0x48] sm:$0xff]
      %v2247 = vld [vmem:[%s2236 + $0x50] sm:$0xff]
      %v2248 = vld [vmem:[%s2236 + $0x58] sm:$0xff]
      %v2249 = vld [vmem:[%s2236 + $0x60] sm:$0xff]
      %v2250 = vld [vmem:[%s2236 + $0x68] sm:$0xff]
      %v2251 = vld [vmem:[%s2236 + $0x70] sm:$0xff]
      %v2252 = vld [vmem:[%s2236 + $0x78] sm:$0xff]
      %v2253 = vld [vmem:[%s2236 + $0x80] sm:$0xff]
      %v2254 = vld [vmem:[%s2236 + $0x88] sm:$0xff]
      %v2255 = vld [vmem:[%s2236 + $0x90] sm:$0xff]
      %v2256 = vld [vmem:[%s2236 + $0x98] sm:$0xff]
      %v2257 = vld [vmem:[%s2236 + $0xa0] sm:$0xff]
      %v2258 = vld [vmem:[%s2236 + $0xa8] sm:$0xff]
      %v2259 = vld [vmem:[%s2236 + $0xb0] sm:$0xff]
      %v2260 = vld [vmem:[%s2236 + $0xb8] sm:$0xff]
      %v2261 = vld [vmem:[%s2236 + $0xc0] sm:$0xff]
      %v2262 = vld [vmem:[%s2236 + $0xc8] sm:$0xff]
      %v2263 = vld [vmem:[%s2236 + $0xd0] sm:$0xff]
      %v2264 = vld [vmem:[%s2236 + $0xd8] sm:$0xff]
      %v2265 = vld [vmem:[%s2236 + $0xe0] sm:$0xff]
      %v2266 = vld [vmem:[%s2236 + $0xe8] sm:$0xff]
      %v2267 = vld [vmem:[%s2236 + $0xf0] sm:$0xff]
      %v2268 = vld [vmem:[%s2236 + $0xf8] sm:$0xff]
      %v2269 = vadd.f32 %v2237, %v2111
      %v2270 = vadd.f32 %v2238, %v2113
      %v2271 = vadd.f32 %v2239, %v2115
      %v2272 = vadd.f32 %v2240, %v2117
      %v2273 = vadd.f32 %v2241, %v2121
      %v2274 = vadd.f32 %v2242, %v2123
      %v2275 = vadd.f32 %v2243, %v2125
      %v2276 = vadd.f32 %v2244, %v2127
      %v2277 = vadd.f32 %v2245, %v2131
      %v2278 = vadd.f32 %v2246, %v2133
      %v2279 = vadd.f32 %v2247, %v2135
      %v2280 = vadd.f32 %v2248, %v2137
      %v2281 = vadd.f32 %v2249, %v2141
      %v2282 = vadd.f32 %v2250, %v2143
      %v2283 = vadd.f32 %v2251, %v2145
      %v2284 = vadd.f32 %v2252, %v2147
      %v2285 = vadd.f32 %v2253, %v2151
      %v2286 = vadd.f32 %v2254, %v2153
      %v2287 = vadd.f32 %v2255, %v2155
      %v2288 = vadd.f32 %v2256, %v2157
      %v2289 = vadd.f32 %v2257, %v2161
      %v2290 = vadd.f32 %v2258, %v2163
      %v2291 = vadd.f32 %v2259, %v2165
      %v2292 = vadd.f32 %v2260, %v2167
      %v2293 = vadd.f32 %v2261, %v2171
      %v2294 = vadd.f32 %v2262, %v2173
      %v2295 = vadd.f32 %v2263, %v2175
      %v2296 = vadd.f32 %v2264, %v2177
      %v2297 = vadd.f32 %v2265, %v2181
      %v2298 = vadd.f32 %v2266, %v2183
      %v2299 = vadd.f32 %v2267, %v2185
      %v2300 = vadd.f32 %v2268, %v2187
      %2301 = vst [vmem:[%s2236] sm:$0xff] %v2269
      %2302 = vst [vmem:[%s2236 + $0x8] sm:$0xff] %v2270
      %2303 = vst [vmem:[%s2236 + $0x10] sm:$0xff] %v2271
      %2304 = vst [vmem:[%s2236 + $0x18] sm:$0xff] %v2272
      %2305 = vst [vmem:[%s2236 + $0x20] sm:$0xff] %v2273
      %2306 = vst [vmem:[%s2236 + $0x28] sm:$0xff] %v2274
      %2307 = vst [vmem:[%s2236 + $0x30] sm:$0xff] %v2275
      %2308 = vst [vmem:[%s2236 + $0x38] sm:$0xff] %v2276
      %2309 = vst [vmem:[%s2236 + $0x40] sm:$0xff] %v2277
      %2310 = vst [vmem:[%s2236 + $0x48] sm:$0xff] %v2278
      %2311 = vst [vmem:[%s2236 + $0x50] sm:$0xff] %v2279
      %2312 = vst [vmem:[%s2236 + $0x58] sm:$0xff] %v2280
      %2313 = vst [vmem:[%s2236 + $0x60] sm:$0xff] %v2281
      %2314 = vst [vmem:[%s2236 + $0x68] sm:$0xff] %v2282
      %2315 = vst [vmem:[%s2236 + $0x70] sm:$0xff] %v2283
      %2316 = vst [vmem:[%s2236 + $0x78] sm:$0xff] %v2284
      %2317 = vst [vmem:[%s2236 + $0x80] sm:$0xff] %v2285
      %2318 = vst [vmem:[%s2236 + $0x88] sm:$0xff] %v2286
      %2319 = vst [vmem:[%s2236 + $0x90] sm:$0xff] %v2287
      %2320 = vst [vmem:[%s2236 + $0x98] sm:$0xff] %v2288
      %2321 = vst [vmem:[%s2236 + $0xa0] sm:$0xff] %v2289
      %2322 = vst [vmem:[%s2236 + $0xa8] sm:$0xff] %v2290
      %2323 = vst [vmem:[%s2236 + $0xb0] sm:$0xff] %v2291
      %2324 = vst [vmem:[%s2236 + $0xb8] sm:$0xff] %v2292
      %2325 = vst [vmem:[%s2236 + $0xc0] sm:$0xff] %v2293
      %2326 = vst [vmem:[%s2236 + $0xc8] sm:$0xff] %v2294
      %2327 = vst [vmem:[%s2236 + $0xd0] sm:$0xff] %v2295
      %2328 = vst [vmem:[%s2236 + $0xd8] sm:$0xff] %v2296
      %2329 = vst [vmem:[%s2236 + $0xe0] sm:$0xff] %v2297
      %2330 = vst [vmem:[%s2236 + $0xe8] sm:$0xff] %v2298
      %2331 = vst [vmem:[%s2236 + $0xf0] sm:$0xff] %v2299
      %2332 = vst [vmem:[%s2236 + $0xf8] sm:$0xff] %v2300
    $region29: #{llama_mlp_forward.3} parent=1 // pred_fallthru
      _
    // Predicated region
    $region30: #{llama_mlp_forward.3} parent=1 // pred_check
      %p2333 = pneg %p2189
    $region31: #{llama_mlp_forward.3} parent=1 // pred_check_branch
      %2335 = sbr.rel (%p2333) target = $region33
    $region32: #{llama_mlp_forward.3} parent=1 // pred_region
      %s2336 = sshra.s32 %s1386, 7
      %s2337 = sand.u32 %s1386, 127
      %s2338 = smul.addr %s2336, 8
      %s2339 = scalar_lea.vmem [#allocation2], %s2338
      %v2340 = vld [vmem:[%s2339] sm:$0xff]
      %v2341 = vld [vmem:[%s2339 + $0x8] sm:$0xff]
      %v2342 = vld [vmem:[%s2339 + $0x10] sm:$0xff]
      %v2343 = vld [vmem:[%s2339 + $0x18] sm:$0xff]
      %v2344 = vld [vmem:[%s2339 + $0x20] sm:$0xff]
      %v2345 = vld [vmem:[%s2339 + $0x28] sm:$0xff]
      %v2346 = vld [vmem:[%s2339 + $0x30] sm:$0xff]
      %v2347 = vld [vmem:[%s2339 + $0x38] sm:$0xff]
      %v2348 = vld [vmem:[%s2339 + $0x40] sm:$0xff]
      %v2349 = vld [vmem:[%s2339 + $0x48] sm:$0xff]
      %v2350 = vld [vmem:[%s2339 + $0x50] sm:$0xff]
      %v2351 = vld [vmem:[%s2339 + $0x58] sm:$0xff]
      %v2352 = vld [vmem:[%s2339 + $0x60] sm:$0xff]
      %v2353 = vld [vmem:[%s2339 + $0x68] sm:$0xff]
      %v2354 = vld [vmem:[%s2339 + $0x70] sm:$0xff]
      %v2355 = vld [vmem:[%s2339 + $0x78] sm:$0xff]
      %v2356 = vld [vmem:[%s2339 + $0x80] sm:$0xff]
      %v2357 = vld [vmem:[%s2339 + $0x88] sm:$0xff]
      %v2358 = vld [vmem:[%s2339 + $0x90] sm:$0xff]
      %v2359 = vld [vmem:[%s2339 + $0x98] sm:$0xff]
      %v2360 = vld [vmem:[%s2339 + $0xa0] sm:$0xff]
      %v2361 = vld [vmem:[%s2339 + $0xa8] sm:$0xff]
      %v2362 = vld [vmem:[%s2339 + $0xb0] sm:$0xff]
      %v2363 = vld [vmem:[%s2339 + $0xb8] sm:$0xff]
      %v2364 = vld [vmem:[%s2339 + $0xc0] sm:$0xff]
      %v2365 = vld [vmem:[%s2339 + $0xc8] sm:$0xff]
      %v2366 = vld [vmem:[%s2339 + $0xd0] sm:$0xff]
      %v2367 = vld [vmem:[%s2339 + $0xd8] sm:$0xff]
      %v2368 = vld [vmem:[%s2339 + $0xe0] sm:$0xff]
      %v2369 = vld [vmem:[%s2339 + $0xe8] sm:$0xff]
      %v2370 = vld [vmem:[%s2339 + $0xf0] sm:$0xff]
      %v2371 = vld [vmem:[%s2339 + $0xf8] sm:$0xff]
      %s2372 = smul.addr %s2336, 8
      %s2373 = scalar_lea.vmem [#allocation4], %s2372
      %2374 = vst [vmem:[%s2373] sm:$0xff] %v2340
      %2375 = vst [vmem:[%s2373 + $0x8] sm:$0xff] %v2341
      %2376 = vst [vmem:[%s2373 + $0x10] sm:$0xff] %v2342
      %2377 = vst [vmem:[%s2373 + $0x18] sm:$0xff] %v2343
      %2378 = vst [vmem:[%s2373 + $0x20] sm:$0xff] %v2344
      %2379 = vst [vmem:[%s2373 + $0x28] sm:$0xff] %v2345
      %2380 = vst [vmem:[%s2373 + $0x30] sm:$0xff] %v2346
      %2381 = vst [vmem:[%s2373 + $0x38] sm:$0xff] %v2347
      %2382 = vst [vmem:[%s2373 + $0x40] sm:$0xff] %v2348
      %2383 = vst [vmem:[%s2373 + $0x48] sm:$0xff] %v2349
      %2384 = vst [vmem:[%s2373 + $0x50] sm:$0xff] %v2350
      %2385 = vst [vmem:[%s2373 + $0x58] sm:$0xff] %v2351
      %2386 = vst [vmem:[%s2373 + $0x60] sm:$0xff] %v2352
      %2387 = vst [vmem:[%s2373 + $0x68] sm:$0xff] %v2353
      %2388 = vst [vmem:[%s2373 + $0x70] sm:$0xff] %v2354
      %2389 = vst [vmem:[%s2373 + $0x78] sm:$0xff] %v2355
      %2390 = vst [vmem:[%s2373 + $0x80] sm:$0xff] %v2356
      %2391 = vst [vmem:[%s2373 + $0x88] sm:$0xff] %v2357
      %2392 = vst [vmem:[%s2373 + $0x90] sm:$0xff] %v2358
      %2393 = vst [vmem:[%s2373 + $0x98] sm:$0xff] %v2359
      %2394 = vst [vmem:[%s2373 + $0xa0] sm:$0xff] %v2360
      %2395 = vst [vmem:[%s2373 + $0xa8] sm:$0xff] %v2361
      %2396 = vst [vmem:[%s2373 + $0xb0] sm:$0xff] %v2362
      %2397 = vst [vmem:[%s2373 + $0xb8] sm:$0xff] %v2363
      %2398 = vst [vmem:[%s2373 + $0xc0] sm:$0xff] %v2364
      %2399 = vst [vmem:[%s2373 + $0xc8] sm:$0xff] %v2365
      %2400 = vst [vmem:[%s2373 + $0xd0] sm:$0xff] %v2366
      %2401 = vst [vmem:[%s2373 + $0xd8] sm:$0xff] %v2367
      %2402 = vst [vmem:[%s2373 + $0xe0] sm:$0xff] %v2368
      %2403 = vst [vmem:[%s2373 + $0xe8] sm:$0xff] %v2369
      %2404 = vst [vmem:[%s2373 + $0xf0] sm:$0xff] %v2370
      %2405 = vst [vmem:[%s2373 + $0xf8] sm:$0xff] %v2371
    $region33: #{llama_mlp_forward.3} parent=1 // pred_fallthru
      _
    // Predicated region
    $region34: #{llama_mlp_forward.3} parent=1 // pred_check
      _
    $region35: #{llama_mlp_forward.3} parent=1 // pred_check_branch
      %2407 = sbr.rel (0) target = $region37
    $region36: #{llama_mlp_forward.3} parent=1 // pred_region
      %s2409 = ssub.s32 4096, 4096
      %2410 = vsyncadd [#allocation5], %s2409
      %s2411 = sshll.u32 [#allocation4], 4
      %s2412 = int_to_ptr.vmem [resolvable:$true] %s2411
      %2417 = dma.vmem_to_hbm [thread:$0]  %s2412, 4096, %s4, [#allocation5], 256, 256, 16
    $region37: #{llama_mlp_forward.3} parent=1 // pred_fallthru
      _
    // Predicated region
    $region38: #{llama_mlp_forward.3} parent=1 // pred_check
      _
    $region39: #{llama_mlp_forward.3} parent=1 // pred_check_branch
      %2419 = sbr.rel (0) target = $region41
    $region40: #{llama_mlp_forward.3} parent=1 // pred_region
      %2420 = dma.done [#allocation5], 4096
    $region41: #{llama_mlp_forward.3} parent=1 // pred_fallthru
      _
    %2421 = vsyncpa [#allocation5], 1

</llo_original>
